<compile_context>
chip_gen: v5e
topology: v5e:2x2
jax: 0.10.0
libtpu: 0.0.40
codegen_flags: <defaults>
</compile_context>

<pallas_src>
import jax
import jax.numpy as jnp
from jax.experimental import pallas as pl
from jax.experimental.pallas import tpu as pltpu

LANES = 128  # pad channel dim to this for lane-dense loads/stores


# ----------------------------------------------------------------------------
# Fused Pallas kernel: conv1 + bn1 + relu + conv2 + bn2 + residual add
# ----------------------------------------------------------------------------
def _basic_block_kernel(x_ref, w1_ref, s1_ref, t1_ref, w2_ref, s2_ref, t2_ref,
                        o_ref, hpad_ref):
    """One image per grid step.

    x_ref   : (1, H+2, W+2, Cp) f32   spatially pre-padded NHWC input
    w1/w2   : (9, Cp, Cp)       bf16  3x3 conv weights as 9 (Cin,Cout) matrices
    s*/t*   : (1, Cp)           f32   folded BatchNorm scale / shift
    o_ref   : (1, H, W, Cp)     f32   block output (conv2+bn2+identity, no ReLU)
    hpad_ref: (H+2, W+2, Cp)    f32   VMEM scratch: padded conv1 activation
    """
    H, W, Cp = o_ref.shape[1], o_ref.shape[2], o_ref.shape[3]

    # ---- conv1 (3x3, pad=1 pre-applied in HBM) as 9 shifted-slice matmuls ----
    acc = jnp.zeros((H * W, Cp), jnp.float32)
    for kh in range(3):
        for kw in range(3):
            patch = x_ref[0, pl.ds(kh, H), pl.ds(kw, W), :]
            patch = patch.reshape(H * W, Cp).astype(jnp.bfloat16)
            acc = acc + jnp.dot(patch, w1_ref[kh * 3 + kw],
                                preferred_element_type=jnp.float32)

    # ---- bn1 (folded affine) + relu, f32 elementwise -------------------------
    h1 = jnp.maximum(acc * s1_ref[...] + t1_ref[...], 0.0)

    # ---- keep padded intermediate in VMEM for conv2 (no HBM round-trip) ------
    # Zero every step (scratch persists across the parallel-sharded grid, so we
    # must not rely on a "first iteration" init); interior is then overwritten.
    hpad_ref[...] = jnp.zeros_like(hpad_ref)
    hpad_ref[pl.ds(1, H), pl.ds(1, W), :] = h1.reshape(H, W, Cp)

    # ---- conv2 (3x3, pad=1) ---------------------------------------------------
    acc2 = jnp.zeros((H * W, Cp), jnp.float32)
    for kh in range(3):
        for kw in range(3):
            patch = hpad_ref[pl.ds(kh, H), pl.ds(kw, W), :]
            patch = patch.reshape(H * W, Cp).astype(jnp.bfloat16)
            acc2 = acc2 + jnp.dot(patch, w2_ref[kh * 3 + kw],
                                  preferred_element_type=jnp.float32)

    # ---- bn2 + residual add (identity = un-shifted interior of padded x) -----
    identity = x_ref[0, pl.ds(1, H), pl.ds(1, W), :].reshape(H * W, Cp)
    out = acc2 * s2_ref[...] + t2_ref[...] + identity
    o_ref[0] = out.reshape(H, W, Cp).astype(o_ref.dtype)


def basic_block_forward(x_nchw, params):
    """x_nchw: (B, C, H, W) f32 -> (B, C, H, W) f32 (BasicBlock forward)."""
    B, C, H, W = x_nchw.shape
    Cp = LANES
    assert C <= Cp

    # NCHW -> NHWC, spatial pad=1 for the 3x3 convs, channel pad to 128 lanes.
    x = jnp.transpose(x_nchw, (0, 2, 3, 1))
    x = jnp.pad(x, ((0, 0), (1, 1), (1, 1), (0, Cp - C)))

    out = pl.pallas_call(
        _basic_block_kernel,
        out_shape=jax.ShapeDtypeStruct((B, H, W, Cp), jnp.float32),
        grid=(B,),
        in_specs=[
            pl.BlockSpec((1, H + 2, W + 2, Cp), lambda b: (b, 0, 0, 0)),
            pl.BlockSpec((9, Cp, Cp), lambda b: (0, 0, 0)),
            pl.BlockSpec((1, Cp), lambda b: (0, 0)),
            pl.BlockSpec((1, Cp), lambda b: (0, 0)),
            pl.BlockSpec((9, Cp, Cp), lambda b: (0, 0, 0)),
            pl.BlockSpec((1, Cp), lambda b: (0, 0)),
            pl.BlockSpec((1, Cp), lambda b: (0, 0)),
        ],
        out_specs=pl.BlockSpec((1, H, W, Cp), lambda b: (b, 0, 0, 0)),
        scratch_shapes=[pltpu.VMEM((H + 2, W + 2, Cp), jnp.float32)],
        compiler_params=pltpu.CompilerParams(
            dimension_semantics=("parallel",)),
    )(x, params["w1"], params["s1"], params["t1"],
      params["w2"], params["s2"], params["t2"])

    out = out[..., :C]                          # drop lane padding
    return jnp.transpose(out, (0, 3, 1, 2))     # NHWC -> NCHW


# ----------------------------------------------------------------------------
# Parameter preparation (done once, outside the kernel)
# ----------------------------------------------------------------------------
def prepare_params(raw, C, eps=1e-5):
    """Fold BN into scale/shift, pad channels to 128, lay out conv weights as
    (9, Cp, Cp) bf16 matrices in (kh, kw, cin, cout) order."""
    Cp = LANES

    def conv_to_mats(w):  # (Cout, Cin, 3, 3) torch layout
        w = jnp.transpose(w, (2, 3, 1, 0))                         # (3,3,Cin,Cout)
        w = jnp.pad(w, ((0, 0), (0, 0),
                        (0, Cp - w.shape[2]), (0, Cp - w.shape[3])))
        return w.reshape(9, Cp, Cp).astype(jnp.bfloat16)

    def bn_to_affine(gamma, beta, mean, var):
        scale = gamma / jnp.sqrt(var + eps)
        shift = beta - mean * scale
        scale = jnp.pad(scale, (0, Cp - C)).reshape(1, Cp).astype(jnp.float32)
        shift = jnp.pad(shift, (0, Cp - C)).reshape(1, Cp).astype(jnp.float32)
        return scale, shift

    s1, t1 = bn_to_affine(*raw["bn1"])
    s2, t2 = bn_to_affine(*raw["bn2"])
    return {
        "w1": conv_to_mats(raw["conv1_w"]), "s1": s1, "t1": t1,
        "w2": conv_to_mats(raw["conv2_w"]), "s2": s2, "t2": t2,
    }


# ----------------------------------------------------------------------------
# Pure-JAX reference (inference-mode BasicBlock) for a correctness check
# ----------------------------------------------------------------------------
def basic_block_reference(x, raw, eps=1e-5):
    def conv3x3(x, w):
        return jax.lax.conv_general_dilated(
            x, w, window_strides=(1, 1), padding=((1, 1), (1, 1)),
            dimension_numbers=("NCHW", "OIHW", "NCHW"))

    def bn(x, gamma, beta, mean, var):
        inv = gamma / jnp.sqrt(var + eps)
        return (x * inv[None, :, None, None]
                + (beta - mean * inv)[None, :, None, None])

    out = conv3x3(x, raw["conv1_w"])
    out = jnp.maximum(bn(out, *raw["bn1"]), 0.0)
    out = conv3x3(out, raw["conv2_w"])
    out = bn(out, *raw["bn2"])
    return out + x                               # no ReLU after the add (spec)


# ----------------------------------------------------------------------------
if __name__ == "__main__":
    B, C, H, W = 2, 16, 16, 16                   # inplanes == planes == 16

    key = jax.random.PRNGKey(0)
    ks = jax.random.split(key, 12)

    raw = {
        "conv1_w": 0.1 * jax.random.normal(ks[0], (C, C, 3, 3), jnp.float32),
        "conv2_w": 0.1 * jax.random.normal(ks[1], (C, C, 3, 3), jnp.float32),
        "bn1": (1.0 + 0.1 * jax.random.normal(ks[2], (C,), jnp.float32),
                0.1 * jax.random.normal(ks[3], (C,), jnp.float32),
                0.1 * jax.random.normal(ks[4], (C,), jnp.float32),
                jax.random.uniform(ks[5], (C,), jnp.float32, 0.5, 1.5)),
        "bn2": (1.0 + 0.1 * jax.random.normal(ks[6], (C,), jnp.float32),
                0.1 * jax.random.normal(ks[7], (C,), jnp.float32),
                0.1 * jax.random.normal(ks[8], (C,), jnp.float32),
                jax.random.uniform(ks[9], (C,), jnp.float32, 0.5, 1.5)),
    }
    params = prepare_params(raw, C)
    x = jax.random.normal(ks[10], (B, C, H, W), jnp.float32)

    fwd = jax.jit(basic_block_forward)
    out = jax.block_until_ready(fwd(x, params))

    assert out.shape == (B, C, H, W)
    ref = jax.block_until_ready(basic_block_reference(x, raw))
    # bf16 MXU operands with f32 accumulation -> loose tolerance.
    err = float(jnp.max(jnp.abs(out - ref)))
    assert err < 1e-1, err

    print("KERNEL_OK")
</pallas_src>

<mosaic_0001>
module attributes {stable_mosaic.version = 11 : i64} {
  func.func @_basic_block_kernel(%arg0: i32, %arg1: memref<1x18x18x128xf32, #tpu.memory_space<vmem>>, %arg2: memref<9x128x128xbf16, #tpu.memory_space<vmem>>, %arg3: memref<1x128xf32, #tpu.memory_space<vmem>>, %arg4: memref<1x128xf32, #tpu.memory_space<vmem>>, %arg5: memref<9x128x128xbf16, #tpu.memory_space<vmem>>, %arg6: memref<1x128xf32, #tpu.memory_space<vmem>>, %arg7: memref<1x128xf32, #tpu.memory_space<vmem>>, %arg8: memref<1x16x16x128xf32, #tpu.memory_space<vmem>>, %arg9: memref<18x18x128xf32, #tpu.memory_space<vmem>>) attributes {dimension_semantics = [#tpu.dimension_semantics<parallel>], iteration_bounds = array<i64: 2>, scalar_prefetch = 0 : i64, scratch_operands = 1 : i64, tpu.core_type = #tpu.core_type<tc>, window_params = [{transform_indices = @transform_0, window_bounds = array<i64: 1, 18, 18, 128>}, {pipeline_mode = #tpu.pipeline_mode<synchronous>, transform_indices = @transform_1, window_bounds = array<i64: 9, 128, 128>}, {pipeline_mode = #tpu.pipeline_mode<synchronous>, transform_indices = @transform_2, window_bounds = array<i64: 1, 128>}, {pipeline_mode = #tpu.pipeline_mode<synchronous>, transform_indices = @transform_3, window_bounds = array<i64: 1, 128>}, {pipeline_mode = #tpu.pipeline_mode<synchronous>, transform_indices = @transform_4, window_bounds = array<i64: 9, 128, 128>}, {pipeline_mode = #tpu.pipeline_mode<synchronous>, transform_indices = @transform_5, window_bounds = array<i64: 1, 128>}, {pipeline_mode = #tpu.pipeline_mode<synchronous>, transform_indices = @transform_6, window_bounds = array<i64: 1, 128>}, {transform_indices = @transform_7, window_bounds = array<i64: 1, 16, 16, 128>}]} {
    %cst = arith.constant 0.000000e+00 : f32
    %0 = vector.broadcast %cst : f32 to vector<256x128xf32>
    %c0 = arith.constant 0 : index
    %c0_0 = arith.constant 0 : index
    %c0_1 = arith.constant 0 : index
    %c0_2 = arith.constant 0 : index
    %1 = vector.load %arg1[%c0, %c0_0, %c0_1, %c0_2] : memref<1x18x18x128xf32, #tpu.memory_space<vmem>>, vector<1x16x16x128xf32>
    %2 = vector.shape_cast %1 : vector<1x16x16x128xf32> to vector<16x16x128xf32>
    %3 = vector.shape_cast %2 : vector<16x16x128xf32> to vector<256x128xf32>
    %4 = arith.truncf %3 : vector<256x128xf32> to vector<256x128xbf16>
    %c0_3 = arith.constant 0 : index
    %c0_4 = arith.constant 0 : index
    %c0_5 = arith.constant 0 : index
    %5 = vector.load %arg2[%c0_3, %c0_4, %c0_5] : memref<9x128x128xbf16, #tpu.memory_space<vmem>>, vector<1x128x128xbf16>
    %6 = vector.shape_cast %5 : vector<1x128x128xbf16> to vector<128x128xbf16>
    %cst_6 = arith.constant dense<0.000000e+00> : vector<256x128xf32>
    %7 = tpu.matmul %4, %6, %cst_6 {dimension_numbers = #tpu.dot_dimension_numbers<[1], [0], [0], [1], [0, 0, 1, 1], [], []>} : vector<256x128xbf16>, vector<128x128xbf16>, vector<256x128xf32> -> vector<256x128xf32>
    %8 = arith.addf %0, %7 : vector<256x128xf32>
    %c0_7 = arith.constant 0 : index
    %c0_8 = arith.constant 0 : index
    %c1 = arith.constant 1 : index
    %c0_9 = arith.constant 0 : index
    %9 = vector.load %arg1[%c0_7, %c0_8, %c1, %c0_9] : memref<1x18x18x128xf32, #tpu.memory_space<vmem>>, vector<1x16x16x128xf32>
    %10 = vector.shape_cast %9 : vector<1x16x16x128xf32> to vector<16x16x128xf32>
    %11 = vector.shape_cast %10 : vector<16x16x128xf32> to vector<256x128xf32>
    %12 = arith.truncf %11 : vector<256x128xf32> to vector<256x128xbf16>
    %c1_10 = arith.constant 1 : index
    %c0_11 = arith.constant 0 : index
    %c0_12 = arith.constant 0 : index
    %13 = vector.load %arg2[%c1_10, %c0_11, %c0_12] : memref<9x128x128xbf16, #tpu.memory_space<vmem>>, vector<1x128x128xbf16>
    %14 = vector.shape_cast %13 : vector<1x128x128xbf16> to vector<128x128xbf16>
    %cst_13 = arith.constant dense<0.000000e+00> : vector<256x128xf32>
    %15 = tpu.matmul %12, %14, %cst_13 {dimension_numbers = #tpu.dot_dimension_numbers<[1], [0], [0], [1], [0, 0, 1, 1], [], []>} : vector<256x128xbf16>, vector<128x128xbf16>, vector<256x128xf32> -> vector<256x128xf32>
    %16 = arith.addf %8, %15 : vector<256x128xf32>
    %c0_14 = arith.constant 0 : index
    %c0_15 = arith.constant 0 : index
    %c2 = arith.constant 2 : index
    %c0_16 = arith.constant 0 : index
    %17 = vector.load %arg1[%c0_14, %c0_15, %c2, %c0_16] : memref<1x18x18x128xf32, #tpu.memory_space<vmem>>, vector<1x16x16x128xf32>
    %18 = vector.shape_cast %17 : vector<1x16x16x128xf32> to vector<16x16x128xf32>
    %19 = vector.shape_cast %18 : vector<16x16x128xf32> to vector<256x128xf32>
    %20 = arith.truncf %19 : vector<256x128xf32> to vector<256x128xbf16>
    %c2_17 = arith.constant 2 : index
    %c0_18 = arith.constant 0 : index
    %c0_19 = arith.constant 0 : index
    %21 = vector.load %arg2[%c2_17, %c0_18, %c0_19] : memref<9x128x128xbf16, #tpu.memory_space<vmem>>, vector<1x128x128xbf16>
    %22 = vector.shape_cast %21 : vector<1x128x128xbf16> to vector<128x128xbf16>
    %cst_20 = arith.constant dense<0.000000e+00> : vector<256x128xf32>
    %23 = tpu.matmul %20, %22, %cst_20 {dimension_numbers = #tpu.dot_dimension_numbers<[1], [0], [0], [1], [0, 0, 1, 1], [], []>} : vector<256x128xbf16>, vector<128x128xbf16>, vector<256x128xf32> -> vector<256x128xf32>
    %24 = arith.addf %16, %23 : vector<256x128xf32>
    %c0_21 = arith.constant 0 : index
    %c1_22 = arith.constant 1 : index
    %c0_23 = arith.constant 0 : index
    %c0_24 = arith.constant 0 : index
    %25 = vector.load %arg1[%c0_21, %c1_22, %c0_23, %c0_24] : memref<1x18x18x128xf32, #tpu.memory_space<vmem>>, vector<1x16x16x128xf32>
    %26 = vector.shape_cast %25 : vector<1x16x16x128xf32> to vector<16x16x128xf32>
    %27 = vector.shape_cast %26 : vector<16x16x128xf32> to vector<256x128xf32>
    %28 = arith.truncf %27 : vector<256x128xf32> to vector<256x128xbf16>
    %c3 = arith.constant 3 : index
    %c0_25 = arith.constant 0 : index
    %c0_26 = arith.constant 0 : index
    %29 = vector.load %arg2[%c3, %c0_25, %c0_26] : memref<9x128x128xbf16, #tpu.memory_space<vmem>>, vector<1x128x128xbf16>
    %30 = vector.shape_cast %29 : vector<1x128x128xbf16> to vector<128x128xbf16>
    %cst_27 = arith.constant dense<0.000000e+00> : vector<256x128xf32>
    %31 = tpu.matmul %28, %30, %cst_27 {dimension_numbers = #tpu.dot_dimension_numbers<[1], [0], [0], [1], [0, 0, 1, 1], [], []>} : vector<256x128xbf16>, vector<128x128xbf16>, vector<256x128xf32> -> vector<256x128xf32>
    %32 = arith.addf %24, %31 : vector<256x128xf32>
    %c0_28 = arith.constant 0 : index
    %c1_29 = arith.constant 1 : index
    %c1_30 = arith.constant 1 : index
    %c0_31 = arith.constant 0 : index
    %33 = vector.load %arg1[%c0_28, %c1_29, %c1_30, %c0_31] : memref<1x18x18x128xf32, #tpu.memory_space<vmem>>, vector<1x16x16x128xf32>
    %34 = vector.shape_cast %33 : vector<1x16x16x128xf32> to vector<16x16x128xf32>
    %35 = vector.shape_cast %34 : vector<16x16x128xf32> to vector<256x128xf32>
    %36 = arith.truncf %35 : vector<256x128xf32> to vector<256x128xbf16>
    %c4 = arith.constant 4 : index
    %c0_32 = arith.constant 0 : index
    %c0_33 = arith.constant 0 : index
    %37 = vector.load %arg2[%c4, %c0_32, %c0_33] : memref<9x128x128xbf16, #tpu.memory_space<vmem>>, vector<1x128x128xbf16>
    %38 = vector.shape_cast %37 : vector<1x128x128xbf16> to vector<128x128xbf16>
    %cst_34 = arith.constant dense<0.000000e+00> : vector<256x128xf32>
    %39 = tpu.matmul %36, %38, %cst_34 {dimension_numbers = #tpu.dot_dimension_numbers<[1], [0], [0], [1], [0, 0, 1, 1], [], []>} : vector<256x128xbf16>, vector<128x128xbf16>, vector<256x128xf32> -> vector<256x128xf32>
    %40 = arith.addf %32, %39 : vector<256x128xf32>
    %c0_35 = arith.constant 0 : index
    %c1_36 = arith.constant 1 : index
    %c2_37 = arith.constant 2 : index
    %c0_38 = arith.constant 0 : index
    %41 = vector.load %arg1[%c0_35, %c1_36, %c2_37, %c0_38] : memref<1x18x18x128xf32, #tpu.memory_space<vmem>>, vector<1x16x16x128xf32>
    %42 = vector.shape_cast %41 : vector<1x16x16x128xf32> to vector<16x16x128xf32>
    %43 = vector.shape_cast %42 : vector<16x16x128xf32> to vector<256x128xf32>
    %44 = arith.truncf %43 : vector<256x128xf32> to vector<256x128xbf16>
    %c5 = arith.constant 5 : index
    %c0_39 = arith.constant 0 : index
    %c0_40 = arith.constant 0 : index
    %45 = vector.load %arg2[%c5, %c0_39, %c0_40] : memref<9x128x128xbf16, #tpu.memory_space<vmem>>, vector<1x128x128xbf16>
    %46 = vector.shape_cast %45 : vector<1x128x128xbf16> to vector<128x128xbf16>
    %cst_41 = arith.constant dense<0.000000e+00> : vector<256x128xf32>
    %47 = tpu.matmul %44, %46, %cst_41 {dimension_numbers = #tpu.dot_dimension_numbers<[1], [0], [0], [1], [0, 0, 1, 1], [], []>} : vector<256x128xbf16>, vector<128x128xbf16>, vector<256x128xf32> -> vector<256x128xf32>
    %48 = arith.addf %40, %47 : vector<256x128xf32>
    %c0_42 = arith.constant 0 : index
    %c2_43 = arith.constant 2 : index
    %c0_44 = arith.constant 0 : index
    %c0_45 = arith.constant 0 : index
    %49 = vector.load %arg1[%c0_42, %c2_43, %c0_44, %c0_45] : memref<1x18x18x128xf32, #tpu.memory_space<vmem>>, vector<1x16x16x128xf32>
    %50 = vector.shape_cast %49 : vector<1x16x16x128xf32> to vector<16x16x128xf32>
    %51 = vector.shape_cast %50 : vector<16x16x128xf32> to vector<256x128xf32>
    %52 = arith.truncf %51 : vector<256x128xf32> to vector<256x128xbf16>
    %c6 = arith.constant 6 : index
    %c0_46 = arith.constant 0 : index
    %c0_47 = arith.constant 0 : index
    %53 = vector.load %arg2[%c6, %c0_46, %c0_47] : memref<9x128x128xbf16, #tpu.memory_space<vmem>>, vector<1x128x128xbf16>
    %54 = vector.shape_cast %53 : vector<1x128x128xbf16> to vector<128x128xbf16>
    %cst_48 = arith.constant dense<0.000000e+00> : vector<256x128xf32>
    %55 = tpu.matmul %52, %54, %cst_48 {dimension_numbers = #tpu.dot_dimension_numbers<[1], [0], [0], [1], [0, 0, 1, 1], [], []>} : vector<256x128xbf16>, vector<128x128xbf16>, vector<256x128xf32> -> vector<256x128xf32>
    %56 = arith.addf %48, %55 : vector<256x128xf32>
    %c0_49 = arith.constant 0 : index
    %c2_50 = arith.constant 2 : index
    %c1_51 = arith.constant 1 : index
    %c0_52 = arith.constant 0 : index
    %57 = vector.load %arg1[%c0_49, %c2_50, %c1_51, %c0_52] : memref<1x18x18x128xf32, #tpu.memory_space<vmem>>, vector<1x16x16x128xf32>
    %58 = vector.shape_cast %57 : vector<1x16x16x128xf32> to vector<16x16x128xf32>
    %59 = vector.shape_cast %58 : vector<16x16x128xf32> to vector<256x128xf32>
    %60 = arith.truncf %59 : vector<256x128xf32> to vector<256x128xbf16>
    %c7 = arith.constant 7 : index
    %c0_53 = arith.constant 0 : index
    %c0_54 = arith.constant 0 : index
    %61 = vector.load %arg2[%c7, %c0_53, %c0_54] : memref<9x128x128xbf16, #tpu.memory_space<vmem>>, vector<1x128x128xbf16>
    %62 = vector.shape_cast %61 : vector<1x128x128xbf16> to vector<128x128xbf16>
    %cst_55 = arith.constant dense<0.000000e+00> : vector<256x128xf32>
    %63 = tpu.matmul %60, %62, %cst_55 {dimension_numbers = #tpu.dot_dimension_numbers<[1], [0], [0], [1], [0, 0, 1, 1], [], []>} : vector<256x128xbf16>, vector<128x128xbf16>, vector<256x128xf32> -> vector<256x128xf32>
    %64 = arith.addf %56, %63 : vector<256x128xf32>
    %c0_56 = arith.constant 0 : index
    %c2_57 = arith.constant 2 : index
    %c2_58 = arith.constant 2 : index
    %c0_59 = arith.constant 0 : index
    %65 = vector.load %arg1[%c0_56, %c2_57, %c2_58, %c0_59] : memref<1x18x18x128xf32, #tpu.memory_space<vmem>>, vector<1x16x16x128xf32>
    %66 = vector.shape_cast %65 : vector<1x16x16x128xf32> to vector<16x16x128xf32>
    %67 = vector.shape_cast %66 : vector<16x16x128xf32> to vector<256x128xf32>
    %68 = arith.truncf %67 : vector<256x128xf32> to vector<256x128xbf16>
    %c8 = arith.constant 8 : index
    %c0_60 = arith.constant 0 : index
    %c0_61 = arith.constant 0 : index
    %69 = vector.load %arg2[%c8, %c0_60, %c0_61] : memref<9x128x128xbf16, #tpu.memory_space<vmem>>, vector<1x128x128xbf16>
    %70 = vector.shape_cast %69 : vector<1x128x128xbf16> to vector<128x128xbf16>
    %cst_62 = arith.constant dense<0.000000e+00> : vector<256x128xf32>
    %71 = tpu.matmul %68, %70, %cst_62 {dimension_numbers = #tpu.dot_dimension_numbers<[1], [0], [0], [1], [0, 0, 1, 1], [], []>} : vector<256x128xbf16>, vector<128x128xbf16>, vector<256x128xf32> -> vector<256x128xf32>
    %72 = arith.addf %64, %71 : vector<256x128xf32>
    %c0_63 = arith.constant 0 : index
    %c0_64 = arith.constant 0 : index
    %73 = vector.load %arg3[%c0_63, %c0_64] : memref<1x128xf32, #tpu.memory_space<vmem>>, vector<1x128xf32>
    %74 = vector.broadcast %73 : vector<1x128xf32> to vector<256x128xf32>
    %75 = arith.mulf %72, %74 : vector<256x128xf32>
    %c0_65 = arith.constant 0 : index
    %c0_66 = arith.constant 0 : index
    %76 = vector.load %arg4[%c0_65, %c0_66] : memref<1x128xf32, #tpu.memory_space<vmem>>, vector<1x128xf32>
    %77 = vector.broadcast %76 : vector<1x128xf32> to vector<256x128xf32>
    %78 = arith.addf %75, %77 : vector<256x128xf32>
    %cst_67 = arith.constant 0.000000e+00 : f32
    %79 = vector.broadcast %cst_67 : f32 to vector<256x128xf32>
    %80 = arith.maximumf %78, %79 : vector<256x128xf32>
    %cst_68 = arith.constant 0.000000e+00 : f32
    %81 = vector.broadcast %cst_68 : f32 to vector<18x18x128xf32>
    %c0_69 = arith.constant 0 : index
    %c0_70 = arith.constant 0 : index
    %c0_71 = arith.constant 0 : index
    %82 = vector.load %arg9[%c0_69, %c0_70, %c0_71] : memref<18x18x128xf32, #tpu.memory_space<vmem>>, vector<18x18x128xf32>
    tpu.vector_store %arg9[%c0_69, %c0_70, %c0_71], %81 {strides = array<i32>} : memref<18x18x128xf32, #tpu.memory_space<vmem>>, vector<18x18x128xf32>,
    %83 = vector.shape_cast %80 : vector<256x128xf32> to vector<16x16x128xf32>
    %c1_72 = arith.constant 1 : index
    %c1_73 = arith.constant 1 : index
    %c0_74 = arith.constant 0 : index
    %84 = vector.load %arg9[%c1_72, %c1_73, %c0_74] : memref<18x18x128xf32, #tpu.memory_space<vmem>>, vector<16x16x128xf32>
    tpu.vector_store %arg9[%c1_72, %c1_73, %c0_74], %83 {strides = array<i32>} : memref<18x18x128xf32, #tpu.memory_space<vmem>>, vector<16x16x128xf32>,
    %cst_75 = arith.constant 0.000000e+00 : f32
    %85 = vector.broadcast %cst_75 : f32 to vector<256x128xf32>
    %c0_76 = arith.constant 0 : index
    %c0_77 = arith.constant 0 : index
    %c0_78 = arith.constant 0 : index
    %86 = vector.load %arg9[%c0_76, %c0_77, %c0_78] : memref<18x18x128xf32, #tpu.memory_space<vmem>>, vector<16x16x128xf32>
    %87 = vector.shape_cast %86 : vector<16x16x128xf32> to vector<256x128xf32>
    %88 = arith.truncf %87 : vector<256x128xf32> to vector<256x128xbf16>
    %c0_79 = arith.constant 0 : index
    %c0_80 = arith.constant 0 : index
    %c0_81 = arith.constant 0 : index
    %89 = vector.load %arg5[%c0_79, %c0_80, %c0_81] : memref<9x128x128xbf16, #tpu.memory_space<vmem>>, vector<1x128x128xbf16>
    %90 = vector.shape_cast %89 : vector<1x128x128xbf16> to vector<128x128xbf16>
    %cst_82 = arith.constant dense<0.000000e+00> : vector<256x128xf32>
    %91 = tpu.matmul %88, %90, %cst_82 {dimension_numbers = #tpu.dot_dimension_numbers<[1], [0], [0], [1], [0, 0, 1, 1], [], []>} : vector<256x128xbf16>, vector<128x128xbf16>, vector<256x128xf32> -> vector<256x128xf32>
    %92 = arith.addf %85, %91 : vector<256x128xf32>
    %c0_83 = arith.constant 0 : index
    %c1_84 = arith.constant 1 : index
    %c0_85 = arith.constant 0 : index
    %93 = vector.load %arg9[%c0_83, %c1_84, %c0_85] : memref<18x18x128xf32, #tpu.memory_space<vmem>>, vector<16x16x128xf32>
    %94 = vector.shape_cast %93 : vector<16x16x128xf32> to vector<256x128xf32>
    %95 = arith.truncf %94 : vector<256x128xf32> to vector<256x128xbf16>
    %c1_86 = arith.constant 1 : index
    %c0_87 = arith.constant 0 : index
    %c0_88 = arith.constant 0 : index
    %96 = vector.load %arg5[%c1_86, %c0_87, %c0_88] : memref<9x128x128xbf16, #tpu.memory_space<vmem>>, vector<1x128x128xbf16>
    %97 = vector.shape_cast %96 : vector<1x128x128xbf16> to vector<128x128xbf16>
    %cst_89 = arith.constant dense<0.000000e+00> : vector<256x128xf32>
    %98 = tpu.matmul %95, %97, %cst_89 {dimension_numbers = #tpu.dot_dimension_numbers<[1], [0], [0], [1], [0, 0, 1, 1], [], []>} : vector<256x128xbf16>, vector<128x128xbf16>, vector<256x128xf32> -> vector<256x128xf32>
    %99 = arith.addf %92, %98 : vector<256x128xf32>
    %c0_90 = arith.constant 0 : index
    %c2_91 = arith.constant 2 : index
    %c0_92 = arith.constant 0 : index
    %100 = vector.load %arg9[%c0_90, %c2_91, %c0_92] : memref<18x18x128xf32, #tpu.memory_space<vmem>>, vector<16x16x128xf32>
    %101 = vector.shape_cast %100 : vector<16x16x128xf32> to vector<256x128xf32>
    %102 = arith.truncf %101 : vector<256x128xf32> to vector<256x128xbf16>
    %c2_93 = arith.constant 2 : index
    %c0_94 = arith.constant 0 : index
    %c0_95 = arith.constant 0 : index
    %103 = vector.load %arg5[%c2_93, %c0_94, %c0_95] : memref<9x128x128xbf16, #tpu.memory_space<vmem>>, vector<1x128x128xbf16>
    %104 = vector.shape_cast %103 : vector<1x128x128xbf16> to vector<128x128xbf16>
    %cst_96 = arith.constant dense<0.000000e+00> : vector<256x128xf32>
    %105 = tpu.matmul %102, %104, %cst_96 {dimension_numbers = #tpu.dot_dimension_numbers<[1], [0], [0], [1], [0, 0, 1, 1], [], []>} : vector<256x128xbf16>, vector<128x128xbf16>, vector<256x128xf32> -> vector<256x128xf32>
    %106 = arith.addf %99, %105 : vector<256x128xf32>
    %c1_97 = arith.constant 1 : index
    %c0_98 = arith.constant 0 : index
    %c0_99 = arith.constant 0 : index
    %107 = vector.load %arg9[%c1_97, %c0_98, %c0_99] : memref<18x18x128xf32, #tpu.memory_space<vmem>>, vector<16x16x128xf32>
    %108 = vector.shape_cast %107 : vector<16x16x128xf32> to vector<256x128xf32>
    %109 = arith.truncf %108 : vector<256x128xf32> to vector<256x128xbf16>
    %c3_100 = arith.constant 3 : index
    %c0_101 = arith.constant 0 : index
    %c0_102 = arith.constant 0 : index
    %110 = vector.load %arg5[%c3_100, %c0_101, %c0_102] : memref<9x128x128xbf16, #tpu.memory_space<vmem>>, vector<1x128x128xbf16>
    %111 = vector.shape_cast %110 : vector<1x128x128xbf16> to vector<128x128xbf16>
    %cst_103 = arith.constant dense<0.000000e+00> : vector<256x128xf32>
    %112 = tpu.matmul %109, %111, %cst_103 {dimension_numbers = #tpu.dot_dimension_numbers<[1], [0], [0], [1], [0, 0, 1, 1], [], []>} : vector<256x128xbf16>, vector<128x128xbf16>, vector<256x128xf32> -> vector<256x128xf32>
    %113 = arith.addf %106, %112 : vector<256x128xf32>
    %c1_104 = arith.constant 1 : index
    %c1_105 = arith.constant 1 : index
    %c0_106 = arith.constant 0 : index
    %114 = vector.load %arg9[%c1_104, %c1_105, %c0_106] : memref<18x18x128xf32, #tpu.memory_space<vmem>>, vector<16x16x128xf32>
    %115 = vector.shape_cast %114 : vector<16x16x128xf32> to vector<256x128xf32>
    %116 = arith.truncf %115 : vector<256x128xf32> to vector<256x128xbf16>
    %c4_107 = arith.constant 4 : index
    %c0_108 = arith.constant 0 : index
    %c0_109 = arith.constant 0 : index
    %117 = vector.load %arg5[%c4_107, %c0_108, %c0_109] : memref<9x128x128xbf16, #tpu.memory_space<vmem>>, vector<1x128x128xbf16>
    %118 = vector.shape_cast %117 : vector<1x128x128xbf16> to vector<128x128xbf16>
    %cst_110 = arith.constant dense<0.000000e+00> : vector<256x128xf32>
    %119 = tpu.matmul %116, %118, %cst_110 {dimension_numbers = #tpu.dot_dimension_numbers<[1], [0], [0], [1], [0, 0, 1, 1], [], []>} : vector<256x128xbf16>, vector<128x128xbf16>, vector<256x128xf32> -> vector<256x128xf32>
    %120 = arith.addf %113, %119 : vector<256x128xf32>
    %c1_111 = arith.constant 1 : index
    %c2_112 = arith.constant 2 : index
    %c0_113 = arith.constant 0 : index
    %121 = vector.load %arg9[%c1_111, %c2_112, %c0_113] : memref<18x18x128xf32, #tpu.memory_space<vmem>>, vector<16x16x128xf32>
    %122 = vector.shape_cast %121 : vector<16x16x128xf32> to vector<256x128xf32>
    %123 = arith.truncf %122 : vector<256x128xf32> to vector<256x128xbf16>
    %c5_114 = arith.constant 5 : index
    %c0_115 = arith.constant 0 : index
    %c0_116 = arith.constant 0 : index
    %124 = vector.load %arg5[%c5_114, %c0_115, %c0_116] : memref<9x128x128xbf16, #tpu.memory_space<vmem>>, vector<1x128x128xbf16>
    %125 = vector.shape_cast %124 : vector<1x128x128xbf16> to vector<128x128xbf16>
    %cst_117 = arith.constant dense<0.000000e+00> : vector<256x128xf32>
    %126 = tpu.matmul %123, %125, %cst_117 {dimension_numbers = #tpu.dot_dimension_numbers<[1], [0], [0], [1], [0, 0, 1, 1], [], []>} : vector<256x128xbf16>, vector<128x128xbf16>, vector<256x128xf32> -> vector<256x128xf32>
    %127 = arith.addf %120, %126 : vector<256x128xf32>
    %c2_118 = arith.constant 2 : index
    %c0_119 = arith.constant 0 : index
    %c0_120 = arith.constant 0 : index
    %128 = vector.load %arg9[%c2_118, %c0_119, %c0_120] : memref<18x18x128xf32, #tpu.memory_space<vmem>>, vector<16x16x128xf32>
    %129 = vector.shape_cast %128 : vector<16x16x128xf32> to vector<256x128xf32>
    %130 = arith.truncf %129 : vector<256x128xf32> to vector<256x128xbf16>
    %c6_121 = arith.constant 6 : index
    %c0_122 = arith.constant 0 : index
    %c0_123 = arith.constant 0 : index
    %131 = vector.load %arg5[%c6_121, %c0_122, %c0_123] : memref<9x128x128xbf16, #tpu.memory_space<vmem>>, vector<1x128x128xbf16>
    %132 = vector.shape_cast %131 : vector<1x128x128xbf16> to vector<128x128xbf16>
    %cst_124 = arith.constant dense<0.000000e+00> : vector<256x128xf32>
    %133 = tpu.matmul %130, %132, %cst_124 {dimension_numbers = #tpu.dot_dimension_numbers<[1], [0], [0], [1], [0, 0, 1, 1], [], []>} : vector<256x128xbf16>, vector<128x128xbf16>, vector<256x128xf32> -> vector<256x128xf32>
    %134 = arith.addf %127, %133 : vector<256x128xf32>
    %c2_125 = arith.constant 2 : index
    %c1_126 = arith.constant 1 : index
    %c0_127 = arith.constant 0 : index
    %135 = vector.load %arg9[%c2_125, %c1_126, %c0_127] : memref<18x18x128xf32, #tpu.memory_space<vmem>>, vector<16x16x128xf32>
    %136 = vector.shape_cast %135 : vector<16x16x128xf32> to vector<256x128xf32>
    %137 = arith.truncf %136 : vector<256x128xf32> to vector<256x128xbf16>
    %c7_128 = arith.constant 7 : index
    %c0_129 = arith.constant 0 : index
    %c0_130 = arith.constant 0 : index
    %138 = vector.load %arg5[%c7_128, %c0_129, %c0_130] : memref<9x128x128xbf16, #tpu.memory_space<vmem>>, vector<1x128x128xbf16>
    %139 = vector.shape_cast %138 : vector<1x128x128xbf16> to vector<128x128xbf16>
    %cst_131 = arith.constant dense<0.000000e+00> : vector<256x128xf32>
    %140 = tpu.matmul %137, %139, %cst_131 {dimension_numbers = #tpu.dot_dimension_numbers<[1], [0], [0], [1], [0, 0, 1, 1], [], []>} : vector<256x128xbf16>, vector<128x128xbf16>, vector<256x128xf32> -> vector<256x128xf32>
    %141 = arith.addf %134, %140 : vector<256x128xf32>
    %c2_132 = arith.constant 2 : index
    %c2_133 = arith.constant 2 : index
    %c0_134 = arith.constant 0 : index
    %142 = vector.load %arg9[%c2_132, %c2_133, %c0_134] : memref<18x18x128xf32, #tpu.memory_space<vmem>>, vector<16x16x128xf32>
    %143 = vector.shape_cast %142 : vector<16x16x128xf32> to vector<256x128xf32>
    %144 = arith.truncf %143 : vector<256x128xf32> to vector<256x128xbf16>
    %c8_135 = arith.constant 8 : index
    %c0_136 = arith.constant 0 : index
    %c0_137 = arith.constant 0 : index
    %145 = vector.load %arg5[%c8_135, %c0_136, %c0_137] : memref<9x128x128xbf16, #tpu.memory_space<vmem>>, vector<1x128x128xbf16>
    %146 = vector.shape_cast %145 : vector<1x128x128xbf16> to vector<128x128xbf16>
    %cst_138 = arith.constant dense<0.000000e+00> : vector<256x128xf32>
    %147 = tpu.matmul %144, %146, %cst_138 {dimension_numbers = #tpu.dot_dimension_numbers<[1], [0], [0], [1], [0, 0, 1, 1], [], []>} : vector<256x128xbf16>, vector<128x128xbf16>, vector<256x128xf32> -> vector<256x128xf32>
    %148 = arith.addf %141, %147 : vector<256x128xf32>
    %c0_139 = arith.constant 0 : index
    %c1_140 = arith.constant 1 : index
    %c1_141 = arith.constant 1 : index
    %c0_142 = arith.constant 0 : index
    %149 = vector.load %arg1[%c0_139, %c1_140, %c1_141, %c0_142] : memref<1x18x18x128xf32, #tpu.memory_space<vmem>>, vector<1x16x16x128xf32>
    %150 = vector.shape_cast %149 : vector<1x16x16x128xf32> to vector<16x16x128xf32>
    %151 = vector.shape_cast %150 : vector<16x16x128xf32> to vector<256x128xf32>
    %c0_143 = arith.constant 0 : index
    %c0_144 = arith.constant 0 : index
    %152 = vector.load %arg6[%c0_143, %c0_144] : memref<1x128xf32, #tpu.memory_space<vmem>>, vector<1x128xf32>
    %153 = vector.broadcast %152 : vector<1x128xf32> to vector<256x128xf32>
    %154 = arith.mulf %148, %153 : vector<256x128xf32>
    %c0_145 = arith.constant 0 : index
    %c0_146 = arith.constant 0 : index
    %155 = vector.load %arg7[%c0_145, %c0_146] : memref<1x128xf32, #tpu.memory_space<vmem>>, vector<1x128xf32>
    %156 = vector.broadcast %155 : vector<1x128xf32> to vector<256x128xf32>
    %157 = arith.addf %154, %156 : vector<256x128xf32>
    %158 = arith.addf %157, %151 : vector<256x128xf32>
    %159 = vector.shape_cast %158 : vector<256x128xf32> to vector<16x16x128xf32>
    %c0_147 = arith.constant 0 : index
    %c0_148 = arith.constant 0 : index
    %c0_149 = arith.constant 0 : index
    %c0_150 = arith.constant 0 : index
    %160 = vector.load %arg8[%c0_147, %c0_148, %c0_149, %c0_150] : memref<1x16x16x128xf32, #tpu.memory_space<vmem>>, vector<1x16x16x128xf32>
    %161 = vector.shape_cast %160 : vector<1x16x16x128xf32> to vector<16x16x128xf32>
    %162 = vector.shape_cast %159 : vector<16x16x128xf32> to vector<1x16x16x128xf32>
    tpu.vector_store %arg8[%c0_147, %c0_148, %c0_149, %c0_150], %162 {strides = array<i32>} : memref<1x16x16x128xf32, #tpu.memory_space<vmem>>, vector<1x16x16x128xf32>,
    return
  }
  func.func @transform_0(%arg0: i32) -> (i32, i32, i32, i32) {
    %c0_i32 = arith.constant 0 : i32
    %c0_i32_0 = arith.constant 0 : i32
    %c0_i32_1 = arith.constant 0 : i32
    %c0_i32_2 = arith.constant 0 : i32
    return %arg0, %c0_i32, %c0_i32_0, %c0_i32_1 : i32, i32, i32, i32
  }
  func.func @transform_1(%arg0: i32) -> (i32, i32, i32) {
    %c0_i32 = arith.constant 0 : i32
    %c0_i32_0 = arith.constant 0 : i32
    %c0_i32_1 = arith.constant 0 : i32
    %c0_i32_2 = arith.constant 0 : i32
    return %c0_i32, %c0_i32_0, %c0_i32_1 : i32, i32, i32
  }
  func.func @transform_2(%arg0: i32) -> (i32, i32) {
    %c0_i32 = arith.constant 0 : i32
    %c0_i32_0 = arith.constant 0 : i32
    %c0_i32_1 = arith.constant 0 : i32
    return %c0_i32, %c0_i32_0 : i32, i32
  }
  func.func @transform_3(%arg0: i32) -> (i32, i32) {
    %c0_i32 = arith.constant 0 : i32
    %c0_i32_0 = arith.constant 0 : i32
    %c0_i32_1 = arith.constant 0 : i32
    return %c0_i32, %c0_i32_0 : i32, i32
  }
  func.func @transform_4(%arg0: i32) -> (i32, i32, i32) {
    %c0_i32 = arith.constant 0 : i32
    %c0_i32_0 = arith.constant 0 : i32
    %c0_i32_1 = arith.constant 0 : i32
    %c0_i32_2 = arith.constant 0 : i32
    return %c0_i32, %c0_i32_0, %c0_i32_1 : i32, i32, i32
  }
  func.func @transform_5(%arg0: i32) -> (i32, i32) {
    %c0_i32 = arith.constant 0 : i32
    %c0_i32_0 = arith.constant 0 : i32
    %c0_i32_1 = arith.constant 0 : i32
    return %c0_i32, %c0_i32_0 : i32, i32
  }
  func.func @transform_6(%arg0: i32) -> (i32, i32) {
    %c0_i32 = arith.constant 0 : i32
    %c0_i32_0 = arith.constant 0 : i32
    %c0_i32_1 = arith.constant 0 : i32
    return %c0_i32, %c0_i32_0 : i32, i32
  }
  func.func @transform_7(%arg0: i32) -> (i32, i32, i32, i32) {
    %c0_i32 = arith.constant 0 : i32
    %c0_i32_0 = arith.constant 0 : i32
    %c0_i32_1 = arith.constant 0 : i32
    %c0_i32_2 = arith.constant 0 : i32
    return %arg0, %c0_i32, %c0_i32_0, %c0_i32_1 : i32, i32, i32, i32
  }
}

</mosaic_0001>

<llo_original>
// kernel: basic_block_forward.1
$region0: #{basic_block_forward.1}
  #allocation0 [shape = 'u32[]', space=smem, size = 0x4, offset = 0x4, fixed_abs, tag = 'smem constant byte address 0x4 - core index']
  #allocation1 [shape = 'u32[72,128]{1,0:T(1,128)}', space=vmem, size = 0x9000, scoped, tag = 'internal scratch']
  #allocation2 [shape = 'f32[18,18,128]{2,1,0:T(8,128)}', space=vmem, size = 0x36000, scoped, tag = 'scratch operand']
  %s0 = inlined_call_operand.vmem [shape: f32[2,18,18,128], index: 0, kind: input, shape index: {}]
  %s1 = inlined_call_operand.vmem [shape: bf16[9,128,128], index: 1, kind: input, shape index: {}]
  %s2 = inlined_call_operand.vmem [shape: f32[1,128], index: 2, kind: input, shape index: {}]
  %s3 = inlined_call_operand.vmem [shape: f32[1,128], index: 3, kind: input, shape index: {}]
  %s4 = inlined_call_operand.vmem [shape: bf16[9,128,128], index: 4, kind: input, shape index: {}]
  %s5 = inlined_call_operand.vmem [shape: f32[1,128], index: 5, kind: input, shape index: {}]
  %s6 = inlined_call_operand.vmem [shape: f32[1,128], index: 6, kind: input, shape index: {}]
  %s7 = inlined_call_operand.vmem [shape: f32[2,16,16,128], index: 7, kind: output, shape index: {}]
  %s8 = sld [smem:[#allocation0]]
  $region61: #{basic_block_forward.1} parent=0
    _
  %s10 = ssub.s32 1, %s8
  %s11 = scalar_select 0, %s10, %s8
  loop: start=0, step=1, limit=4
  $region2: #{basic_block_forward.1} parent=0 // loop_pre_header
    _
  $region3: #{basic_block_forward.1} parent=0 // loop_header
    %s13 = sphi 0, %s17
    %p14 = scmp.ge.s32.totalorder %s13, 4
    %s23 = sphi 0, %s25
    %s26 = sphi 0, %s23
    %s27 = sphi 0, %s26
    %s43 = sphi 0, %s27
    %s47 = sphi 0, %s47
    %s49 = sphi 0, %s47
    %s50 = sphi 0, %s49
    %s64 = sphi 0, %s50
    %s68 = sphi 0, %s68
    %s70 = sphi 0, %s68
    %s71 = sphi 0, %s70
    %s85 = sphi 0, %s71
    %s89 = sphi 0, %s89
    %s91 = sphi 0, %s89
    %s92 = sphi 0, %s91
    %s106 = sphi 0, %s92
    %s110 = sphi 0, %s110
    %s112 = sphi 0, %s110
    %s113 = sphi 0, %s112
    %s127 = sphi 0, %s113
    %s131 = sphi 0, %s131
    %s133 = sphi 0, %s131
    %s134 = sphi 0, %s133
    %s148 = sphi 0, %s134
    %s152 = sphi 0, %s152
    %s154 = sphi 0, %s152
    %s155 = sphi 0, %s154
    %s169 = sphi 0, %s155
    %s175 = sphi 0, %s177
    %s178 = sphi 0, %s175
    %s179 = sphi 0, %s178
    %s195 = sphi 0, %s179
  $region4: #{basic_block_forward.1} parent=0 // loop_header_branch
    %16 = sbr.rel (%p14) target = $region8
  $region5: #{basic_block_forward.1} parent=0 // loop_body
    %s18 = ssub.s32 %s13, 1
    %s19 = ssub.s32 %s13, 2
    %s20 = sadd.s32 %s13, 1
    %s21 = ssub.s32 %s13, %s20
    %p22 = scmp.eq.s32.totalorder %s21, 0
    %s24 = sadd.s32 %s23, 1
    %s25 = scalar_select %p22, %s23, %s24
    %p28 = pneg %p22
    %p29 = scmp.eq.s32.totalorder %s13, 1
    %p30 = por %p28, %p29
    %p31 = scmp.ne.s32.totalorder %s23, %s26
    %p32 = scmp.eq.s32.totalorder %s13, 0
    %p33 = por %p31, %p32
    %p34 = scmp.ne.s32.totalorder %s23, %s26
    %p35 = scmp.eq.s32.totalorder %s18, 1
    %p36 = por %p34, %p35
    %p37 = scmp.ne.s32.totalorder %s26, %s27
    %p38 = scmp.eq.s32.totalorder %s18, 0
    %p39 = por %p37, %p38
    %p40 = scmp.ne.s32.totalorder %s26, %s27
    %p41 = scmp.eq.s32.totalorder %s19, 1
    %p42 = por %p40, %p41
    %p44 = scmp.ne.s32.totalorder %s27, %s43
    %p45 = scmp.eq.s32.totalorder %s19, 0
    %p46 = por %p44, %p45
    %s48 = sadd.s32 %s47, 1
    %p51 = scmp.eq.s32.totalorder %s13, 1
    %p52 = scmp.ne.s32.totalorder %s47, %s49
    %p53 = scmp.eq.s32.totalorder %s13, 0
    %p54 = por %p52, %p53
    %p55 = scmp.ne.s32.totalorder %s47, %s49
    %p56 = scmp.eq.s32.totalorder %s18, 1
    %p57 = por %p55, %p56
    %p58 = scmp.ne.s32.totalorder %s49, %s50
    %p59 = scmp.eq.s32.totalorder %s18, 0
    %p60 = por %p58, %p59
    %p61 = scmp.ne.s32.totalorder %s49, %s50
    %p62 = scmp.eq.s32.totalorder %s19, 1
    %p63 = por %p61, %p62
    %p65 = scmp.ne.s32.totalorder %s50, %s64
    %p66 = scmp.eq.s32.totalorder %s19, 0
    %p67 = por %p65, %p66
    %s69 = sadd.s32 %s68, 1
    %p72 = scmp.eq.s32.totalorder %s13, 1
    %p73 = scmp.ne.s32.totalorder %s68, %s70
    %p74 = scmp.eq.s32.totalorder %s13, 0
    %p75 = por %p73, %p74
    %p76 = scmp.ne.s32.totalorder %s68, %s70
    %p77 = scmp.eq.s32.totalorder %s18, 1
    %p78 = por %p76, %p77
    %p79 = scmp.ne.s32.totalorder %s70, %s71
    %p80 = scmp.eq.s32.totalorder %s18, 0
    %p81 = por %p79, %p80
    %p82 = scmp.ne.s32.totalorder %s70, %s71
    %p83 = scmp.eq.s32.totalorder %s19, 1
    %p84 = por %p82, %p83
    %p86 = scmp.ne.s32.totalorder %s71, %s85
    %p87 = scmp.eq.s32.totalorder %s19, 0
    %p88 = por %p86, %p87
    %s90 = sadd.s32 %s89, 1
    %p93 = scmp.eq.s32.totalorder %s13, 1
    %p94 = scmp.ne.s32.totalorder %s89, %s91
    %p95 = scmp.eq.s32.totalorder %s13, 0
    %p96 = por %p94, %p95
    %p97 = scmp.ne.s32.totalorder %s89, %s91
    %p98 = scmp.eq.s32.totalorder %s18, 1
    %p99 = por %p97, %p98
    %p100 = scmp.ne.s32.totalorder %s91, %s92
    %p101 = scmp.eq.s32.totalorder %s18, 0
    %p102 = por %p100, %p101
    %p103 = scmp.ne.s32.totalorder %s91, %s92
    %p104 = scmp.eq.s32.totalorder %s19, 1
    %p105 = por %p103, %p104
    %p107 = scmp.ne.s32.totalorder %s92, %s106
    %p108 = scmp.eq.s32.totalorder %s19, 0
    %p109 = por %p107, %p108
    %s111 = sadd.s32 %s110, 1
    %p114 = scmp.eq.s32.totalorder %s13, 1
    %p115 = scmp.ne.s32.totalorder %s110, %s112
    %p116 = scmp.eq.s32.totalorder %s13, 0
    %p117 = por %p115, %p116
    %p118 = scmp.ne.s32.totalorder %s110, %s112
    %p119 = scmp.eq.s32.totalorder %s18, 1
    %p120 = por %p118, %p119
    %p121 = scmp.ne.s32.totalorder %s112, %s113
    %p122 = scmp.eq.s32.totalorder %s18, 0
    %p123 = por %p121, %p122
    %p124 = scmp.ne.s32.totalorder %s112, %s113
    %p125 = scmp.eq.s32.totalorder %s19, 1
    %p126 = por %p124, %p125
    %p128 = scmp.ne.s32.totalorder %s113, %s127
    %p129 = scmp.eq.s32.totalorder %s19, 0
    %p130 = por %p128, %p129
    %s132 = sadd.s32 %s131, 1
    %p135 = scmp.eq.s32.totalorder %s13, 1
    %p136 = scmp.ne.s32.totalorder %s131, %s133
    %p137 = scmp.eq.s32.totalorder %s13, 0
    %p138 = por %p136, %p137
    %p139 = scmp.ne.s32.totalorder %s131, %s133
    %p140 = scmp.eq.s32.totalorder %s18, 1
    %p141 = por %p139, %p140
    %p142 = scmp.ne.s32.totalorder %s133, %s134
    %p143 = scmp.eq.s32.totalorder %s18, 0
    %p144 = por %p142, %p143
    %p145 = scmp.ne.s32.totalorder %s133, %s134
    %p146 = scmp.eq.s32.totalorder %s19, 1
    %p147 = por %p145, %p146
    %p149 = scmp.ne.s32.totalorder %s134, %s148
    %p150 = scmp.eq.s32.totalorder %s19, 0
    %p151 = por %p149, %p150
    %s153 = sadd.s32 %s152, 1
    %p156 = scmp.eq.s32.totalorder %s13, 1
    %p157 = scmp.ne.s32.totalorder %s152, %s154
    %p158 = scmp.eq.s32.totalorder %s13, 0
    %p159 = por %p157, %p158
    %p160 = scmp.ne.s32.totalorder %s152, %s154
    %p161 = scmp.eq.s32.totalorder %s18, 1
    %p162 = por %p160, %p161
    %p163 = scmp.ne.s32.totalorder %s154, %s155
    %p164 = scmp.eq.s32.totalorder %s18, 0
    %p165 = por %p163, %p164
    %p166 = scmp.ne.s32.totalorder %s154, %s155
    %p167 = scmp.eq.s32.totalorder %s19, 1
    %p168 = por %p166, %p167
    %p170 = scmp.ne.s32.totalorder %s155, %s169
    %p171 = scmp.eq.s32.totalorder %s19, 0
    %p172 = por %p170, %p171
    %s173 = ssub.s32 %s13, %s20
    %p174 = scmp.eq.s32.totalorder %s173, 0
    %s176 = sadd.s32 %s175, 1
    %s177 = scalar_select %p174, %s175, %s176
    %p180 = pneg %p174
    %p181 = scmp.eq.s32.totalorder %s13, 1
    %p182 = por %p180, %p181
    %p183 = scmp.ne.s32.totalorder %s175, %s178
    %p184 = scmp.eq.s32.totalorder %s13, 0
    %p185 = por %p183, %p184
    %p186 = scmp.ne.s32.totalorder %s175, %s178
    %p187 = scmp.eq.s32.totalorder %s18, 1
    %p188 = por %p186, %p187
    %p189 = scmp.ne.s32.totalorder %s178, %s179
    %p190 = scmp.eq.s32.totalorder %s18, 0
    %p191 = por %p189, %p190
    %p192 = scmp.ne.s32.totalorder %s178, %s179
    %p193 = scmp.eq.s32.totalorder %s19, 1
    %p194 = por %p192, %p193
    %p196 = scmp.ne.s32.totalorder %s179, %s195
    %p197 = scmp.eq.s32.totalorder %s19, 0
    %p198 = por %p196, %p197
    %p199 = scmp.le.s32.totalorder 1, %s13
    %p200 = scmp.lt.s32.totalorder %s13, 3
    %p201 = pnand %p199, %p200
    %p202 = pneg %p201
    // Predicated region
    $region9: #{basic_block_forward.1} parent=5 // pred_check
      _
    $region10: #{basic_block_forward.1} parent=5 // pred_check_branch
      %204 = sbr.rel (%p201) target = $region12
    $region11: #{basic_block_forward.1} parent=5 // pred_region
      %s205 = ssub.s32 %s13, 1
      // Predicated region
      $region13: #{basic_block_forward.1} parent=11 // pred_check
        %p206 = pneg %p60
      $region14: #{basic_block_forward.1} parent=11 // pred_check_branch
        %208 = sbr.rel (%p206) target = $region16
      $region15: #{basic_block_forward.1} parent=11 // pred_region
        _
      $region16: #{basic_block_forward.1} parent=11 // pred_fallthru
        _
      // Predicated region
      $region17: #{basic_block_forward.1} parent=11 // pred_check
        %p209 = pneg %p81
      $region18: #{basic_block_forward.1} parent=11 // pred_check_branch
        %211 = sbr.rel (%p209) target = $region20
      $region19: #{basic_block_forward.1} parent=11 // pred_region
        _
      $region20: #{basic_block_forward.1} parent=11 // pred_fallthru
        _
      // Predicated region
      $region21: #{basic_block_forward.1} parent=11 // pred_check
        %p212 = pneg %p102
      $region22: #{basic_block_forward.1} parent=11 // pred_check_branch
        %214 = sbr.rel (%p212) target = $region24
      $region23: #{basic_block_forward.1} parent=11 // pred_region
        _
      $region24: #{basic_block_forward.1} parent=11 // pred_fallthru
        _
      // Predicated region
      $region25: #{basic_block_forward.1} parent=11 // pred_check
        %p215 = pneg %p123
      $region26: #{basic_block_forward.1} parent=11 // pred_check_branch
        %217 = sbr.rel (%p215) target = $region28
      $region27: #{basic_block_forward.1} parent=11 // pred_region
        _
      $region28: #{basic_block_forward.1} parent=11 // pred_fallthru
        _
      // Predicated region
      $region29: #{basic_block_forward.1} parent=11 // pred_check
        %p218 = pneg %p144
      $region30: #{basic_block_forward.1} parent=11 // pred_check_branch
        %220 = sbr.rel (%p218) target = $region32
      $region31: #{basic_block_forward.1} parent=11 // pred_region
        _
      $region32: #{basic_block_forward.1} parent=11 // pred_fallthru
        _
      // Predicated region
      $region33: #{basic_block_forward.1} parent=11 // pred_check
        %p221 = pneg %p165
      $region34: #{basic_block_forward.1} parent=11 // pred_check_branch
        %223 = sbr.rel (%p221) target = $region36
      $region35: #{basic_block_forward.1} parent=11 // pred_region
        _
      $region36: #{basic_block_forward.1} parent=11 // pred_fallthru
        _
    $region12: #{basic_block_forward.1} parent=5 // pred_fallthru
      _
    %p224 = scmp.lt.s32.totalorder %s13, 2
    // Predicated region
    $region37: #{basic_block_forward.1} parent=5 // pred_check
      %p225 = pneg %p224
    $region38: #{basic_block_forward.1} parent=5 // pred_check_branch
      %227 = sbr.rel (%p225) target = $region40
    $region39: #{basic_block_forward.1} parent=5 // pred_region
      // Predicated region
      $region41: #{basic_block_forward.1} parent=39 // pred_check
        %p228 = pneg %p33
      $region42: #{basic_block_forward.1} parent=39 // pred_check_branch
        %230 = sbr.rel (%p228) target = $region44
      $region43: #{basic_block_forward.1} parent=39 // pred_region
        %p231 = scmp.lt.s32.totalorder %s13, 1
        %s232 = scalar_select %p231, %s13, 1
        %s233 = smul.addr %s232, 54
        %s234 = smul.addr %s233, 8
        %s235 = scalar_lea.vmem %s0, %s234
      $region44: #{basic_block_forward.1} parent=39 // pred_fallthru
        _
    $region40: #{basic_block_forward.1} parent=5 // pred_fallthru
      _
    %p236 = scmp.le.s32.totalorder 1, %s13
    %p237 = scmp.lt.s32.totalorder %s13, 3
    %p238 = pnand %p236, %p237
    %p239 = pneg %p238
    // Predicated region
    $region45: #{basic_block_forward.1} parent=5 // pred_check
      _
    $region46: #{basic_block_forward.1} parent=5 // pred_check_branch
      %241 = sbr.rel (%p238) target = $region48
    $region47: #{basic_block_forward.1} parent=5 // pred_region
      %s242 = ssub.s32 %s13, 1
      %p243 = scmp.lt.s32.totalorder %s18, 1
      %s244 = scalar_select %p243, %s18, 1
      %s245 = smul.addr %s244, 54
      %s246 = smul.addr %s245, 8
      %s247 = scalar_lea.vmem %s0, %s246
      %p248 = pneg %p39
      %p249 = pneg %p36
      %p250 = pneg %p60
      %p251 = pneg %p57
      %p252 = pneg %p81
      %p253 = pneg %p78
      %p254 = pneg %p102
      %p255 = pneg %p99
      %p256 = pneg %p123
      %p257 = pneg %p120
      %p258 = pneg %p144
      %p259 = pneg %p141
      %p260 = pneg %p165
      %p261 = pneg %p162
      %p262 = pneg %p191
      %p263 = pneg %p188
      %p264 = scmp.lt.s32.totalorder %s18, 1
      %s265 = scalar_select %p264, %s18, 1
      %s266 = smul.addr %s265, 32
      %s267 = smul.addr %s266, 8
      %s268 = scalar_lea.vmem %s7, %s267
      %p269 = scmp.lt.s32.totalorder %s18, 1
      %s270 = scalar_select %p269, %s18, 1
      %s271 = smul.addr %s270, 54
      %s272 = smul.addr %s271, 8
      %s273 = scalar_lea.vmem %s0, %s272
      %p274 = scmp.lt.s32.totalorder %s18, 1
      %s275 = scalar_select %p274, %s18, 1
      %s276 = smul.addr %s275, 32
      %s277 = smul.addr %s276, 8
      %s278 = scalar_lea.vmem %s7, %s277
      %v279 = vld [vmem:[%s273] sm:$0xff]
      %v280 = vld [vmem:[%s273 + $0x8] sm:$0xff]
      %v281 = vld [vmem:[%s273 + $0x18] sm:$0xff]
      %v282 = vld [vmem:[%s273 + $0x20] sm:$0xff]
      %v283 = vld [vmem:[%s273 + $0x30] sm:$0xff]
      %v284 = vld [vmem:[%s273 + $0x38] sm:$0xff]
      %v285 = vld [vmem:[%s273 + $0x48] sm:$0xff]
      %v286 = vld [vmem:[%s273 + $0x50] sm:$0xff]
      %v287 = vld [vmem:[%s273 + $0x60] sm:$0xff]
      %v288 = vld [vmem:[%s273 + $0x68] sm:$0xff]
      %v289 = vld [vmem:[%s273 + $0x78] sm:$0xff]
      %v290 = vld [vmem:[%s273 + $0x80] sm:$0xff]
      %v291 = vld [vmem:[%s273 + $0x90] sm:$0xff]
      %v292 = vld [vmem:[%s273 + $0x98] sm:$0xff]
      %v293 = vld [vmem:[%s273 + $0xa8] sm:$0xff]
      %v294 = vld [vmem:[%s273 + $0xb0] sm:$0xff]
      %v295 = vld [vmem:[%s273 + $0xc0] sm:$0xff]
      %v296 = vld [vmem:[%s273 + $0xc8] sm:$0xff]
      %v297 = vld [vmem:[%s273 + $0xd8] sm:$0xff]
      %v298 = vld [vmem:[%s273 + $0xe0] sm:$0xff]
      %v299 = vld [vmem:[%s273 + $0xf0] sm:$0xff]
      %v300 = vld [vmem:[%s273 + $0xf8] sm:$0xff]
      %v301 = vld [vmem:[%s273 + $0x108] sm:$0xff]
      %v302 = vld [vmem:[%s273 + $0x110] sm:$0xff]
      %v303 = vld [vmem:[%s273 + $0x120] sm:$0xff]
      %v304 = vld [vmem:[%s273 + $0x128] sm:$0xff]
      %v305 = vld [vmem:[%s273 + $0x138] sm:$0xff]
      %v306 = vld [vmem:[%s273 + $0x140] sm:$0xff]
      %v307 = vld [vmem:[%s273 + $0x150] sm:$0xff]
      %v308 = vld [vmem:[%s273 + $0x158] sm:$0xff]
      %v309 = vld [vmem:[%s273 + $0x168] sm:$0xff]
      %v310 = vld [vmem:[%s273 + $0x170] sm:$0xff]
      %v311 = vpack.c.bf16 %v280, %v279
      %v312 = vpack.c.bf16 %v282, %v281
      %v313 = vpack.c.bf16 %v284, %v283
      %v314 = vpack.c.bf16 %v286, %v285
      %v315 = vpack.c.bf16 %v288, %v287
      %v316 = vpack.c.bf16 %v290, %v289
      %v317 = vpack.c.bf16 %v292, %v291
      %v318 = vpack.c.bf16 %v294, %v293
      %v319 = vpack.c.bf16 %v296, %v295
      %v320 = vpack.c.bf16 %v298, %v297
      %v321 = vpack.c.bf16 %v300, %v299
      %v322 = vpack.c.bf16 %v302, %v301
      %v323 = vpack.c.bf16 %v304, %v303
      %v324 = vpack.c.bf16 %v306, %v305
      %v325 = vpack.c.bf16 %v308, %v307
      %v326 = vpack.c.bf16 %v310, %v309
      %v327 = vld [vmem:[%s1] sm:$0xf]
      %v328 = vld [vmem:[%s1 + $0x4] sm:$0xf]
      %v329 = vld [vmem:[%s1 + $0x8] sm:$0xf]
      %v330 = vld [vmem:[%s1 + $0xc] sm:$0xf]
      %v331 = vld [vmem:[%s1 + $0x10] sm:$0xf]
      %v332 = vld [vmem:[%s1 + $0x14] sm:$0xf]
      %v333 = vld [vmem:[%s1 + $0x18] sm:$0xf]
      %v334 = vld [vmem:[%s1 + $0x1c] sm:$0xf]
      %v335 = vld [vmem:[%s1 + $0x20] sm:$0xf]
      %v336 = vld [vmem:[%s1 + $0x24] sm:$0xf]
      %v337 = vld [vmem:[%s1 + $0x28] sm:$0xf]
      %v338 = vld [vmem:[%s1 + $0x2c] sm:$0xf]
      %v339 = vld [vmem:[%s1 + $0x30] sm:$0xf]
      %v340 = vld [vmem:[%s1 + $0x34] sm:$0xf]
      %v341 = vld [vmem:[%s1 + $0x38] sm:$0xf]
      %v342 = vld [vmem:[%s1 + $0x3c] sm:$0xf]
      %v343 = vld [vmem:[%s273 + $0x1] sm:$0xff]
      %v344 = vld [vmem:[%s273 + $0x9] sm:$0xff]
      %v345 = vld [vmem:[%s273 + $0x19] sm:$0xff]
      %v346 = vld [vmem:[%s273 + $0x21] sm:$0xff]
      %v347 = vld [vmem:[%s273 + $0x31] sm:$0xff]
      %v348 = vld [vmem:[%s273 + $0x39] sm:$0xff]
      %v349 = vld [vmem:[%s273 + $0x49] sm:$0xff]
      %v350 = vld [vmem:[%s273 + $0x51] sm:$0xff]
      %v351 = vld [vmem:[%s273 + $0x61] sm:$0xff]
      %v352 = vld [vmem:[%s273 + $0x69] sm:$0xff]
      %v353 = vld [vmem:[%s273 + $0x79] sm:$0xff]
      %v354 = vld [vmem:[%s273 + $0x81] sm:$0xff]
      %v355 = vld [vmem:[%s273 + $0x91] sm:$0xff]
      %v356 = vld [vmem:[%s273 + $0x99] sm:$0xff]
      %v357 = vld [vmem:[%s273 + $0xa9] sm:$0xff]
      %v358 = vld [vmem:[%s273 + $0xb1] sm:$0xff]
      %v359 = vld [vmem:[%s273 + $0xc1] sm:$0xff]
      %v360 = vld [vmem:[%s273 + $0xc9] sm:$0xff]
      %v361 = vld [vmem:[%s273 + $0xd9] sm:$0xff]
      %v362 = vld [vmem:[%s273 + $0xe1] sm:$0xff]
      %v363 = vld [vmem:[%s273 + $0xf1] sm:$0xff]
      %v364 = vld [vmem:[%s273 + $0xf9] sm:$0xff]
      %v365 = vld [vmem:[%s273 + $0x109] sm:$0xff]
      %v366 = vld [vmem:[%s273 + $0x111] sm:$0xff]
      %v367 = vld [vmem:[%s273 + $0x121] sm:$0xff]
      %v368 = vld [vmem:[%s273 + $0x129] sm:$0xff]
      %v369 = vld [vmem:[%s273 + $0x139] sm:$0xff]
      %v370 = vld [vmem:[%s273 + $0x141] sm:$0xff]
      %v371 = vld [vmem:[%s273 + $0x151] sm:$0xff]
      %v372 = vld [vmem:[%s273 + $0x159] sm:$0xff]
      %v373 = vld [vmem:[%s273 + $0x169] sm:$0xff]
      %v374 = vld [vmem:[%s273 + $0x171] sm:$0xff]
      %v375 = vpack.c.bf16 %v344, %v343
      %v376 = vpack.c.bf16 %v346, %v345
      %v377 = vpack.c.bf16 %v348, %v347
      %v378 = vpack.c.bf16 %v350, %v349
      %v379 = vpack.c.bf16 %v352, %v351
      %v380 = vpack.c.bf16 %v354, %v353
      %v381 = vpack.c.bf16 %v356, %v355
      %v382 = vpack.c.bf16 %v358, %v357
      %v383 = vpack.c.bf16 %v360, %v359
      %v384 = vpack.c.bf16 %v362, %v361
      %v385 = vpack.c.bf16 %v364, %v363
      %v386 = vpack.c.bf16 %v366, %v365
      %v387 = vpack.c.bf16 %v368, %v367
      %v388 = vpack.c.bf16 %v370, %v369
      %v389 = vpack.c.bf16 %v372, %v371
      %v390 = vpack.c.bf16 %v374, %v373
      %s391 = scalar_lea.vmem %s1, 64
      %v392 = vld [vmem:[%s391] sm:$0xf]
      %v393 = vld [vmem:[%s391 + $0x4] sm:$0xf]
      %v394 = vld [vmem:[%s391 + $0x8] sm:$0xf]
      %v395 = vld [vmem:[%s391 + $0xc] sm:$0xf]
      %v396 = vld [vmem:[%s391 + $0x10] sm:$0xf]
      %v397 = vld [vmem:[%s391 + $0x14] sm:$0xf]
      %v398 = vld [vmem:[%s391 + $0x18] sm:$0xf]
      %v399 = vld [vmem:[%s391 + $0x1c] sm:$0xf]
      %v400 = vld [vmem:[%s391 + $0x20] sm:$0xf]
      %v401 = vld [vmem:[%s391 + $0x24] sm:$0xf]
      %v402 = vld [vmem:[%s391 + $0x28] sm:$0xf]
      %v403 = vld [vmem:[%s391 + $0x2c] sm:$0xf]
      %v404 = vld [vmem:[%s391 + $0x30] sm:$0xf]
      %v405 = vld [vmem:[%s391 + $0x34] sm:$0xf]
      %v406 = vld [vmem:[%s391 + $0x38] sm:$0xf]
      %v407 = vld [vmem:[%s391 + $0x3c] sm:$0xf]
      %v424 = vunpack.c.l.b16 %v392
      %v425 = vunpack.c.l.b16 %v393
      %v426 = vunpack.c.l.b16 %v394
      %v427 = vunpack.c.l.b16 %v395
      %v428 = vunpack.c.l.b16 %v396
      %v429 = vunpack.c.l.b16 %v397
      %v430 = vunpack.c.l.b16 %v398
      %v431 = vunpack.c.l.b16 %v399
      %v432 = vunpack.c.l.b16 %v400
      %v433 = vunpack.c.l.b16 %v401
      %v434 = vunpack.c.l.b16 %v402
      %v435 = vunpack.c.l.b16 %v403
      %v436 = vunpack.c.l.b16 %v404
      %v437 = vunpack.c.l.b16 %v405
      %v438 = vunpack.c.l.b16 %v406
      %v439 = vunpack.c.l.b16 %v407
      %v440 = vpack.c.b16 %v425, %v424
      %v441 = vpack.c.b16 %v427, %v426
      %v442 = vpack.c.b16 %v429, %v428
      %v443 = vpack.c.b16 %v431, %v430
      %v444 = vpack.c.b16 %v433, %v432
      %v445 = vpack.c.b16 %v435, %v434
      %v446 = vpack.c.b16 %v437, %v436
      %v447 = vpack.c.b16 %v439, %v438
      %456 = vmatpush.bf16.msra.mxu0 %v447
      %457 = vmatpush.bf16.msra.mxu0 %v446
      %458 = vmatpush.bf16.msra.mxu0 %v445
      %459 = vmatpush.bf16.msra.mxu0 %v444
      %460 = vmatpush.bf16.msra.mxu0 %v443
      %461 = vmatpush.bf16.msra.mxu0 %v442
      %462 = vmatpush.bf16.msra.mxu0 %v441
      %463 = vmatpush.bf16.msra.mxu0 %v440
      %464 = vmatmul.bf16.gmra.mxu0 %v375
      %v465 = vpop.f32.mrf.mxu0
      %v466 = vadd.f32 0.0, %v465
      %v467 = vpop.f32.mrf.mxu0
      %v468 = vadd.f32 0.0, %v467
      %469 = vmatmul.bf16.gmra.mxu0 %v376
      %v470 = vpop.f32.mrf.mxu0
      %v471 = vadd.f32 0.0, %v470
      %v472 = vpop.f32.mrf.mxu0
      %v473 = vadd.f32 0.0, %v472
      %474 = vmatmul.bf16.gmra.mxu0 %v377
      %v475 = vpop.f32.mrf.mxu0
      %v476 = vadd.f32 0.0, %v475
      %v477 = vpop.f32.mrf.mxu0
      %v478 = vadd.f32 0.0, %v477
      %479 = vmatmul.bf16.gmra.mxu0 %v378
      %v480 = vpop.f32.mrf.mxu0
      %v481 = vadd.f32 0.0, %v480
      %v482 = vpop.f32.mrf.mxu0
      %v483 = vadd.f32 0.0, %v482
      %484 = vmatmul.bf16.gmra.mxu0 %v379
      %v485 = vpop.f32.mrf.mxu0
      %v486 = vadd.f32 0.0, %v485
      %v487 = vpop.f32.mrf.mxu0
      %v488 = vadd.f32 0.0, %v487
      %489 = vmatmul.bf16.gmra.mxu0 %v380
      %v490 = vpop.f32.mrf.mxu0
      %v491 = vadd.f32 0.0, %v490
      %v492 = vpop.f32.mrf.mxu0
      %v493 = vadd.f32 0.0, %v492
      %494 = vmatmul.bf16.gmra.mxu0 %v381
      %v495 = vpop.f32.mrf.mxu0
      %v496 = vadd.f32 0.0, %v495
      %v497 = vpop.f32.mrf.mxu0
      %v498 = vadd.f32 0.0, %v497
      %499 = vmatmul.bf16.gmra.mxu0 %v382
      %v500 = vpop.f32.mrf.mxu0
      %v501 = vadd.f32 0.0, %v500
      %v502 = vpop.f32.mrf.mxu0
      %v503 = vadd.f32 0.0, %v502
      %504 = vmatmul.bf16.gmra.mxu0 %v383
      %v505 = vpop.f32.mrf.mxu0
      %v506 = vadd.f32 0.0, %v505
      %v507 = vpop.f32.mrf.mxu0
      %v508 = vadd.f32 0.0, %v507
      %509 = vmatmul.bf16.gmra.mxu0 %v384
      %v510 = vpop.f32.mrf.mxu0
      %v511 = vadd.f32 0.0, %v510
      %v512 = vpop.f32.mrf.mxu0
      %v513 = vadd.f32 0.0, %v512
      %514 = vmatmul.bf16.gmra.mxu0 %v385
      %v515 = vpop.f32.mrf.mxu0
      %v516 = vadd.f32 0.0, %v515
      %v517 = vpop.f32.mrf.mxu0
      %v518 = vadd.f32 0.0, %v517
      %519 = vmatmul.bf16.gmra.mxu0 %v386
      %v520 = vpop.f32.mrf.mxu0
      %v521 = vadd.f32 0.0, %v520
      %v522 = vpop.f32.mrf.mxu0
      %v523 = vadd.f32 0.0, %v522
      %524 = vmatmul.bf16.gmra.mxu0 %v387
      %v525 = vpop.f32.mrf.mxu0
      %v526 = vadd.f32 0.0, %v525
      %v527 = vpop.f32.mrf.mxu0
      %v528 = vadd.f32 0.0, %v527
      %529 = vmatmul.bf16.gmra.mxu0 %v388
      %v530 = vpop.f32.mrf.mxu0
      %v531 = vadd.f32 0.0, %v530
      %v532 = vpop.f32.mrf.mxu0
      %v533 = vadd.f32 0.0, %v532
      %534 = vmatmul.bf16.gmra.mxu0 %v389
      %v535 = vpop.f32.mrf.mxu0
      %v536 = vadd.f32 0.0, %v535
      %v537 = vpop.f32.mrf.mxu0
      %v538 = vadd.f32 0.0, %v537
      %539 = vmatmul.bf16.gmra.mxu0 %v390
      %v540 = vpop.f32.mrf.mxu0
      %v541 = vadd.f32 0.0, %v540
      %v542 = vpop.f32.mrf.mxu0
      %v543 = vadd.f32 0.0, %v542
      %544 = vdwg.mxu0
      %v561 = vunpack.c.l.b16 %v327
      %v562 = vunpack.c.l.b16 %v328
      %v563 = vunpack.c.l.b16 %v329
      %v564 = vunpack.c.l.b16 %v330
      %v565 = vunpack.c.l.b16 %v331
      %v566 = vunpack.c.l.b16 %v332
      %v567 = vunpack.c.l.b16 %v333
      %v568 = vunpack.c.l.b16 %v334
      %v569 = vunpack.c.l.b16 %v335
      %v570 = vunpack.c.l.b16 %v336
      %v571 = vunpack.c.l.b16 %v337
      %v572 = vunpack.c.l.b16 %v338
      %v573 = vunpack.c.l.b16 %v339
      %v574 = vunpack.c.l.b16 %v340
      %v575 = vunpack.c.l.b16 %v341
      %v576 = vunpack.c.l.b16 %v342
      %v577 = vpack.c.b16 %v562, %v561
      %v578 = vpack.c.b16 %v564, %v563
      %v579 = vpack.c.b16 %v566, %v565
      %v580 = vpack.c.b16 %v568, %v567
      %v581 = vpack.c.b16 %v570, %v569
      %v582 = vpack.c.b16 %v572, %v571
      %v583 = vpack.c.b16 %v574, %v573
      %v584 = vpack.c.b16 %v576, %v575
      %593 = vmatpush.bf16.msra.mxu0 %v584
      %594 = vmatpush.bf16.msra.mxu0 %v583
      %595 = vmatpush.bf16.msra.mxu0 %v582
      %596 = vmatpush.bf16.msra.mxu0 %v581
      %597 = vmatpush.bf16.msra.mxu0 %v580
      %598 = vmatpush.bf16.msra.mxu0 %v579
      %599 = vmatpush.bf16.msra.mxu0 %v578
      %600 = vmatpush.bf16.msra.mxu0 %v577
      %601 = vmatmul.bf16.gmra.mxu0 %v311
      %v602 = vpop.f32.mrf.mxu0
      %v603 = vadd.f32 %v466, %v602
      %v604 = vpop.f32.mrf.mxu0
      %v605 = vadd.f32 %v468, %v604
      %606 = vmatmul.bf16.gmra.mxu0 %v312
      %v607 = vpop.f32.mrf.mxu0
      %v608 = vadd.f32 %v471, %v607
      %v609 = vpop.f32.mrf.mxu0
      %v610 = vadd.f32 %v473, %v609
      %611 = vmatmul.bf16.gmra.mxu0 %v313
      %v612 = vpop.f32.mrf.mxu0
      %v613 = vadd.f32 %v476, %v612
      %v614 = vpop.f32.mrf.mxu0
      %v615 = vadd.f32 %v478, %v614
      %616 = vmatmul.bf16.gmra.mxu0 %v314
      %v617 = vpop.f32.mrf.mxu0
      %v618 = vadd.f32 %v481, %v617
      %v619 = vpop.f32.mrf.mxu0
      %v620 = vadd.f32 %v483, %v619
      %621 = vmatmul.bf16.gmra.mxu0 %v315
      %v622 = vpop.f32.mrf.mxu0
      %v623 = vadd.f32 %v486, %v622
      %v624 = vpop.f32.mrf.mxu0
      %v625 = vadd.f32 %v488, %v624
      %626 = vmatmul.bf16.gmra.mxu0 %v316
      %v627 = vpop.f32.mrf.mxu0
      %v628 = vadd.f32 %v491, %v627
      %v629 = vpop.f32.mrf.mxu0
      %v630 = vadd.f32 %v493, %v629
      %631 = vmatmul.bf16.gmra.mxu0 %v317
      %v632 = vpop.f32.mrf.mxu0
      %v633 = vadd.f32 %v496, %v632
      %v634 = vpop.f32.mrf.mxu0
      %v635 = vadd.f32 %v498, %v634
      %636 = vmatmul.bf16.gmra.mxu0 %v318
      %v637 = vpop.f32.mrf.mxu0
      %v638 = vadd.f32 %v501, %v637
      %v639 = vpop.f32.mrf.mxu0
      %v640 = vadd.f32 %v503, %v639
      %641 = vmatmul.bf16.gmra.mxu0 %v319
      %v642 = vpop.f32.mrf.mxu0
      %v643 = vadd.f32 %v506, %v642
      %v644 = vpop.f32.mrf.mxu0
      %v645 = vadd.f32 %v508, %v644
      %646 = vmatmul.bf16.gmra.mxu0 %v320
      %v647 = vpop.f32.mrf.mxu0
      %v648 = vadd.f32 %v511, %v647
      %v649 = vpop.f32.mrf.mxu0
      %v650 = vadd.f32 %v513, %v649
      %651 = vmatmul.bf16.gmra.mxu0 %v321
      %v652 = vpop.f32.mrf.mxu0
      %v653 = vadd.f32 %v516, %v652
      %v654 = vpop.f32.mrf.mxu0
      %v655 = vadd.f32 %v518, %v654
      %656 = vmatmul.bf16.gmra.mxu0 %v322
      %v657 = vpop.f32.mrf.mxu0
      %v658 = vadd.f32 %v521, %v657
      %v659 = vpop.f32.mrf.mxu0
      %v660 = vadd.f32 %v523, %v659
      %661 = vmatmul.bf16.gmra.mxu0 %v323
      %v662 = vpop.f32.mrf.mxu0
      %v663 = vadd.f32 %v526, %v662
      %v664 = vpop.f32.mrf.mxu0
      %v665 = vadd.f32 %v528, %v664
      %666 = vmatmul.bf16.gmra.mxu0 %v324
      %v667 = vpop.f32.mrf.mxu0
      %v668 = vadd.f32 %v531, %v667
      %v669 = vpop.f32.mrf.mxu0
      %v670 = vadd.f32 %v533, %v669
      %671 = vmatmul.bf16.gmra.mxu0 %v325
      %v672 = vpop.f32.mrf.mxu0
      %v673 = vadd.f32 %v536, %v672
      %v674 = vpop.f32.mrf.mxu0
      %v675 = vadd.f32 %v538, %v674
      %676 = vmatmul.bf16.gmra.mxu0 %v326
      %v677 = vpop.f32.mrf.mxu0
      %v678 = vadd.f32 %v541, %v677
      %v679 = vpop.f32.mrf.mxu0
      %v680 = vadd.f32 %v543, %v679
      %681 = vdwg.mxu0
      %v682 = vld [vmem:[%s273 + $0x2] sm:$0xff]
      %v683 = vld [vmem:[%s273 + $0xa] sm:$0xff]
      %v684 = vld [vmem:[%s273 + $0x1a] sm:$0xff]
      %v685 = vld [vmem:[%s273 + $0x22] sm:$0xff]
      %v686 = vld [vmem:[%s273 + $0x32] sm:$0xff]
      %v687 = vld [vmem:[%s273 + $0x3a] sm:$0xff]
      %v688 = vld [vmem:[%s273 + $0x4a] sm:$0xff]
      %v689 = vld [vmem:[%s273 + $0x52] sm:$0xff]
      %v690 = vld [vmem:[%s273 + $0x62] sm:$0xff]
      %v691 = vld [vmem:[%s273 + $0x6a] sm:$0xff]
      %v692 = vld [vmem:[%s273 + $0x7a] sm:$0xff]
      %v693 = vld [vmem:[%s273 + $0x82] sm:$0xff]
      %v694 = vld [vmem:[%s273 + $0x92] sm:$0xff]
      %v695 = vld [vmem:[%s273 + $0x9a] sm:$0xff]
      %v696 = vld [vmem:[%s273 + $0xaa] sm:$0xff]
      %v697 = vld [vmem:[%s273 + $0xb2] sm:$0xff]
      %v698 = vld [vmem:[%s273 + $0xc2] sm:$0xff]
      %v699 = vld [vmem:[%s273 + $0xca] sm:$0xff]
      %v700 = vld [vmem:[%s273 + $0xda] sm:$0xff]
      %v701 = vld [vmem:[%s273 + $0xe2] sm:$0xff]
      %v702 = vld [vmem:[%s273 + $0xf2] sm:$0xff]
      %v703 = vld [vmem:[%s273 + $0xfa] sm:$0xff]
      %v704 = vld [vmem:[%s273 + $0x10a] sm:$0xff]
      %v705 = vld [vmem:[%s273 + $0x112] sm:$0xff]
      %v706 = vld [vmem:[%s273 + $0x122] sm:$0xff]
      %v707 = vld [vmem:[%s273 + $0x12a] sm:$0xff]
      %v708 = vld [vmem:[%s273 + $0x13a] sm:$0xff]
      %v709 = vld [vmem:[%s273 + $0x142] sm:$0xff]
      %v710 = vld [vmem:[%s273 + $0x152] sm:$0xff]
      %v711 = vld [vmem:[%s273 + $0x15a] sm:$0xff]
      %v712 = vld [vmem:[%s273 + $0x16a] sm:$0xff]
      %v713 = vld [vmem:[%s273 + $0x172] sm:$0xff]
      %v714 = vpack.c.bf16 %v683, %v682
      %v715 = vpack.c.bf16 %v685, %v684
      %v716 = vpack.c.bf16 %v687, %v686
      %v717 = vpack.c.bf16 %v689, %v688
      %v718 = vpack.c.bf16 %v691, %v690
      %v719 = vpack.c.bf16 %v693, %v692
      %v720 = vpack.c.bf16 %v695, %v694
      %v721 = vpack.c.bf16 %v697, %v696
      %v722 = vpack.c.bf16 %v699, %v698
      %v723 = vpack.c.bf16 %v701, %v700
      %v724 = vpack.c.bf16 %v703, %v702
      %v725 = vpack.c.bf16 %v705, %v704
      %v726 = vpack.c.bf16 %v707, %v706
      %v727 = vpack.c.bf16 %v709, %v708
      %v728 = vpack.c.bf16 %v711, %v710
      %v729 = vpack.c.bf16 %v713, %v712
      %s730 = scalar_lea.vmem %s1, 128
      %v731 = vld [vmem:[%s730] sm:$0xf]
      %v732 = vld [vmem:[%s730 + $0x4] sm:$0xf]
      %v733 = vld [vmem:[%s730 + $0x8] sm:$0xf]
      %v734 = vld [vmem:[%s730 + $0xc] sm:$0xf]
      %v735 = vld [vmem:[%s730 + $0x10] sm:$0xf]
      %v736 = vld [vmem:[%s730 + $0x14] sm:$0xf]
      %v737 = vld [vmem:[%s730 + $0x18] sm:$0xf]
      %v738 = vld [vmem:[%s730 + $0x1c] sm:$0xf]
      %v739 = vld [vmem:[%s730 + $0x20] sm:$0xf]
      %v740 = vld [vmem:[%s730 + $0x24] sm:$0xf]
      %v741 = vld [vmem:[%s730 + $0x28] sm:$0xf]
      %v742 = vld [vmem:[%s730 + $0x2c] sm:$0xf]
      %v743 = vld [vmem:[%s730 + $0x30] sm:$0xf]
      %v744 = vld [vmem:[%s730 + $0x34] sm:$0xf]
      %v745 = vld [vmem:[%s730 + $0x38] sm:$0xf]
      %v746 = vld [vmem:[%s730 + $0x3c] sm:$0xf]
      %v763 = vunpack.c.l.b16 %v731
      %v764 = vunpack.c.l.b16 %v732
      %v765 = vunpack.c.l.b16 %v733
      %v766 = vunpack.c.l.b16 %v734
      %v767 = vunpack.c.l.b16 %v735
      %v768 = vunpack.c.l.b16 %v736
      %v769 = vunpack.c.l.b16 %v737
      %v770 = vunpack.c.l.b16 %v738
      %v771 = vunpack.c.l.b16 %v739
      %v772 = vunpack.c.l.b16 %v740
      %v773 = vunpack.c.l.b16 %v741
      %v774 = vunpack.c.l.b16 %v742
      %v775 = vunpack.c.l.b16 %v743
      %v776 = vunpack.c.l.b16 %v744
      %v777 = vunpack.c.l.b16 %v745
      %v778 = vunpack.c.l.b16 %v746
      %v779 = vpack.c.b16 %v764, %v763
      %v780 = vpack.c.b16 %v766, %v765
      %v781 = vpack.c.b16 %v768, %v767
      %v782 = vpack.c.b16 %v770, %v769
      %v783 = vpack.c.b16 %v772, %v771
      %v784 = vpack.c.b16 %v774, %v773
      %v785 = vpack.c.b16 %v776, %v775
      %v786 = vpack.c.b16 %v778, %v777
      %795 = vmatpush.bf16.msra.mxu0 %v786
      %796 = vmatpush.bf16.msra.mxu0 %v785
      %797 = vmatpush.bf16.msra.mxu0 %v784
      %798 = vmatpush.bf16.msra.mxu0 %v783
      %799 = vmatpush.bf16.msra.mxu0 %v782
      %800 = vmatpush.bf16.msra.mxu0 %v781
      %801 = vmatpush.bf16.msra.mxu0 %v780
      %802 = vmatpush.bf16.msra.mxu0 %v779
      %803 = vmatmul.bf16.gmra.mxu0 %v714
      %v804 = vpop.f32.mrf.mxu0
      %v805 = vadd.f32 0.0, %v804
      %v806 = vpop.f32.mrf.mxu0
      %v807 = vadd.f32 0.0, %v806
      %808 = vmatmul.bf16.gmra.mxu0 %v715
      %v809 = vpop.f32.mrf.mxu0
      %v810 = vadd.f32 0.0, %v809
      %v811 = vpop.f32.mrf.mxu0
      %v812 = vadd.f32 0.0, %v811
      %813 = vmatmul.bf16.gmra.mxu0 %v716
      %v814 = vpop.f32.mrf.mxu0
      %v815 = vadd.f32 0.0, %v814
      %v816 = vpop.f32.mrf.mxu0
      %v817 = vadd.f32 0.0, %v816
      %818 = vmatmul.bf16.gmra.mxu0 %v717
      %v819 = vpop.f32.mrf.mxu0
      %v820 = vadd.f32 0.0, %v819
      %v821 = vpop.f32.mrf.mxu0
      %v822 = vadd.f32 0.0, %v821
      %823 = vmatmul.bf16.gmra.mxu0 %v718
      %v824 = vpop.f32.mrf.mxu0
      %v825 = vadd.f32 0.0, %v824
      %v826 = vpop.f32.mrf.mxu0
      %v827 = vadd.f32 0.0, %v826
      %828 = vmatmul.bf16.gmra.mxu0 %v719
      %v829 = vpop.f32.mrf.mxu0
      %v830 = vadd.f32 0.0, %v829
      %v831 = vpop.f32.mrf.mxu0
      %v832 = vadd.f32 0.0, %v831
      %833 = vmatmul.bf16.gmra.mxu0 %v720
      %v834 = vpop.f32.mrf.mxu0
      %v835 = vadd.f32 0.0, %v834
      %v836 = vpop.f32.mrf.mxu0
      %v837 = vadd.f32 0.0, %v836
      %838 = vmatmul.bf16.gmra.mxu0 %v721
      %v839 = vpop.f32.mrf.mxu0
      %v840 = vadd.f32 0.0, %v839
      %v841 = vpop.f32.mrf.mxu0
      %v842 = vadd.f32 0.0, %v841
      %843 = vmatmul.bf16.gmra.mxu0 %v722
      %v844 = vpop.f32.mrf.mxu0
      %v845 = vadd.f32 0.0, %v844
      %v846 = vpop.f32.mrf.mxu0
      %v847 = vadd.f32 0.0, %v846
      %848 = vmatmul.bf16.gmra.mxu0 %v723
      %v849 = vpop.f32.mrf.mxu0
      %v850 = vadd.f32 0.0, %v849
      %v851 = vpop.f32.mrf.mxu0
      %v852 = vadd.f32 0.0, %v851
      %853 = vmatmul.bf16.gmra.mxu0 %v724
      %v854 = vpop.f32.mrf.mxu0
      %v855 = vadd.f32 0.0, %v854
      %v856 = vpop.f32.mrf.mxu0
      %v857 = vadd.f32 0.0, %v856
      %858 = vmatmul.bf16.gmra.mxu0 %v725
      %v859 = vpop.f32.mrf.mxu0
      %v860 = vadd.f32 0.0, %v859
      %v861 = vpop.f32.mrf.mxu0
      %v862 = vadd.f32 0.0, %v861
      %863 = vmatmul.bf16.gmra.mxu0 %v726
      %v864 = vpop.f32.mrf.mxu0
      %v865 = vadd.f32 0.0, %v864
      %v866 = vpop.f32.mrf.mxu0
      %v867 = vadd.f32 0.0, %v866
      %868 = vmatmul.bf16.gmra.mxu0 %v727
      %v869 = vpop.f32.mrf.mxu0
      %v870 = vadd.f32 0.0, %v869
      %v871 = vpop.f32.mrf.mxu0
      %v872 = vadd.f32 0.0, %v871
      %873 = vmatmul.bf16.gmra.mxu0 %v728
      %v874 = vpop.f32.mrf.mxu0
      %v875 = vadd.f32 0.0, %v874
      %v876 = vpop.f32.mrf.mxu0
      %v877 = vadd.f32 0.0, %v876
      %878 = vmatmul.bf16.gmra.mxu0 %v729
      %v879 = vpop.f32.mrf.mxu0
      %v880 = vadd.f32 0.0, %v879
      %v881 = vpop.f32.mrf.mxu0
      %v882 = vadd.f32 0.0, %v881
      %883 = vdwg.mxu0
      %v884 = vadd.f32 %v603, %v805
      %v885 = vadd.f32 %v605, %v807
      %v886 = vadd.f32 %v608, %v810
      %v887 = vadd.f32 %v610, %v812
      %v888 = vadd.f32 %v613, %v815
      %v889 = vadd.f32 %v615, %v817
      %v890 = vadd.f32 %v618, %v820
      %v891 = vadd.f32 %v620, %v822
      %v892 = vadd.f32 %v623, %v825
      %v893 = vadd.f32 %v625, %v827
      %v894 = vadd.f32 %v628, %v830
      %v895 = vadd.f32 %v630, %v832
      %v896 = vadd.f32 %v633, %v835
      %v897 = vadd.f32 %v635, %v837
      %v898 = vadd.f32 %v638, %v840
      %v899 = vadd.f32 %v640, %v842
      %v900 = vadd.f32 %v643, %v845
      %v901 = vadd.f32 %v645, %v847
      %v902 = vadd.f32 %v648, %v850
      %v903 = vadd.f32 %v650, %v852
      %v904 = vadd.f32 %v653, %v855
      %v905 = vadd.f32 %v655, %v857
      %v906 = vadd.f32 %v658, %v860
      %v907 = vadd.f32 %v660, %v862
      %v908 = vadd.f32 %v663, %v865
      %v909 = vadd.f32 %v665, %v867
      %v910 = vadd.f32 %v668, %v870
      %v911 = vadd.f32 %v670, %v872
      %v912 = vadd.f32 %v673, %v875
      %v913 = vadd.f32 %v675, %v877
      %v914 = vadd.f32 %v678, %v880
      %v915 = vadd.f32 %v680, %v882
      %s916 = scalar_lea.vmem %s273, 24
      %v917 = vld [vmem:[%s916] sm:$0xff]
      %v918 = vld [vmem:[%s916 + $0x8] sm:$0xff]
      %v919 = vld [vmem:[%s916 + $0x18] sm:$0xff]
      %v920 = vld [vmem:[%s916 + $0x20] sm:$0xff]
      %v921 = vld [vmem:[%s916 + $0x30] sm:$0xff]
      %v922 = vld [vmem:[%s916 + $0x38] sm:$0xff]
      %v923 = vld [vmem:[%s916 + $0x48] sm:$0xff]
      %v924 = vld [vmem:[%s916 + $0x50] sm:$0xff]
      %v925 = vld [vmem:[%s916 + $0x60] sm:$0xff]
      %v926 = vld [vmem:[%s916 + $0x68] sm:$0xff]
      %v927 = vld [vmem:[%s916 + $0x78] sm:$0xff]
      %v928 = vld [vmem:[%s916 + $0x80] sm:$0xff]
      %v929 = vld [vmem:[%s916 + $0x90] sm:$0xff]
      %v930 = vld [vmem:[%s916 + $0x98] sm:$0xff]
      %v931 = vld [vmem:[%s916 + $0xa8] sm:$0xff]
      %v932 = vld [vmem:[%s916 + $0xb0] sm:$0xff]
      %v933 = vld [vmem:[%s916 + $0xc0] sm:$0xff]
      %v934 = vld [vmem:[%s916 + $0xc8] sm:$0xff]
      %v935 = vld [vmem:[%s916 + $0xd8] sm:$0xff]
      %v936 = vld [vmem:[%s916 + $0xe0] sm:$0xff]
      %v937 = vld [vmem:[%s916 + $0xf0] sm:$0xff]
      %v938 = vld [vmem:[%s916 + $0xf8] sm:$0xff]
      %v939 = vld [vmem:[%s916 + $0x108] sm:$0xff]
      %v940 = vld [vmem:[%s916 + $0x110] sm:$0xff]
      %v941 = vld [vmem:[%s916 + $0x120] sm:$0xff]
      %v942 = vld [vmem:[%s916 + $0x128] sm:$0xff]
      %v943 = vld [vmem:[%s916 + $0x138] sm:$0xff]
      %v944 = vld [vmem:[%s916 + $0x140] sm:$0xff]
      %v945 = vld [vmem:[%s916 + $0x150] sm:$0xff]
      %v946 = vld [vmem:[%s916 + $0x158] sm:$0xff]
      %v947 = vld [vmem:[%s916 + $0x168] sm:$0xff]
      %v948 = vld [vmem:[%s916 + $0x170] sm:$0xff]
      %v949 = vpack.c.bf16 %v918, %v917
      %v950 = vpack.c.bf16 %v920, %v919
      %v951 = vpack.c.bf16 %v922, %v921
      %v952 = vpack.c.bf16 %v924, %v923
      %v953 = vpack.c.bf16 %v926, %v925
      %v954 = vpack.c.bf16 %v928, %v927
      %v955 = vpack.c.bf16 %v930, %v929
      %v956 = vpack.c.bf16 %v932, %v931
      %v957 = vpack.c.bf16 %v934, %v933
      %v958 = vpack.c.bf16 %v936, %v935
      %v959 = vpack.c.bf16 %v938, %v937
      %v960 = vpack.c.bf16 %v940, %v939
      %v961 = vpack.c.bf16 %v942, %v941
      %v962 = vpack.c.bf16 %v944, %v943
      %v963 = vpack.c.bf16 %v946, %v945
      %v964 = vpack.c.bf16 %v948, %v947
      %s965 = scalar_lea.vmem %s1, 192
      %v966 = vld [vmem:[%s965] sm:$0xf]
      %v967 = vld [vmem:[%s965 + $0x4] sm:$0xf]
      %v968 = vld [vmem:[%s965 + $0x8] sm:$0xf]
      %v969 = vld [vmem:[%s965 + $0xc] sm:$0xf]
      %v970 = vld [vmem:[%s965 + $0x10] sm:$0xf]
      %v971 = vld [vmem:[%s965 + $0x14] sm:$0xf]
      %v972 = vld [vmem:[%s965 + $0x18] sm:$0xf]
      %v973 = vld [vmem:[%s965 + $0x1c] sm:$0xf]
      %v974 = vld [vmem:[%s965 + $0x20] sm:$0xf]
      %v975 = vld [vmem:[%s965 + $0x24] sm:$0xf]
      %v976 = vld [vmem:[%s965 + $0x28] sm:$0xf]
      %v977 = vld [vmem:[%s965 + $0x2c] sm:$0xf]
      %v978 = vld [vmem:[%s965 + $0x30] sm:$0xf]
      %v979 = vld [vmem:[%s965 + $0x34] sm:$0xf]
      %v980 = vld [vmem:[%s965 + $0x38] sm:$0xf]
      %v981 = vld [vmem:[%s965 + $0x3c] sm:$0xf]
      %v998 = vunpack.c.l.b16 %v966
      %v999 = vunpack.c.l.b16 %v967
      %v1000 = vunpack.c.l.b16 %v968
      %v1001 = vunpack.c.l.b16 %v969
      %v1002 = vunpack.c.l.b16 %v970
      %v1003 = vunpack.c.l.b16 %v971
      %v1004 = vunpack.c.l.b16 %v972
      %v1005 = vunpack.c.l.b16 %v973
      %v1006 = vunpack.c.l.b16 %v974
      %v1007 = vunpack.c.l.b16 %v975
      %v1008 = vunpack.c.l.b16 %v976
      %v1009 = vunpack.c.l.b16 %v977
      %v1010 = vunpack.c.l.b16 %v978
      %v1011 = vunpack.c.l.b16 %v979
      %v1012 = vunpack.c.l.b16 %v980
      %v1013 = vunpack.c.l.b16 %v981
      %v1014 = vpack.c.b16 %v999, %v998
      %v1015 = vpack.c.b16 %v1001, %v1000
      %v1016 = vpack.c.b16 %v1003, %v1002
      %v1017 = vpack.c.b16 %v1005, %v1004
      %v1018 = vpack.c.b16 %v1007, %v1006
      %v1019 = vpack.c.b16 %v1009, %v1008
      %v1020 = vpack.c.b16 %v1011, %v1010
      %v1021 = vpack.c.b16 %v1013, %v1012
      %1030 = vmatpush.bf16.msra.mxu0 %v1021
      %1031 = vmatpush.bf16.msra.mxu0 %v1020
      %1032 = vmatpush.bf16.msra.mxu0 %v1019
      %1033 = vmatpush.bf16.msra.mxu0 %v1018
      %1034 = vmatpush.bf16.msra.mxu0 %v1017
      %1035 = vmatpush.bf16.msra.mxu0 %v1016
      %1036 = vmatpush.bf16.msra.mxu0 %v1015
      %1037 = vmatpush.bf16.msra.mxu0 %v1014
      %1038 = vmatmul.bf16.gmra.mxu0 %v949
      %v1039 = vpop.f32.mrf.mxu0
      %v1040 = vadd.f32 0.0, %v1039
      %v1041 = vpop.f32.mrf.mxu0
      %v1042 = vadd.f32 0.0, %v1041
      %1043 = vmatmul.bf16.gmra.mxu0 %v950
      %v1044 = vpop.f32.mrf.mxu0
      %v1045 = vadd.f32 0.0, %v1044
      %v1046 = vpop.f32.mrf.mxu0
      %v1047 = vadd.f32 0.0, %v1046
      %1048 = vmatmul.bf16.gmra.mxu0 %v951
      %v1049 = vpop.f32.mrf.mxu0
      %v1050 = vadd.f32 0.0, %v1049
      %v1051 = vpop.f32.mrf.mxu0
      %v1052 = vadd.f32 0.0, %v1051
      %1053 = vmatmul.bf16.gmra.mxu0 %v952
      %v1054 = vpop.f32.mrf.mxu0
      %v1055 = vadd.f32 0.0, %v1054
      %v1056 = vpop.f32.mrf.mxu0
      %v1057 = vadd.f32 0.0, %v1056
      %1058 = vmatmul.bf16.gmra.mxu0 %v953
      %v1059 = vpop.f32.mrf.mxu0
      %v1060 = vadd.f32 0.0, %v1059
      %v1061 = vpop.f32.mrf.mxu0
      %v1062 = vadd.f32 0.0, %v1061
      %1063 = vmatmul.bf16.gmra.mxu0 %v954
      %v1064 = vpop.f32.mrf.mxu0
      %v1065 = vadd.f32 0.0, %v1064
      %v1066 = vpop.f32.mrf.mxu0
      %v1067 = vadd.f32 0.0, %v1066
      %1068 = vmatmul.bf16.gmra.mxu0 %v955
      %v1069 = vpop.f32.mrf.mxu0
      %v1070 = vadd.f32 0.0, %v1069
      %v1071 = vpop.f32.mrf.mxu0
      %v1072 = vadd.f32 0.0, %v1071
      %1073 = vmatmul.bf16.gmra.mxu0 %v956
      %v1074 = vpop.f32.mrf.mxu0
      %v1075 = vadd.f32 0.0, %v1074
      %v1076 = vpop.f32.mrf.mxu0
      %v1077 = vadd.f32 0.0, %v1076
      %1078 = vmatmul.bf16.gmra.mxu0 %v957
      %v1079 = vpop.f32.mrf.mxu0
      %v1080 = vadd.f32 0.0, %v1079
      %v1081 = vpop.f32.mrf.mxu0
      %v1082 = vadd.f32 0.0, %v1081
      %1083 = vmatmul.bf16.gmra.mxu0 %v958
      %v1084 = vpop.f32.mrf.mxu0
      %v1085 = vadd.f32 0.0, %v1084
      %v1086 = vpop.f32.mrf.mxu0
      %v1087 = vadd.f32 0.0, %v1086
      %1088 = vmatmul.bf16.gmra.mxu0 %v959
      %v1089 = vpop.f32.mrf.mxu0
      %v1090 = vadd.f32 0.0, %v1089
      %v1091 = vpop.f32.mrf.mxu0
      %v1092 = vadd.f32 0.0, %v1091
      %1093 = vmatmul.bf16.gmra.mxu0 %v960
      %v1094 = vpop.f32.mrf.mxu0
      %v1095 = vadd.f32 0.0, %v1094
      %v1096 = vpop.f32.mrf.mxu0
      %v1097 = vadd.f32 0.0, %v1096
      %1098 = vmatmul.bf16.gmra.mxu0 %v961
      %v1099 = vpop.f32.mrf.mxu0
      %v1100 = vadd.f32 0.0, %v1099
      %v1101 = vpop.f32.mrf.mxu0
      %v1102 = vadd.f32 0.0, %v1101
      %1103 = vmatmul.bf16.gmra.mxu0 %v962
      %v1104 = vpop.f32.mrf.mxu0
      %v1105 = vadd.f32 0.0, %v1104
      %v1106 = vpop.f32.mrf.mxu0
      %v1107 = vadd.f32 0.0, %v1106
      %1108 = vmatmul.bf16.gmra.mxu0 %v963
      %v1109 = vpop.f32.mrf.mxu0
      %v1110 = vadd.f32 0.0, %v1109
      %v1111 = vpop.f32.mrf.mxu0
      %v1112 = vadd.f32 0.0, %v1111
      %1113 = vmatmul.bf16.gmra.mxu0 %v964
      %v1114 = vpop.f32.mrf.mxu0
      %v1115 = vadd.f32 0.0, %v1114
      %v1116 = vpop.f32.mrf.mxu0
      %v1117 = vadd.f32 0.0, %v1116
      %1118 = vdwg.mxu0
      %v1119 = vadd.f32 %v884, %v1040
      %v1120 = vadd.f32 %v885, %v1042
      %v1121 = vadd.f32 %v886, %v1045
      %v1122 = vadd.f32 %v887, %v1047
      %v1123 = vadd.f32 %v888, %v1050
      %v1124 = vadd.f32 %v889, %v1052
      %v1125 = vadd.f32 %v890, %v1055
      %v1126 = vadd.f32 %v891, %v1057
      %v1127 = vadd.f32 %v892, %v1060
      %v1128 = vadd.f32 %v893, %v1062
      %v1129 = vadd.f32 %v894, %v1065
      %v1130 = vadd.f32 %v895, %v1067
      %v1131 = vadd.f32 %v896, %v1070
      %v1132 = vadd.f32 %v897, %v1072
      %v1133 = vadd.f32 %v898, %v1075
      %v1134 = vadd.f32 %v899, %v1077
      %v1135 = vadd.f32 %v900, %v1080
      %v1136 = vadd.f32 %v901, %v1082
      %v1137 = vadd.f32 %v902, %v1085
      %v1138 = vadd.f32 %v903, %v1087
      %v1139 = vadd.f32 %v904, %v1090
      %v1140 = vadd.f32 %v905, %v1092
      %v1141 = vadd.f32 %v906, %v1095
      %v1142 = vadd.f32 %v907, %v1097
      %v1143 = vadd.f32 %v908, %v1100
      %v1144 = vadd.f32 %v909, %v1102
      %v1145 = vadd.f32 %v910, %v1105
      %v1146 = vadd.f32 %v911, %v1107
      %v1147 = vadd.f32 %v912, %v1110
      %v1148 = vadd.f32 %v913, %v1112
      %v1149 = vadd.f32 %v914, %v1115
      %v1150 = vadd.f32 %v915, %v1117
      %v1151 = vld [vmem:[%s916 + $0x1] sm:$0xff]
      %v1152 = vld [vmem:[%s916 + $0x9] sm:$0xff]
      %v1153 = vld [vmem:[%s916 + $0x19] sm:$0xff]
      %v1154 = vld [vmem:[%s916 + $0x21] sm:$0xff]
      %v1155 = vld [vmem:[%s916 + $0x31] sm:$0xff]
      %v1156 = vld [vmem:[%s916 + $0x39] sm:$0xff]
      %v1157 = vld [vmem:[%s916 + $0x49] sm:$0xff]
      %v1158 = vld [vmem:[%s916 + $0x51] sm:$0xff]
      %v1159 = vld [vmem:[%s916 + $0x61] sm:$0xff]
      %v1160 = vld [vmem:[%s916 + $0x69] sm:$0xff]
      %v1161 = vld [vmem:[%s916 + $0x79] sm:$0xff]
      %v1162 = vld [vmem:[%s916 + $0x81] sm:$0xff]
      %v1163 = vld [vmem:[%s916 + $0x91] sm:$0xff]
      %v1164 = vld [vmem:[%s916 + $0x99] sm:$0xff]
      %v1165 = vld [vmem:[%s916 + $0xa9] sm:$0xff]
      %v1166 = vld [vmem:[%s916 + $0xb1] sm:$0xff]
      %v1167 = vld [vmem:[%s916 + $0xc1] sm:$0xff]
      %v1168 = vld [vmem:[%s916 + $0xc9] sm:$0xff]
      %v1169 = vld [vmem:[%s916 + $0xd9] sm:$0xff]
      %v1170 = vld [vmem:[%s916 + $0xe1] sm:$0xff]
      %v1171 = vld [vmem:[%s916 + $0xf1] sm:$0xff]
      %v1172 = vld [vmem:[%s916 + $0xf9] sm:$0xff]
      %v1173 = vld [vmem:[%s916 + $0x109] sm:$0xff]
      %v1174 = vld [vmem:[%s916 + $0x111] sm:$0xff]
      %v1175 = vld [vmem:[%s916 + $0x121] sm:$0xff]
      %v1176 = vld [vmem:[%s916 + $0x129] sm:$0xff]
      %v1177 = vld [vmem:[%s916 + $0x139] sm:$0xff]
      %v1178 = vld [vmem:[%s916 + $0x141] sm:$0xff]
      %v1179 = vld [vmem:[%s916 + $0x151] sm:$0xff]
      %v1180 = vld [vmem:[%s916 + $0x159] sm:$0xff]
      %v1181 = vld [vmem:[%s916 + $0x169] sm:$0xff]
      %v1182 = vld [vmem:[%s916 + $0x171] sm:$0xff]
      %v1183 = vpack.c.bf16 %v1152, %v1151
      %v1184 = vpack.c.bf16 %v1154, %v1153
      %v1185 = vpack.c.bf16 %v1156, %v1155
      %v1186 = vpack.c.bf16 %v1158, %v1157
      %v1187 = vpack.c.bf16 %v1160, %v1159
      %v1188 = vpack.c.bf16 %v1162, %v1161
      %v1189 = vpack.c.bf16 %v1164, %v1163
      %v1190 = vpack.c.bf16 %v1166, %v1165
      %v1191 = vpack.c.bf16 %v1168, %v1167
      %v1192 = vpack.c.bf16 %v1170, %v1169
      %v1193 = vpack.c.bf16 %v1172, %v1171
      %v1194 = vpack.c.bf16 %v1174, %v1173
      %v1195 = vpack.c.bf16 %v1176, %v1175
      %v1196 = vpack.c.bf16 %v1178, %v1177
      %v1197 = vpack.c.bf16 %v1180, %v1179
      %v1198 = vpack.c.bf16 %v1182, %v1181
      %s1199 = scalar_lea.vmem %s1, 256
      %v1200 = vld [vmem:[%s1199] sm:$0xf]
      %v1201 = vld [vmem:[%s1199 + $0x4] sm:$0xf]
      %v1202 = vld [vmem:[%s1199 + $0x8] sm:$0xf]
      %v1203 = vld [vmem:[%s1199 + $0xc] sm:$0xf]
      %v1204 = vld [vmem:[%s1199 + $0x10] sm:$0xf]
      %v1205 = vld [vmem:[%s1199 + $0x14] sm:$0xf]
      %v1206 = vld [vmem:[%s1199 + $0x18] sm:$0xf]
      %v1207 = vld [vmem:[%s1199 + $0x1c] sm:$0xf]
      %v1208 = vld [vmem:[%s1199 + $0x20] sm:$0xf]
      %v1209 = vld [vmem:[%s1199 + $0x24] sm:$0xf]
      %v1210 = vld [vmem:[%s1199 + $0x28] sm:$0xf]
      %v1211 = vld [vmem:[%s1199 + $0x2c] sm:$0xf]
      %v1212 = vld [vmem:[%s1199 + $0x30] sm:$0xf]
      %v1213 = vld [vmem:[%s1199 + $0x34] sm:$0xf]
      %v1214 = vld [vmem:[%s1199 + $0x38] sm:$0xf]
      %v1215 = vld [vmem:[%s1199 + $0x3c] sm:$0xf]
      %v1232 = vunpack.c.l.b16 %v1200
      %v1233 = vunpack.c.l.b16 %v1201
      %v1234 = vunpack.c.l.b16 %v1202
      %v1235 = vunpack.c.l.b16 %v1203
      %v1236 = vunpack.c.l.b16 %v1204
      %v1237 = vunpack.c.l.b16 %v1205
      %v1238 = vunpack.c.l.b16 %v1206
      %v1239 = vunpack.c.l.b16 %v1207
      %v1240 = vunpack.c.l.b16 %v1208
      %v1241 = vunpack.c.l.b16 %v1209
      %v1242 = vunpack.c.l.b16 %v1210
      %v1243 = vunpack.c.l.b16 %v1211
      %v1244 = vunpack.c.l.b16 %v1212
      %v1245 = vunpack.c.l.b16 %v1213
      %v1246 = vunpack.c.l.b16 %v1214
      %v1247 = vunpack.c.l.b16 %v1215
      %v1248 = vpack.c.b16 %v1233, %v1232
      %v1249 = vpack.c.b16 %v1235, %v1234
      %v1250 = vpack.c.b16 %v1237, %v1236
      %v1251 = vpack.c.b16 %v1239, %v1238
      %v1252 = vpack.c.b16 %v1241, %v1240
      %v1253 = vpack.c.b16 %v1243, %v1242
      %v1254 = vpack.c.b16 %v1245, %v1244
      %v1255 = vpack.c.b16 %v1247, %v1246
      %1264 = vmatpush.bf16.msra.mxu0 %v1255
      %1265 = vmatpush.bf16.msra.mxu0 %v1254
      %1266 = vmatpush.bf16.msra.mxu0 %v1253
      %1267 = vmatpush.bf16.msra.mxu0 %v1252
      %1268 = vmatpush.bf16.msra.mxu0 %v1251
      %1269 = vmatpush.bf16.msra.mxu0 %v1250
      %1270 = vmatpush.bf16.msra.mxu0 %v1249
      %1271 = vmatpush.bf16.msra.mxu0 %v1248
      %1272 = vmatmul.bf16.gmra.mxu0 %v1183
      %v1273 = vpop.f32.mrf.mxu0
      %v1274 = vadd.f32 0.0, %v1273
      %v1275 = vpop.f32.mrf.mxu0
      %v1276 = vadd.f32 0.0, %v1275
      %1277 = vmatmul.bf16.gmra.mxu0 %v1184
      %v1278 = vpop.f32.mrf.mxu0
      %v1279 = vadd.f32 0.0, %v1278
      %v1280 = vpop.f32.mrf.mxu0
      %v1281 = vadd.f32 0.0, %v1280
      %1282 = vmatmul.bf16.gmra.mxu0 %v1185
      %v1283 = vpop.f32.mrf.mxu0
      %v1284 = vadd.f32 0.0, %v1283
      %v1285 = vpop.f32.mrf.mxu0
      %v1286 = vadd.f32 0.0, %v1285
      %1287 = vmatmul.bf16.gmra.mxu0 %v1186
      %v1288 = vpop.f32.mrf.mxu0
      %v1289 = vadd.f32 0.0, %v1288
      %v1290 = vpop.f32.mrf.mxu0
      %v1291 = vadd.f32 0.0, %v1290
      %1292 = vmatmul.bf16.gmra.mxu0 %v1187
      %v1293 = vpop.f32.mrf.mxu0
      %v1294 = vadd.f32 0.0, %v1293
      %v1295 = vpop.f32.mrf.mxu0
      %v1296 = vadd.f32 0.0, %v1295
      %1297 = vmatmul.bf16.gmra.mxu0 %v1188
      %v1298 = vpop.f32.mrf.mxu0
      %v1299 = vadd.f32 0.0, %v1298
      %v1300 = vpop.f32.mrf.mxu0
      %v1301 = vadd.f32 0.0, %v1300
      %1302 = vmatmul.bf16.gmra.mxu0 %v1189
      %v1303 = vpop.f32.mrf.mxu0
      %v1304 = vadd.f32 0.0, %v1303
      %v1305 = vpop.f32.mrf.mxu0
      %v1306 = vadd.f32 0.0, %v1305
      %1307 = vmatmul.bf16.gmra.mxu0 %v1190
      %v1308 = vpop.f32.mrf.mxu0
      %v1309 = vadd.f32 0.0, %v1308
      %v1310 = vpop.f32.mrf.mxu0
      %v1311 = vadd.f32 0.0, %v1310
      %1312 = vmatmul.bf16.gmra.mxu0 %v1191
      %v1313 = vpop.f32.mrf.mxu0
      %v1314 = vadd.f32 0.0, %v1313
      %v1315 = vpop.f32.mrf.mxu0
      %v1316 = vadd.f32 0.0, %v1315
      %1317 = vmatmul.bf16.gmra.mxu0 %v1192
      %v1318 = vpop.f32.mrf.mxu0
      %v1319 = vadd.f32 0.0, %v1318
      %v1320 = vpop.f32.mrf.mxu0
      %v1321 = vadd.f32 0.0, %v1320
      %1322 = vmatmul.bf16.gmra.mxu0 %v1193
      %v1323 = vpop.f32.mrf.mxu0
      %v1324 = vadd.f32 0.0, %v1323
      %v1325 = vpop.f32.mrf.mxu0
      %v1326 = vadd.f32 0.0, %v1325
      %1327 = vmatmul.bf16.gmra.mxu0 %v1194
      %v1328 = vpop.f32.mrf.mxu0
      %v1329 = vadd.f32 0.0, %v1328
      %v1330 = vpop.f32.mrf.mxu0
      %v1331 = vadd.f32 0.0, %v1330
      %1332 = vmatmul.bf16.gmra.mxu0 %v1195
      %v1333 = vpop.f32.mrf.mxu0
      %v1334 = vadd.f32 0.0, %v1333
      %v1335 = vpop.f32.mrf.mxu0
      %v1336 = vadd.f32 0.0, %v1335
      %1337 = vmatmul.bf16.gmra.mxu0 %v1196
      %v1338 = vpop.f32.mrf.mxu0
      %v1339 = vadd.f32 0.0, %v1338
      %v1340 = vpop.f32.mrf.mxu0
      %v1341 = vadd.f32 0.0, %v1340
      %1342 = vmatmul.bf16.gmra.mxu0 %v1197
      %v1343 = vpop.f32.mrf.mxu0
      %v1344 = vadd.f32 0.0, %v1343
      %v1345 = vpop.f32.mrf.mxu0
      %v1346 = vadd.f32 0.0, %v1345
      %1347 = vmatmul.bf16.gmra.mxu0 %v1198
      %v1348 = vpop.f32.mrf.mxu0
      %v1349 = vadd.f32 0.0, %v1348
      %v1350 = vpop.f32.mrf.mxu0
      %v1351 = vadd.f32 0.0, %v1350
      %1352 = vdwg.mxu0
      %v1353 = vadd.f32 %v1119, %v1274
      %v1354 = vadd.f32 %v1120, %v1276
      %v1355 = vadd.f32 %v1121, %v1279
      %v1356 = vadd.f32 %v1122, %v1281
      %v1357 = vadd.f32 %v1123, %v1284
      %v1358 = vadd.f32 %v1124, %v1286
      %v1359 = vadd.f32 %v1125, %v1289
      %v1360 = vadd.f32 %v1126, %v1291
      %v1361 = vadd.f32 %v1127, %v1294
      %v1362 = vadd.f32 %v1128, %v1296
      %v1363 = vadd.f32 %v1129, %v1299
      %v1364 = vadd.f32 %v1130, %v1301
      %v1365 = vadd.f32 %v1131, %v1304
      %v1366 = vadd.f32 %v1132, %v1306
      %v1367 = vadd.f32 %v1133, %v1309
      %v1368 = vadd.f32 %v1134, %v1311
      %v1369 = vadd.f32 %v1135, %v1314
      %v1370 = vadd.f32 %v1136, %v1316
      %v1371 = vadd.f32 %v1137, %v1319
      %v1372 = vadd.f32 %v1138, %v1321
      %v1373 = vadd.f32 %v1139, %v1324
      %v1374 = vadd.f32 %v1140, %v1326
      %v1375 = vadd.f32 %v1141, %v1329
      %v1376 = vadd.f32 %v1142, %v1331
      %v1377 = vadd.f32 %v1143, %v1334
      %v1378 = vadd.f32 %v1144, %v1336
      %v1379 = vadd.f32 %v1145, %v1339
      %v1380 = vadd.f32 %v1146, %v1341
      %v1381 = vadd.f32 %v1147, %v1344
      %v1382 = vadd.f32 %v1148, %v1346
      %v1383 = vadd.f32 %v1149, %v1349
      %v1384 = vadd.f32 %v1150, %v1351
      %v1385 = vld [vmem:[%s916 + $0x2] sm:$0xff]
      %v1386 = vld [vmem:[%s916 + $0xa] sm:$0xff]
      %v1387 = vld [vmem:[%s916 + $0x1a] sm:$0xff]
      %v1388 = vld [vmem:[%s916 + $0x22] sm:$0xff]
      %v1389 = vld [vmem:[%s916 + $0x32] sm:$0xff]
      %v1390 = vld [vmem:[%s916 + $0x3a] sm:$0xff]
      %v1391 = vld [vmem:[%s916 + $0x4a] sm:$0xff]
      %v1392 = vld [vmem:[%s916 + $0x52] sm:$0xff]
      %v1393 = vld [vmem:[%s916 + $0x62] sm:$0xff]
      %v1394 = vld [vmem:[%s916 + $0x6a] sm:$0xff]
      %v1395 = vld [vmem:[%s916 + $0x7a] sm:$0xff]
      %v1396 = vld [vmem:[%s916 + $0x82] sm:$0xff]
      %v1397 = vld [vmem:[%s916 + $0x92] sm:$0xff]
      %v1398 = vld [vmem:[%s916 + $0x9a] sm:$0xff]
      %v1399 = vld [vmem:[%s916 + $0xaa] sm:$0xff]
      %v1400 = vld [vmem:[%s916 + $0xb2] sm:$0xff]
      %v1401 = vld [vmem:[%s916 + $0xc2] sm:$0xff]
      %v1402 = vld [vmem:[%s916 + $0xca] sm:$0xff]
      %v1403 = vld [vmem:[%s916 + $0xda] sm:$0xff]
      %v1404 = vld [vmem:[%s916 + $0xe2] sm:$0xff]
      %v1405 = vld [vmem:[%s916 + $0xf2] sm:$0xff]
      %v1406 = vld [vmem:[%s916 + $0xfa] sm:$0xff]
      %v1407 = vld [vmem:[%s916 + $0x10a] sm:$0xff]
      %v1408 = vld [vmem:[%s916 + $0x112] sm:$0xff]
      %v1409 = vld [vmem:[%s916 + $0x122] sm:$0xff]
      %v1410 = vld [vmem:[%s916 + $0x12a] sm:$0xff]
      %v1411 = vld [vmem:[%s916 + $0x13a] sm:$0xff]
      %v1412 = vld [vmem:[%s916 + $0x142] sm:$0xff]
      %v1413 = vld [vmem:[%s916 + $0x152] sm:$0xff]
      %v1414 = vld [vmem:[%s916 + $0x15a] sm:$0xff]
      %v1415 = vld [vmem:[%s916 + $0x16a] sm:$0xff]
      %v1416 = vld [vmem:[%s916 + $0x172] sm:$0xff]
      %v1417 = vpack.c.bf16 %v1386, %v1385
      %v1418 = vpack.c.bf16 %v1388, %v1387
      %v1419 = vpack.c.bf16 %v1390, %v1389
      %v1420 = vpack.c.bf16 %v1392, %v1391
      %v1421 = vpack.c.bf16 %v1394, %v1393
      %v1422 = vpack.c.bf16 %v1396, %v1395
      %v1423 = vpack.c.bf16 %v1398, %v1397
      %v1424 = vpack.c.bf16 %v1400, %v1399
      %v1425 = vpack.c.bf16 %v1402, %v1401
      %v1426 = vpack.c.bf16 %v1404, %v1403
      %v1427 = vpack.c.bf16 %v1406, %v1405
      %v1428 = vpack.c.bf16 %v1408, %v1407
      %v1429 = vpack.c.bf16 %v1410, %v1409
      %v1430 = vpack.c.bf16 %v1412, %v1411
      %v1431 = vpack.c.bf16 %v1414, %v1413
      %v1432 = vpack.c.bf16 %v1416, %v1415
      %s1433 = scalar_lea.vmem %s1, 320
      %v1434 = vld [vmem:[%s1433] sm:$0xf]
      %v1435 = vld [vmem:[%s1433 + $0x4] sm:$0xf]
      %v1436 = vld [vmem:[%s1433 + $0x8] sm:$0xf]
      %v1437 = vld [vmem:[%s1433 + $0xc] sm:$0xf]
      %v1438 = vld [vmem:[%s1433 + $0x10] sm:$0xf]
      %v1439 = vld [vmem:[%s1433 + $0x14] sm:$0xf]
      %v1440 = vld [vmem:[%s1433 + $0x18] sm:$0xf]
      %v1441 = vld [vmem:[%s1433 + $0x1c] sm:$0xf]
      %v1442 = vld [vmem:[%s1433 + $0x20] sm:$0xf]
      %v1443 = vld [vmem:[%s1433 + $0x24] sm:$0xf]
      %v1444 = vld [vmem:[%s1433 + $0x28] sm:$0xf]
      %v1445 = vld [vmem:[%s1433 + $0x2c] sm:$0xf]
      %v1446 = vld [vmem:[%s1433 + $0x30] sm:$0xf]
      %v1447 = vld [vmem:[%s1433 + $0x34] sm:$0xf]
      %v1448 = vld [vmem:[%s1433 + $0x38] sm:$0xf]
      %v1449 = vld [vmem:[%s1433 + $0x3c] sm:$0xf]
      %v1466 = vunpack.c.l.b16 %v1434
      %v1467 = vunpack.c.l.b16 %v1435
      %v1468 = vunpack.c.l.b16 %v1436
      %v1469 = vunpack.c.l.b16 %v1437
      %v1470 = vunpack.c.l.b16 %v1438
      %v1471 = vunpack.c.l.b16 %v1439
      %v1472 = vunpack.c.l.b16 %v1440
      %v1473 = vunpack.c.l.b16 %v1441
      %v1474 = vunpack.c.l.b16 %v1442
      %v1475 = vunpack.c.l.b16 %v1443
      %v1476 = vunpack.c.l.b16 %v1444
      %v1477 = vunpack.c.l.b16 %v1445
      %v1478 = vunpack.c.l.b16 %v1446
      %v1479 = vunpack.c.l.b16 %v1447
      %v1480 = vunpack.c.l.b16 %v1448
      %v1481 = vunpack.c.l.b16 %v1449
      %v1482 = vpack.c.b16 %v1467, %v1466
      %v1483 = vpack.c.b16 %v1469, %v1468
      %v1484 = vpack.c.b16 %v1471, %v1470
      %v1485 = vpack.c.b16 %v1473, %v1472
      %v1486 = vpack.c.b16 %v1475, %v1474
      %v1487 = vpack.c.b16 %v1477, %v1476
      %v1488 = vpack.c.b16 %v1479, %v1478
      %v1489 = vpack.c.b16 %v1481, %v1480
      %1498 = vmatpush.bf16.msra.mxu0 %v1489
      %1499 = vmatpush.bf16.msra.mxu0 %v1488
      %1500 = vmatpush.bf16.msra.mxu0 %v1487
      %1501 = vmatpush.bf16.msra.mxu0 %v1486
      %1502 = vmatpush.bf16.msra.mxu0 %v1485
      %1503 = vmatpush.bf16.msra.mxu0 %v1484
      %1504 = vmatpush.bf16.msra.mxu0 %v1483
      %1505 = vmatpush.bf16.msra.mxu0 %v1482
      %1506 = vmatmul.bf16.gmra.mxu0 %v1417
      %v1507 = vpop.f32.mrf.mxu0
      %v1508 = vadd.f32 0.0, %v1507
      %v1509 = vpop.f32.mrf.mxu0
      %v1510 = vadd.f32 0.0, %v1509
      %1511 = vmatmul.bf16.gmra.mxu0 %v1418
      %v1512 = vpop.f32.mrf.mxu0
      %v1513 = vadd.f32 0.0, %v1512
      %v1514 = vpop.f32.mrf.mxu0
      %v1515 = vadd.f32 0.0, %v1514
      %1516 = vmatmul.bf16.gmra.mxu0 %v1419
      %v1517 = vpop.f32.mrf.mxu0
      %v1518 = vadd.f32 0.0, %v1517
      %v1519 = vpop.f32.mrf.mxu0
      %v1520 = vadd.f32 0.0, %v1519
      %1521 = vmatmul.bf16.gmra.mxu0 %v1420
      %v1522 = vpop.f32.mrf.mxu0
      %v1523 = vadd.f32 0.0, %v1522
      %v1524 = vpop.f32.mrf.mxu0
      %v1525 = vadd.f32 0.0, %v1524
      %1526 = vmatmul.bf16.gmra.mxu0 %v1421
      %v1527 = vpop.f32.mrf.mxu0
      %v1528 = vadd.f32 0.0, %v1527
      %v1529 = vpop.f32.mrf.mxu0
      %v1530 = vadd.f32 0.0, %v1529
      %1531 = vmatmul.bf16.gmra.mxu0 %v1422
      %v1532 = vpop.f32.mrf.mxu0
      %v1533 = vadd.f32 0.0, %v1532
      %v1534 = vpop.f32.mrf.mxu0
      %v1535 = vadd.f32 0.0, %v1534
      %1536 = vmatmul.bf16.gmra.mxu0 %v1423
      %v1537 = vpop.f32.mrf.mxu0
      %v1538 = vadd.f32 0.0, %v1537
      %v1539 = vpop.f32.mrf.mxu0
      %v1540 = vadd.f32 0.0, %v1539
      %1541 = vmatmul.bf16.gmra.mxu0 %v1424
      %v1542 = vpop.f32.mrf.mxu0
      %v1543 = vadd.f32 0.0, %v1542
      %v1544 = vpop.f32.mrf.mxu0
      %v1545 = vadd.f32 0.0, %v1544
      %1546 = vmatmul.bf16.gmra.mxu0 %v1425
      %v1547 = vpop.f32.mrf.mxu0
      %v1548 = vadd.f32 0.0, %v1547
      %v1549 = vpop.f32.mrf.mxu0
      %v1550 = vadd.f32 0.0, %v1549
      %1551 = vmatmul.bf16.gmra.mxu0 %v1426
      %v1552 = vpop.f32.mrf.mxu0
      %v1553 = vadd.f32 0.0, %v1552
      %v1554 = vpop.f32.mrf.mxu0
      %v1555 = vadd.f32 0.0, %v1554
      %1556 = vmatmul.bf16.gmra.mxu0 %v1427
      %v1557 = vpop.f32.mrf.mxu0
      %v1558 = vadd.f32 0.0, %v1557
      %v1559 = vpop.f32.mrf.mxu0
      %v1560 = vadd.f32 0.0, %v1559
      %1561 = vmatmul.bf16.gmra.mxu0 %v1428
      %v1562 = vpop.f32.mrf.mxu0
      %v1563 = vadd.f32 0.0, %v1562
      %v1564 = vpop.f32.mrf.mxu0
      %v1565 = vadd.f32 0.0, %v1564
      %1566 = vmatmul.bf16.gmra.mxu0 %v1429
      %v1567 = vpop.f32.mrf.mxu0
      %v1568 = vadd.f32 0.0, %v1567
      %v1569 = vpop.f32.mrf.mxu0
      %v1570 = vadd.f32 0.0, %v1569
      %1571 = vmatmul.bf16.gmra.mxu0 %v1430
      %v1572 = vpop.f32.mrf.mxu0
      %v1573 = vadd.f32 0.0, %v1572
      %v1574 = vpop.f32.mrf.mxu0
      %v1575 = vadd.f32 0.0, %v1574
      %1576 = vmatmul.bf16.gmra.mxu0 %v1431
      %v1577 = vpop.f32.mrf.mxu0
      %v1578 = vadd.f32 0.0, %v1577
      %v1579 = vpop.f32.mrf.mxu0
      %v1580 = vadd.f32 0.0, %v1579
      %1581 = vmatmul.bf16.gmra.mxu0 %v1432
      %v1582 = vpop.f32.mrf.mxu0
      %v1583 = vadd.f32 0.0, %v1582
      %v1584 = vpop.f32.mrf.mxu0
      %v1585 = vadd.f32 0.0, %v1584
      %1586 = vdwg.mxu0
      %v1587 = vadd.f32 %v1353, %v1508
      %v1588 = vadd.f32 %v1354, %v1510
      %v1589 = vadd.f32 %v1355, %v1513
      %v1590 = vadd.f32 %v1356, %v1515
      %v1591 = vadd.f32 %v1357, %v1518
      %v1592 = vadd.f32 %v1358, %v1520
      %v1593 = vadd.f32 %v1359, %v1523
      %v1594 = vadd.f32 %v1360, %v1525
      %v1595 = vadd.f32 %v1361, %v1528
      %v1596 = vadd.f32 %v1362, %v1530
      %v1597 = vadd.f32 %v1363, %v1533
      %v1598 = vadd.f32 %v1364, %v1535
      %v1599 = vadd.f32 %v1365, %v1538
      %v1600 = vadd.f32 %v1366, %v1540
      %v1601 = vadd.f32 %v1367, %v1543
      %v1602 = vadd.f32 %v1368, %v1545
      %v1603 = vadd.f32 %v1369, %v1548
      %v1604 = vadd.f32 %v1370, %v1550
      %v1605 = vadd.f32 %v1371, %v1553
      %v1606 = vadd.f32 %v1372, %v1555
      %v1607 = vadd.f32 %v1373, %v1558
      %v1608 = vadd.f32 %v1374, %v1560
      %v1609 = vadd.f32 %v1375, %v1563
      %v1610 = vadd.f32 %v1376, %v1565
      %v1611 = vadd.f32 %v1377, %v1568
      %v1612 = vadd.f32 %v1378, %v1570
      %v1613 = vadd.f32 %v1379, %v1573
      %v1614 = vadd.f32 %v1380, %v1575
      %v1615 = vadd.f32 %v1381, %v1578
      %v1616 = vadd.f32 %v1382, %v1580
      %v1617 = vadd.f32 %v1383, %v1583
      %v1618 = vadd.f32 %v1384, %v1585
      %s1619 = scalar_lea.vmem %s273, 48
      %v1620 = vld [vmem:[%s1619] sm:$0xff]
      %v1621 = vld [vmem:[%s1619 + $0x8] sm:$0xff]
      %v1622 = vld [vmem:[%s1619 + $0x18] sm:$0xff]
      %v1623 = vld [vmem:[%s1619 + $0x20] sm:$0xff]
      %v1624 = vld [vmem:[%s1619 + $0x30] sm:$0xff]
      %v1625 = vld [vmem:[%s1619 + $0x38] sm:$0xff]
      %v1626 = vld [vmem:[%s1619 + $0x48] sm:$0xff]
      %v1627 = vld [vmem:[%s1619 + $0x50] sm:$0xff]
      %v1628 = vld [vmem:[%s1619 + $0x60] sm:$0xff]
      %v1629 = vld [vmem:[%s1619 + $0x68] sm:$0xff]
      %v1630 = vld [vmem:[%s1619 + $0x78] sm:$0xff]
      %v1631 = vld [vmem:[%s1619 + $0x80] sm:$0xff]
      %v1632 = vld [vmem:[%s1619 + $0x90] sm:$0xff]
      %v1633 = vld [vmem:[%s1619 + $0x98] sm:$0xff]
      %v1634 = vld [vmem:[%s1619 + $0xa8] sm:$0xff]
      %v1635 = vld [vmem:[%s1619 + $0xb0] sm:$0xff]
      %v1636 = vld [vmem:[%s1619 + $0xc0] sm:$0xff]
      %v1637 = vld [vmem:[%s1619 + $0xc8] sm:$0xff]
      %v1638 = vld [vmem:[%s1619 + $0xd8] sm:$0xff]
      %v1639 = vld [vmem:[%s1619 + $0xe0] sm:$0xff]
      %v1640 = vld [vmem:[%s1619 + $0xf0] sm:$0xff]
      %v1641 = vld [vmem:[%s1619 + $0xf8] sm:$0xff]
      %v1642 = vld [vmem:[%s1619 + $0x108] sm:$0xff]
      %v1643 = vld [vmem:[%s1619 + $0x110] sm:$0xff]
      %v1644 = vld [vmem:[%s1619 + $0x120] sm:$0xff]
      %v1645 = vld [vmem:[%s1619 + $0x128] sm:$0xff]
      %v1646 = vld [vmem:[%s1619 + $0x138] sm:$0xff]
      %v1647 = vld [vmem:[%s1619 + $0x140] sm:$0xff]
      %v1648 = vld [vmem:[%s1619 + $0x150] sm:$0xff]
      %v1649 = vld [vmem:[%s1619 + $0x158] sm:$0xff]
      %v1650 = vld [vmem:[%s1619 + $0x168] sm:$0xff]
      %v1651 = vld [vmem:[%s1619 + $0x170] sm:$0xff]
      %v1652 = vpack.c.bf16 %v1621, %v1620
      %v1653 = vpack.c.bf16 %v1623, %v1622
      %v1654 = vpack.c.bf16 %v1625, %v1624
      %v1655 = vpack.c.bf16 %v1627, %v1626
      %v1656 = vpack.c.bf16 %v1629, %v1628
      %v1657 = vpack.c.bf16 %v1631, %v1630
      %v1658 = vpack.c.bf16 %v1633, %v1632
      %v1659 = vpack.c.bf16 %v1635, %v1634
      %v1660 = vpack.c.bf16 %v1637, %v1636
      %v1661 = vpack.c.bf16 %v1639, %v1638
      %v1662 = vpack.c.bf16 %v1641, %v1640
      %v1663 = vpack.c.bf16 %v1643, %v1642
      %v1664 = vpack.c.bf16 %v1645, %v1644
      %v1665 = vpack.c.bf16 %v1647, %v1646
      %v1666 = vpack.c.bf16 %v1649, %v1648
      %v1667 = vpack.c.bf16 %v1651, %v1650
      %s1668 = scalar_lea.vmem %s1, 384
      %v1669 = vld [vmem:[%s1668] sm:$0xf]
      %v1670 = vld [vmem:[%s1668 + $0x4] sm:$0xf]
      %v1671 = vld [vmem:[%s1668 + $0x8] sm:$0xf]
      %v1672 = vld [vmem:[%s1668 + $0xc] sm:$0xf]
      %v1673 = vld [vmem:[%s1668 + $0x10] sm:$0xf]
      %v1674 = vld [vmem:[%s1668 + $0x14] sm:$0xf]
      %v1675 = vld [vmem:[%s1668 + $0x18] sm:$0xf]
      %v1676 = vld [vmem:[%s1668 + $0x1c] sm:$0xf]
      %v1677 = vld [vmem:[%s1668 + $0x20] sm:$0xf]
      %v1678 = vld [vmem:[%s1668 + $0x24] sm:$0xf]
      %v1679 = vld [vmem:[%s1668 + $0x28] sm:$0xf]
      %v1680 = vld [vmem:[%s1668 + $0x2c] sm:$0xf]
      %v1681 = vld [vmem:[%s1668 + $0x30] sm:$0xf]
      %v1682 = vld [vmem:[%s1668 + $0x34] sm:$0xf]
      %v1683 = vld [vmem:[%s1668 + $0x38] sm:$0xf]
      %v1684 = vld [vmem:[%s1668 + $0x3c] sm:$0xf]
      %v1701 = vunpack.c.l.b16 %v1669
      %v1702 = vunpack.c.l.b16 %v1670
      %v1703 = vunpack.c.l.b16 %v1671
      %v1704 = vunpack.c.l.b16 %v1672
      %v1705 = vunpack.c.l.b16 %v1673
      %v1706 = vunpack.c.l.b16 %v1674
      %v1707 = vunpack.c.l.b16 %v1675
      %v1708 = vunpack.c.l.b16 %v1676
      %v1709 = vunpack.c.l.b16 %v1677
      %v1710 = vunpack.c.l.b16 %v1678
      %v1711 = vunpack.c.l.b16 %v1679
      %v1712 = vunpack.c.l.b16 %v1680
      %v1713 = vunpack.c.l.b16 %v1681
      %v1714 = vunpack.c.l.b16 %v1682
      %v1715 = vunpack.c.l.b16 %v1683
      %v1716 = vunpack.c.l.b16 %v1684
      %v1717 = vpack.c.b16 %v1702, %v1701
      %v1718 = vpack.c.b16 %v1704, %v1703
      %v1719 = vpack.c.b16 %v1706, %v1705
      %v1720 = vpack.c.b16 %v1708, %v1707
      %v1721 = vpack.c.b16 %v1710, %v1709
      %v1722 = vpack.c.b16 %v1712, %v1711
      %v1723 = vpack.c.b16 %v1714, %v1713
      %v1724 = vpack.c.b16 %v1716, %v1715
      %1733 = vmatpush.bf16.msra.mxu0 %v1724
      %1734 = vmatpush.bf16.msra.mxu0 %v1723
      %1735 = vmatpush.bf16.msra.mxu0 %v1722
      %1736 = vmatpush.bf16.msra.mxu0 %v1721
      %1737 = vmatpush.bf16.msra.mxu0 %v1720
      %1738 = vmatpush.bf16.msra.mxu0 %v1719
      %1739 = vmatpush.bf16.msra.mxu0 %v1718
      %1740 = vmatpush.bf16.msra.mxu0 %v1717
      %1741 = vmatmul.bf16.gmra.mxu0 %v1652
      %v1742 = vpop.f32.mrf.mxu0
      %v1743 = vadd.f32 0.0, %v1742
      %v1744 = vpop.f32.mrf.mxu0
      %v1745 = vadd.f32 0.0, %v1744
      %1746 = vmatmul.bf16.gmra.mxu0 %v1653
      %v1747 = vpop.f32.mrf.mxu0
      %v1748 = vadd.f32 0.0, %v1747
      %v1749 = vpop.f32.mrf.mxu0
      %v1750 = vadd.f32 0.0, %v1749
      %1751 = vmatmul.bf16.gmra.mxu0 %v1654
      %v1752 = vpop.f32.mrf.mxu0
      %v1753 = vadd.f32 0.0, %v1752
      %v1754 = vpop.f32.mrf.mxu0
      %v1755 = vadd.f32 0.0, %v1754
      %1756 = vmatmul.bf16.gmra.mxu0 %v1655
      %v1757 = vpop.f32.mrf.mxu0
      %v1758 = vadd.f32 0.0, %v1757
      %v1759 = vpop.f32.mrf.mxu0
      %v1760 = vadd.f32 0.0, %v1759
      %1761 = vmatmul.bf16.gmra.mxu0 %v1656
      %v1762 = vpop.f32.mrf.mxu0
      %v1763 = vadd.f32 0.0, %v1762
      %v1764 = vpop.f32.mrf.mxu0
      %v1765 = vadd.f32 0.0, %v1764
      %1766 = vmatmul.bf16.gmra.mxu0 %v1657
      %v1767 = vpop.f32.mrf.mxu0
      %v1768 = vadd.f32 0.0, %v1767
      %v1769 = vpop.f32.mrf.mxu0
      %v1770 = vadd.f32 0.0, %v1769
      %1771 = vmatmul.bf16.gmra.mxu0 %v1658
      %v1772 = vpop.f32.mrf.mxu0
      %v1773 = vadd.f32 0.0, %v1772
      %v1774 = vpop.f32.mrf.mxu0
      %v1775 = vadd.f32 0.0, %v1774
      %1776 = vmatmul.bf16.gmra.mxu0 %v1659
      %v1777 = vpop.f32.mrf.mxu0
      %v1778 = vadd.f32 0.0, %v1777
      %v1779 = vpop.f32.mrf.mxu0
      %v1780 = vadd.f32 0.0, %v1779
      %1781 = vmatmul.bf16.gmra.mxu0 %v1660
      %v1782 = vpop.f32.mrf.mxu0
      %v1783 = vadd.f32 0.0, %v1782
      %v1784 = vpop.f32.mrf.mxu0
      %v1785 = vadd.f32 0.0, %v1784
      %1786 = vmatmul.bf16.gmra.mxu0 %v1661
      %v1787 = vpop.f32.mrf.mxu0
      %v1788 = vadd.f32 0.0, %v1787
      %v1789 = vpop.f32.mrf.mxu0
      %v1790 = vadd.f32 0.0, %v1789
      %1791 = vmatmul.bf16.gmra.mxu0 %v1662
      %v1792 = vpop.f32.mrf.mxu0
      %v1793 = vadd.f32 0.0, %v1792
      %v1794 = vpop.f32.mrf.mxu0
      %v1795 = vadd.f32 0.0, %v1794
      %1796 = vmatmul.bf16.gmra.mxu0 %v1663
      %v1797 = vpop.f32.mrf.mxu0
      %v1798 = vadd.f32 0.0, %v1797
      %v1799 = vpop.f32.mrf.mxu0
      %v1800 = vadd.f32 0.0, %v1799
      %1801 = vmatmul.bf16.gmra.mxu0 %v1664
      %v1802 = vpop.f32.mrf.mxu0
      %v1803 = vadd.f32 0.0, %v1802
      %v1804 = vpop.f32.mrf.mxu0
      %v1805 = vadd.f32 0.0, %v1804
      %1806 = vmatmul.bf16.gmra.mxu0 %v1665
      %v1807 = vpop.f32.mrf.mxu0
      %v1808 = vadd.f32 0.0, %v1807
      %v1809 = vpop.f32.mrf.mxu0
      %v1810 = vadd.f32 0.0, %v1809
      %1811 = vmatmul.bf16.gmra.mxu0 %v1666
      %v1812 = vpop.f32.mrf.mxu0
      %v1813 = vadd.f32 0.0, %v1812
      %v1814 = vpop.f32.mrf.mxu0
      %v1815 = vadd.f32 0.0, %v1814
      %1816 = vmatmul.bf16.gmra.mxu0 %v1667
      %v1817 = vpop.f32.mrf.mxu0
      %v1818 = vadd.f32 0.0, %v1817
      %v1819 = vpop.f32.mrf.mxu0
      %v1820 = vadd.f32 0.0, %v1819
      %1821 = vdwg.mxu0
      %v1822 = vadd.f32 %v1587, %v1743
      %v1823 = vadd.f32 %v1588, %v1745
      %v1824 = vadd.f32 %v1589, %v1748
      %v1825 = vadd.f32 %v1590, %v1750
      %v1826 = vadd.f32 %v1591, %v1753
      %v1827 = vadd.f32 %v1592, %v1755
      %v1828 = vadd.f32 %v1593, %v1758
      %v1829 = vadd.f32 %v1594, %v1760
      %v1830 = vadd.f32 %v1595, %v1763
      %v1831 = vadd.f32 %v1596, %v1765
      %v1832 = vadd.f32 %v1597, %v1768
      %v1833 = vadd.f32 %v1598, %v1770
      %v1834 = vadd.f32 %v1599, %v1773
      %v1835 = vadd.f32 %v1600, %v1775
      %v1836 = vadd.f32 %v1601, %v1778
      %v1837 = vadd.f32 %v1602, %v1780
      %v1838 = vadd.f32 %v1603, %v1783
      %v1839 = vadd.f32 %v1604, %v1785
      %v1840 = vadd.f32 %v1605, %v1788
      %v1841 = vadd.f32 %v1606, %v1790
      %v1842 = vadd.f32 %v1607, %v1793
      %v1843 = vadd.f32 %v1608, %v1795
      %v1844 = vadd.f32 %v1609, %v1798
      %v1845 = vadd.f32 %v1610, %v1800
      %v1846 = vadd.f32 %v1611, %v1803
      %v1847 = vadd.f32 %v1612, %v1805
      %v1848 = vadd.f32 %v1613, %v1808
      %v1849 = vadd.f32 %v1614, %v1810
      %v1850 = vadd.f32 %v1615, %v1813
      %v1851 = vadd.f32 %v1616, %v1815
      %v1852 = vadd.f32 %v1617, %v1818
      %v1853 = vadd.f32 %v1618, %v1820
      %v1854 = vld [vmem:[%s1619 + $0x1] sm:$0xff]
      %v1855 = vld [vmem:[%s1619 + $0x9] sm:$0xff]
      %v1856 = vld [vmem:[%s1619 + $0x19] sm:$0xff]
      %v1857 = vld [vmem:[%s1619 + $0x21] sm:$0xff]
      %v1858 = vld [vmem:[%s1619 + $0x31] sm:$0xff]
      %v1859 = vld [vmem:[%s1619 + $0x39] sm:$0xff]
      %v1860 = vld [vmem:[%s1619 + $0x49] sm:$0xff]
      %v1861 = vld [vmem:[%s1619 + $0x51] sm:$0xff]
      %v1862 = vld [vmem:[%s1619 + $0x61] sm:$0xff]
      %v1863 = vld [vmem:[%s1619 + $0x69] sm:$0xff]
      %v1864 = vld [vmem:[%s1619 + $0x79] sm:$0xff]
      %v1865 = vld [vmem:[%s1619 + $0x81] sm:$0xff]
      %v1866 = vld [vmem:[%s1619 + $0x91] sm:$0xff]
      %v1867 = vld [vmem:[%s1619 + $0x99] sm:$0xff]
      %v1868 = vld [vmem:[%s1619 + $0xa9] sm:$0xff]
      %v1869 = vld [vmem:[%s1619 + $0xb1] sm:$0xff]
      %v1870 = vld [vmem:[%s1619 + $0xc1] sm:$0xff]
      %v1871 = vld [vmem:[%s1619 + $0xc9] sm:$0xff]
      %v1872 = vld [vmem:[%s1619 + $0xd9] sm:$0xff]
      %v1873 = vld [vmem:[%s1619 + $0xe1] sm:$0xff]
      %v1874 = vld [vmem:[%s1619 + $0xf1] sm:$0xff]
      %v1875 = vld [vmem:[%s1619 + $0xf9] sm:$0xff]
      %v1876 = vld [vmem:[%s1619 + $0x109] sm:$0xff]
      %v1877 = vld [vmem:[%s1619 + $0x111] sm:$0xff]
      %v1878 = vld [vmem:[%s1619 + $0x121] sm:$0xff]
      %v1879 = vld [vmem:[%s1619 + $0x129] sm:$0xff]
      %v1880 = vld [vmem:[%s1619 + $0x139] sm:$0xff]
      %v1881 = vld [vmem:[%s1619 + $0x141] sm:$0xff]
      %v1882 = vld [vmem:[%s1619 + $0x151] sm:$0xff]
      %v1883 = vld [vmem:[%s1619 + $0x159] sm:$0xff]
      %v1884 = vld [vmem:[%s1619 + $0x169] sm:$0xff]
      %v1885 = vld [vmem:[%s1619 + $0x171] sm:$0xff]
      %v1886 = vpack.c.bf16 %v1855, %v1854
      %v1887 = vpack.c.bf16 %v1857, %v1856
      %v1888 = vpack.c.bf16 %v1859, %v1858
      %v1889 = vpack.c.bf16 %v1861, %v1860
      %v1890 = vpack.c.bf16 %v1863, %v1862
      %v1891 = vpack.c.bf16 %v1865, %v1864
      %v1892 = vpack.c.bf16 %v1867, %v1866
      %v1893 = vpack.c.bf16 %v1869, %v1868
      %v1894 = vpack.c.bf16 %v1871, %v1870
      %v1895 = vpack.c.bf16 %v1873, %v1872
      %v1896 = vpack.c.bf16 %v1875, %v1874
      %v1897 = vpack.c.bf16 %v1877, %v1876
      %v1898 = vpack.c.bf16 %v1879, %v1878
      %v1899 = vpack.c.bf16 %v1881, %v1880
      %v1900 = vpack.c.bf16 %v1883, %v1882
      %v1901 = vpack.c.bf16 %v1885, %v1884
      %s1902 = scalar_lea.vmem %s1, 448
      %v1903 = vld [vmem:[%s1902] sm:$0xf]
      %v1904 = vld [vmem:[%s1902 + $0x4] sm:$0xf]
      %v1905 = vld [vmem:[%s1902 + $0x8] sm:$0xf]
      %v1906 = vld [vmem:[%s1902 + $0xc] sm:$0xf]
      %v1907 = vld [vmem:[%s1902 + $0x10] sm:$0xf]
      %v1908 = vld [vmem:[%s1902 + $0x14] sm:$0xf]
      %v1909 = vld [vmem:[%s1902 + $0x18] sm:$0xf]
      %v1910 = vld [vmem:[%s1902 + $0x1c] sm:$0xf]
      %v1911 = vld [vmem:[%s1902 + $0x20] sm:$0xf]
      %v1912 = vld [vmem:[%s1902 + $0x24] sm:$0xf]
      %v1913 = vld [vmem:[%s1902 + $0x28] sm:$0xf]
      %v1914 = vld [vmem:[%s1902 + $0x2c] sm:$0xf]
      %v1915 = vld [vmem:[%s1902 + $0x30] sm:$0xf]
      %v1916 = vld [vmem:[%s1902 + $0x34] sm:$0xf]
      %v1917 = vld [vmem:[%s1902 + $0x38] sm:$0xf]
      %v1918 = vld [vmem:[%s1902 + $0x3c] sm:$0xf]
      %v1935 = vunpack.c.l.b16 %v1903
      %v1936 = vunpack.c.l.b16 %v1904
      %v1937 = vunpack.c.l.b16 %v1905
      %v1938 = vunpack.c.l.b16 %v1906
      %v1939 = vunpack.c.l.b16 %v1907
      %v1940 = vunpack.c.l.b16 %v1908
      %v1941 = vunpack.c.l.b16 %v1909
      %v1942 = vunpack.c.l.b16 %v1910
      %v1943 = vunpack.c.l.b16 %v1911
      %v1944 = vunpack.c.l.b16 %v1912
      %v1945 = vunpack.c.l.b16 %v1913
      %v1946 = vunpack.c.l.b16 %v1914
      %v1947 = vunpack.c.l.b16 %v1915
      %v1948 = vunpack.c.l.b16 %v1916
      %v1949 = vunpack.c.l.b16 %v1917
      %v1950 = vunpack.c.l.b16 %v1918
      %v1951 = vpack.c.b16 %v1936, %v1935
      %v1952 = vpack.c.b16 %v1938, %v1937
      %v1953 = vpack.c.b16 %v1940, %v1939
      %v1954 = vpack.c.b16 %v1942, %v1941
      %v1955 = vpack.c.b16 %v1944, %v1943
      %v1956 = vpack.c.b16 %v1946, %v1945
      %v1957 = vpack.c.b16 %v1948, %v1947
      %v1958 = vpack.c.b16 %v1950, %v1949
      %1967 = vmatpush.bf16.msra.mxu0 %v1958
      %1968 = vmatpush.bf16.msra.mxu0 %v1957
      %1969 = vmatpush.bf16.msra.mxu0 %v1956
      %1970 = vmatpush.bf16.msra.mxu0 %v1955
      %1971 = vmatpush.bf16.msra.mxu0 %v1954
      %1972 = vmatpush.bf16.msra.mxu0 %v1953
      %1973 = vmatpush.bf16.msra.mxu0 %v1952
      %1974 = vmatpush.bf16.msra.mxu0 %v1951
      %1975 = vmatmul.bf16.gmra.mxu0 %v1886
      %v1976 = vpop.f32.mrf.mxu0
      %v1977 = vadd.f32 0.0, %v1976
      %v1978 = vpop.f32.mrf.mxu0
      %v1979 = vadd.f32 0.0, %v1978
      %1980 = vmatmul.bf16.gmra.mxu0 %v1887
      %v1981 = vpop.f32.mrf.mxu0
      %v1982 = vadd.f32 0.0, %v1981
      %v1983 = vpop.f32.mrf.mxu0
      %v1984 = vadd.f32 0.0, %v1983
      %1985 = vmatmul.bf16.gmra.mxu0 %v1888
      %v1986 = vpop.f32.mrf.mxu0
      %v1987 = vadd.f32 0.0, %v1986
      %v1988 = vpop.f32.mrf.mxu0
      %v1989 = vadd.f32 0.0, %v1988
      %1990 = vmatmul.bf16.gmra.mxu0 %v1889
      %v1991 = vpop.f32.mrf.mxu0
      %v1992 = vadd.f32 0.0, %v1991
      %v1993 = vpop.f32.mrf.mxu0
      %v1994 = vadd.f32 0.0, %v1993
      %1995 = vmatmul.bf16.gmra.mxu0 %v1890
      %v1996 = vpop.f32.mrf.mxu0
      %v1997 = vadd.f32 0.0, %v1996
      %v1998 = vpop.f32.mrf.mxu0
      %v1999 = vadd.f32 0.0, %v1998
      %2000 = vmatmul.bf16.gmra.mxu0 %v1891
      %v2001 = vpop.f32.mrf.mxu0
      %v2002 = vadd.f32 0.0, %v2001
      %v2003 = vpop.f32.mrf.mxu0
      %v2004 = vadd.f32 0.0, %v2003
      %2005 = vmatmul.bf16.gmra.mxu0 %v1892
      %v2006 = vpop.f32.mrf.mxu0
      %v2007 = vadd.f32 0.0, %v2006
      %v2008 = vpop.f32.mrf.mxu0
      %v2009 = vadd.f32 0.0, %v2008
      %2010 = vmatmul.bf16.gmra.mxu0 %v1893
      %v2011 = vpop.f32.mrf.mxu0
      %v2012 = vadd.f32 0.0, %v2011
      %v2013 = vpop.f32.mrf.mxu0
      %v2014 = vadd.f32 0.0, %v2013
      %2015 = vmatmul.bf16.gmra.mxu0 %v1894
      %v2016 = vpop.f32.mrf.mxu0
      %v2017 = vadd.f32 0.0, %v2016
      %v2018 = vpop.f32.mrf.mxu0
      %v2019 = vadd.f32 0.0, %v2018
      %2020 = vmatmul.bf16.gmra.mxu0 %v1895
      %v2021 = vpop.f32.mrf.mxu0
      %v2022 = vadd.f32 0.0, %v2021
      %v2023 = vpop.f32.mrf.mxu0
      %v2024 = vadd.f32 0.0, %v2023
      %2025 = vmatmul.bf16.gmra.mxu0 %v1896
      %v2026 = vpop.f32.mrf.mxu0
      %v2027 = vadd.f32 0.0, %v2026
      %v2028 = vpop.f32.mrf.mxu0
      %v2029 = vadd.f32 0.0, %v2028
      %2030 = vmatmul.bf16.gmra.mxu0 %v1897
      %v2031 = vpop.f32.mrf.mxu0
      %v2032 = vadd.f32 0.0, %v2031
      %v2033 = vpop.f32.mrf.mxu0
      %v2034 = vadd.f32 0.0, %v2033
      %2035 = vmatmul.bf16.gmra.mxu0 %v1898
      %v2036 = vpop.f32.mrf.mxu0
      %v2037 = vadd.f32 0.0, %v2036
      %v2038 = vpop.f32.mrf.mxu0
      %v2039 = vadd.f32 0.0, %v2038
      %2040 = vmatmul.bf16.gmra.mxu0 %v1899
      %v2041 = vpop.f32.mrf.mxu0
      %v2042 = vadd.f32 0.0, %v2041
      %v2043 = vpop.f32.mrf.mxu0
      %v2044 = vadd.f32 0.0, %v2043
      %2045 = vmatmul.bf16.gmra.mxu0 %v1900
      %v2046 = vpop.f32.mrf.mxu0
      %v2047 = vadd.f32 0.0, %v2046
      %v2048 = vpop.f32.mrf.mxu0
      %v2049 = vadd.f32 0.0, %v2048
      %2050 = vmatmul.bf16.gmra.mxu0 %v1901
      %v2051 = vpop.f32.mrf.mxu0
      %v2052 = vadd.f32 0.0, %v2051
      %v2053 = vpop.f32.mrf.mxu0
      %v2054 = vadd.f32 0.0, %v2053
      %2055 = vdwg.mxu0
      %v2056 = vadd.f32 %v1822, %v1977
      %v2057 = vadd.f32 %v1823, %v1979
      %v2058 = vadd.f32 %v1824, %v1982
      %v2059 = vadd.f32 %v1825, %v1984
      %v2060 = vadd.f32 %v1826, %v1987
      %v2061 = vadd.f32 %v1827, %v1989
      %v2062 = vadd.f32 %v1828, %v1992
      %v2063 = vadd.f32 %v1829, %v1994
      %v2064 = vadd.f32 %v1830, %v1997
      %v2065 = vadd.f32 %v1831, %v1999
      %v2066 = vadd.f32 %v1832, %v2002
      %v2067 = vadd.f32 %v1833, %v2004
      %v2068 = vadd.f32 %v1834, %v2007
      %v2069 = vadd.f32 %v1835, %v2009
      %v2070 = vadd.f32 %v1836, %v2012
      %v2071 = vadd.f32 %v1837, %v2014
      %v2072 = vadd.f32 %v1838, %v2017
      %v2073 = vadd.f32 %v1839, %v2019
      %v2074 = vadd.f32 %v1840, %v2022
      %v2075 = vadd.f32 %v1841, %v2024
      %v2076 = vadd.f32 %v1842, %v2027
      %v2077 = vadd.f32 %v1843, %v2029
      %v2078 = vadd.f32 %v1844, %v2032
      %v2079 = vadd.f32 %v1845, %v2034
      %v2080 = vadd.f32 %v1846, %v2037
      %v2081 = vadd.f32 %v1847, %v2039
      %v2082 = vadd.f32 %v1848, %v2042
      %v2083 = vadd.f32 %v1849, %v2044
      %v2084 = vadd.f32 %v1850, %v2047
      %v2085 = vadd.f32 %v1851, %v2049
      %v2086 = vadd.f32 %v1852, %v2052
      %v2087 = vadd.f32 %v1853, %v2054
      %v2088 = vld [vmem:[%s1619 + $0x2] sm:$0xff]
      %v2089 = vld [vmem:[%s1619 + $0xa] sm:$0xff]
      %v2090 = vld [vmem:[%s1619 + $0x1a] sm:$0xff]
      %v2091 = vld [vmem:[%s1619 + $0x22] sm:$0xff]
      %v2092 = vld [vmem:[%s1619 + $0x32] sm:$0xff]
      %v2093 = vld [vmem:[%s1619 + $0x3a] sm:$0xff]
      %v2094 = vld [vmem:[%s1619 + $0x4a] sm:$0xff]
      %v2095 = vld [vmem:[%s1619 + $0x52] sm:$0xff]
      %v2096 = vld [vmem:[%s1619 + $0x62] sm:$0xff]
      %v2097 = vld [vmem:[%s1619 + $0x6a] sm:$0xff]
      %v2098 = vld [vmem:[%s1619 + $0x7a] sm:$0xff]
      %v2099 = vld [vmem:[%s1619 + $0x82] sm:$0xff]
      %v2100 = vld [vmem:[%s1619 + $0x92] sm:$0xff]
      %v2101 = vld [vmem:[%s1619 + $0x9a] sm:$0xff]
      %v2102 = vld [vmem:[%s1619 + $0xaa] sm:$0xff]
      %v2103 = vld [vmem:[%s1619 + $0xb2] sm:$0xff]
      %v2104 = vld [vmem:[%s1619 + $0xc2] sm:$0xff]
      %v2105 = vld [vmem:[%s1619 + $0xca] sm:$0xff]
      %v2106 = vld [vmem:[%s1619 + $0xda] sm:$0xff]
      %v2107 = vld [vmem:[%s1619 + $0xe2] sm:$0xff]
      %v2108 = vld [vmem:[%s1619 + $0xf2] sm:$0xff]
      %v2109 = vld [vmem:[%s1619 + $0xfa] sm:$0xff]
      %v2110 = vld [vmem:[%s1619 + $0x10a] sm:$0xff]
      %v2111 = vld [vmem:[%s1619 + $0x112] sm:$0xff]
      %v2112 = vld [vmem:[%s1619 + $0x122] sm:$0xff]
      %v2113 = vld [vmem:[%s1619 + $0x12a] sm:$0xff]
      %v2114 = vld [vmem:[%s1619 + $0x13a] sm:$0xff]
      %v2115 = vld [vmem:[%s1619 + $0x142] sm:$0xff]
      %v2116 = vld [vmem:[%s1619 + $0x152] sm:$0xff]
      %v2117 = vld [vmem:[%s1619 + $0x15a] sm:$0xff]
      %v2118 = vld [vmem:[%s1619 + $0x16a] sm:$0xff]
      %v2119 = vld [vmem:[%s1619 + $0x172] sm:$0xff]
      %v2120 = vpack.c.bf16 %v2089, %v2088
      %v2121 = vpack.c.bf16 %v2091, %v2090
      %v2122 = vpack.c.bf16 %v2093, %v2092
      %v2123 = vpack.c.bf16 %v2095, %v2094
      %v2124 = vpack.c.bf16 %v2097, %v2096
      %v2125 = vpack.c.bf16 %v2099, %v2098
      %v2126 = vpack.c.bf16 %v2101, %v2100
      %v2127 = vpack.c.bf16 %v2103, %v2102
      %v2128 = vpack.c.bf16 %v2105, %v2104
      %v2129 = vpack.c.bf16 %v2107, %v2106
      %v2130 = vpack.c.bf16 %v2109, %v2108
      %v2131 = vpack.c.bf16 %v2111, %v2110
      %v2132 = vpack.c.bf16 %v2113, %v2112
      %v2133 = vpack.c.bf16 %v2115, %v2114
      %v2134 = vpack.c.bf16 %v2117, %v2116
      %v2135 = vpack.c.bf16 %v2119, %v2118
      %s2136 = scalar_lea.vmem %s1, 512
      %v2137 = vld [vmem:[%s2136] sm:$0xf]
      %v2138 = vld [vmem:[%s2136 + $0x4] sm:$0xf]
      %v2139 = vld [vmem:[%s2136 + $0x8] sm:$0xf]
      %v2140 = vld [vmem:[%s2136 + $0xc] sm:$0xf]
      %v2141 = vld [vmem:[%s2136 + $0x10] sm:$0xf]
      %v2142 = vld [vmem:[%s2136 + $0x14] sm:$0xf]
      %v2143 = vld [vmem:[%s2136 + $0x18] sm:$0xf]
      %v2144 = vld [vmem:[%s2136 + $0x1c] sm:$0xf]
      %v2145 = vld [vmem:[%s2136 + $0x20] sm:$0xf]
      %v2146 = vld [vmem:[%s2136 + $0x24] sm:$0xf]
      %v2147 = vld [vmem:[%s2136 + $0x28] sm:$0xf]
      %v2148 = vld [vmem:[%s2136 + $0x2c] sm:$0xf]
      %v2149 = vld [vmem:[%s2136 + $0x30] sm:$0xf]
      %v2150 = vld [vmem:[%s2136 + $0x34] sm:$0xf]
      %v2151 = vld [vmem:[%s2136 + $0x38] sm:$0xf]
      %v2152 = vld [vmem:[%s2136 + $0x3c] sm:$0xf]
      %v2169 = vunpack.c.l.b16 %v2137
      %v2170 = vunpack.c.l.b16 %v2138
      %v2171 = vunpack.c.l.b16 %v2139
      %v2172 = vunpack.c.l.b16 %v2140
      %v2173 = vunpack.c.l.b16 %v2141
      %v2174 = vunpack.c.l.b16 %v2142
      %v2175 = vunpack.c.l.b16 %v2143
      %v2176 = vunpack.c.l.b16 %v2144
      %v2177 = vunpack.c.l.b16 %v2145
      %v2178 = vunpack.c.l.b16 %v2146
      %v2179 = vunpack.c.l.b16 %v2147
      %v2180 = vunpack.c.l.b16 %v2148
      %v2181 = vunpack.c.l.b16 %v2149
      %v2182 = vunpack.c.l.b16 %v2150
      %v2183 = vunpack.c.l.b16 %v2151
      %v2184 = vunpack.c.l.b16 %v2152
      %v2185 = vpack.c.b16 %v2170, %v2169
      %v2186 = vpack.c.b16 %v2172, %v2171
      %v2187 = vpack.c.b16 %v2174, %v2173
      %v2188 = vpack.c.b16 %v2176, %v2175
      %v2189 = vpack.c.b16 %v2178, %v2177
      %v2190 = vpack.c.b16 %v2180, %v2179
      %v2191 = vpack.c.b16 %v2182, %v2181
      %v2192 = vpack.c.b16 %v2184, %v2183
      %2201 = vmatpush.bf16.msra.mxu0 %v2192
      %2202 = vmatpush.bf16.msra.mxu0 %v2191
      %2203 = vmatpush.bf16.msra.mxu0 %v2190
      %2204 = vmatpush.bf16.msra.mxu0 %v2189
      %2205 = vmatpush.bf16.msra.mxu0 %v2188
      %2206 = vmatpush.bf16.msra.mxu0 %v2187
      %2207 = vmatpush.bf16.msra.mxu0 %v2186
      %2208 = vmatpush.bf16.msra.mxu0 %v2185
      %2209 = vmatmul.bf16.gmra.mxu0 %v2120
      %v2210 = vpop.f32.mrf.mxu0
      %v2211 = vadd.f32 0.0, %v2210
      %v2212 = vpop.f32.mrf.mxu0
      %v2213 = vadd.f32 0.0, %v2212
      %2214 = vmatmul.bf16.gmra.mxu0 %v2121
      %v2215 = vpop.f32.mrf.mxu0
      %v2216 = vadd.f32 0.0, %v2215
      %v2217 = vpop.f32.mrf.mxu0
      %v2218 = vadd.f32 0.0, %v2217
      %2219 = vmatmul.bf16.gmra.mxu0 %v2122
      %v2220 = vpop.f32.mrf.mxu0
      %v2221 = vadd.f32 0.0, %v2220
      %v2222 = vpop.f32.mrf.mxu0
      %v2223 = vadd.f32 0.0, %v2222
      %2224 = vmatmul.bf16.gmra.mxu0 %v2123
      %v2225 = vpop.f32.mrf.mxu0
      %v2226 = vadd.f32 0.0, %v2225
      %v2227 = vpop.f32.mrf.mxu0
      %v2228 = vadd.f32 0.0, %v2227
      %2229 = vmatmul.bf16.gmra.mxu0 %v2124
      %v2230 = vpop.f32.mrf.mxu0
      %v2231 = vadd.f32 0.0, %v2230
      %v2232 = vpop.f32.mrf.mxu0
      %v2233 = vadd.f32 0.0, %v2232
      %2234 = vmatmul.bf16.gmra.mxu0 %v2125
      %v2235 = vpop.f32.mrf.mxu0
      %v2236 = vadd.f32 0.0, %v2235
      %v2237 = vpop.f32.mrf.mxu0
      %v2238 = vadd.f32 0.0, %v2237
      %2239 = vmatmul.bf16.gmra.mxu0 %v2126
      %v2240 = vpop.f32.mrf.mxu0
      %v2241 = vadd.f32 0.0, %v2240
      %v2242 = vpop.f32.mrf.mxu0
      %v2243 = vadd.f32 0.0, %v2242
      %2244 = vmatmul.bf16.gmra.mxu0 %v2127
      %v2245 = vpop.f32.mrf.mxu0
      %v2246 = vadd.f32 0.0, %v2245
      %v2247 = vpop.f32.mrf.mxu0
      %v2248 = vadd.f32 0.0, %v2247
      %2249 = vmatmul.bf16.gmra.mxu0 %v2128
      %v2250 = vpop.f32.mrf.mxu0
      %v2251 = vadd.f32 0.0, %v2250
      %v2252 = vpop.f32.mrf.mxu0
      %v2253 = vadd.f32 0.0, %v2252
      %2254 = vmatmul.bf16.gmra.mxu0 %v2129
      %v2255 = vpop.f32.mrf.mxu0
      %v2256 = vadd.f32 0.0, %v2255
      %v2257 = vpop.f32.mrf.mxu0
      %v2258 = vadd.f32 0.0, %v2257
      %2259 = vmatmul.bf16.gmra.mxu0 %v2130
      %v2260 = vpop.f32.mrf.mxu0
      %v2261 = vadd.f32 0.0, %v2260
      %v2262 = vpop.f32.mrf.mxu0
      %v2263 = vadd.f32 0.0, %v2262
      %2264 = vmatmul.bf16.gmra.mxu0 %v2131
      %v2265 = vpop.f32.mrf.mxu0
      %v2266 = vadd.f32 0.0, %v2265
      %v2267 = vpop.f32.mrf.mxu0
      %v2268 = vadd.f32 0.0, %v2267
      %2269 = vmatmul.bf16.gmra.mxu0 %v2132
      %v2270 = vpop.f32.mrf.mxu0
      %v2271 = vadd.f32 0.0, %v2270
      %v2272 = vpop.f32.mrf.mxu0
      %v2273 = vadd.f32 0.0, %v2272
      %2274 = vmatmul.bf16.gmra.mxu0 %v2133
      %v2275 = vpop.f32.mrf.mxu0
      %v2276 = vadd.f32 0.0, %v2275
      %v2277 = vpop.f32.mrf.mxu0
      %v2278 = vadd.f32 0.0, %v2277
      %2279 = vmatmul.bf16.gmra.mxu0 %v2134
      %v2280 = vpop.f32.mrf.mxu0
      %v2281 = vadd.f32 0.0, %v2280
      %v2282 = vpop.f32.mrf.mxu0
      %v2283 = vadd.f32 0.0, %v2282
      %2284 = vmatmul.bf16.gmra.mxu0 %v2135
      %v2285 = vpop.f32.mrf.mxu0
      %v2286 = vadd.f32 0.0, %v2285
      %v2287 = vpop.f32.mrf.mxu0
      %v2288 = vadd.f32 0.0, %v2287
      %2289 = vdwg.mxu0
      %v2290 = vadd.f32 %v2056, %v2211
      %v2291 = vadd.f32 %v2057, %v2213
      %v2292 = vadd.f32 %v2058, %v2216
      %v2293 = vadd.f32 %v2059, %v2218
      %v2294 = vadd.f32 %v2060, %v2221
      %v2295 = vadd.f32 %v2061, %v2223
      %v2296 = vadd.f32 %v2062, %v2226
      %v2297 = vadd.f32 %v2063, %v2228
      %v2298 = vadd.f32 %v2064, %v2231
      %v2299 = vadd.f32 %v2065, %v2233
      %v2300 = vadd.f32 %v2066, %v2236
      %v2301 = vadd.f32 %v2067, %v2238
      %v2302 = vadd.f32 %v2068, %v2241
      %v2303 = vadd.f32 %v2069, %v2243
      %v2304 = vadd.f32 %v2070, %v2246
      %v2305 = vadd.f32 %v2071, %v2248
      %v2306 = vadd.f32 %v2072, %v2251
      %v2307 = vadd.f32 %v2073, %v2253
      %v2308 = vadd.f32 %v2074, %v2256
      %v2309 = vadd.f32 %v2075, %v2258
      %v2310 = vadd.f32 %v2076, %v2261
      %v2311 = vadd.f32 %v2077, %v2263
      %v2312 = vadd.f32 %v2078, %v2266
      %v2313 = vadd.f32 %v2079, %v2268
      %v2314 = vadd.f32 %v2080, %v2271
      %v2315 = vadd.f32 %v2081, %v2273
      %v2316 = vadd.f32 %v2082, %v2276
      %v2317 = vadd.f32 %v2083, %v2278
      %v2318 = vadd.f32 %v2084, %v2281
      %v2319 = vadd.f32 %v2085, %v2283
      %v2320 = vadd.f32 %v2086, %v2286
      %v2321 = vadd.f32 %v2087, %v2288
      %v2322 = vld [vmem:[%s2] sm:$0x1]
      %v2324 = vperm.slane %v2322, 0
      %v2326 = vmul.f32 %v2290, %v2324
      %v2327 = vmul.f32 %v2291, %v2324
      %v2328 = vmul.f32 %v2292, %v2324
      %v2329 = vmul.f32 %v2293, %v2324
      %v2330 = vmul.f32 %v2294, %v2324
      %v2331 = vmul.f32 %v2295, %v2324
      %v2332 = vmul.f32 %v2296, %v2324
      %v2333 = vmul.f32 %v2297, %v2324
      %v2334 = vmul.f32 %v2298, %v2324
      %v2335 = vmul.f32 %v2299, %v2324
      %v2336 = vmul.f32 %v2300, %v2324
      %v2337 = vmul.f32 %v2301, %v2324
      %v2338 = vmul.f32 %v2302, %v2324
      %v2339 = vmul.f32 %v2303, %v2324
      %v2340 = vmul.f32 %v2304, %v2324
      %v2341 = vmul.f32 %v2305, %v2324
      %v2342 = vmul.f32 %v2306, %v2324
      %v2343 = vmul.f32 %v2307, %v2324
      %v2344 = vmul.f32 %v2308, %v2324
      %v2345 = vmul.f32 %v2309, %v2324
      %v2346 = vmul.f32 %v2310, %v2324
      %v2347 = vmul.f32 %v2311, %v2324
      %v2348 = vmul.f32 %v2312, %v2324
      %v2349 = vmul.f32 %v2313, %v2324
      %v2350 = vmul.f32 %v2314, %v2324
      %v2351 = vmul.f32 %v2315, %v2324
      %v2352 = vmul.f32 %v2316, %v2324
      %v2353 = vmul.f32 %v2317, %v2324
      %v2354 = vmul.f32 %v2318, %v2324
      %v2355 = vmul.f32 %v2319, %v2324
      %v2356 = vmul.f32 %v2320, %v2324
      %v2357 = vmul.f32 %v2321, %v2324
      %v2358 = vld [vmem:[%s3] sm:$0x1]
      %v2360 = vperm.slane %v2358, 0
      %v2362 = vadd.f32 %v2326, %v2360
      %v2363 = vadd.f32 %v2327, %v2360
      %v2364 = vadd.f32 %v2328, %v2360
      %v2365 = vadd.f32 %v2329, %v2360
      %v2366 = vadd.f32 %v2330, %v2360
      %v2367 = vadd.f32 %v2331, %v2360
      %v2368 = vadd.f32 %v2332, %v2360
      %v2369 = vadd.f32 %v2333, %v2360
      %v2370 = vadd.f32 %v2334, %v2360
      %v2371 = vadd.f32 %v2335, %v2360
      %v2372 = vadd.f32 %v2336, %v2360
      %v2373 = vadd.f32 %v2337, %v2360
      %v2374 = vadd.f32 %v2338, %v2360
      %v2375 = vadd.f32 %v2339, %v2360
      %v2376 = vadd.f32 %v2340, %v2360
      %v2377 = vadd.f32 %v2341, %v2360
      %v2378 = vadd.f32 %v2342, %v2360
      %v2379 = vadd.f32 %v2343, %v2360
      %v2380 = vadd.f32 %v2344, %v2360
      %v2381 = vadd.f32 %v2345, %v2360
      %v2382 = vadd.f32 %v2346, %v2360
      %v2383 = vadd.f32 %v2347, %v2360
      %v2384 = vadd.f32 %v2348, %v2360
      %v2385 = vadd.f32 %v2349, %v2360
      %v2386 = vadd.f32 %v2350, %v2360
      %v2387 = vadd.f32 %v2351, %v2360
      %v2388 = vadd.f32 %v2352, %v2360
      %v2389 = vadd.f32 %v2353, %v2360
      %v2390 = vadd.f32 %v2354, %v2360
      %v2391 = vadd.f32 %v2355, %v2360
      %v2392 = vadd.f32 %v2356, %v2360
      %v2393 = vadd.f32 %v2357, %v2360
      %v2394 = vmax.f32 %v2362, 0.0
      %v2395 = vmax.f32 %v2363, 0.0
      %v2396 = vmax.f32 %v2364, 0.0
      %v2397 = vmax.f32 %v2365, 0.0
      %v2398 = vmax.f32 %v2366, 0.0
      %v2399 = vmax.f32 %v2367, 0.0
      %v2400 = vmax.f32 %v2368, 0.0
      %v2401 = vmax.f32 %v2369, 0.0
      %v2402 = vmax.f32 %v2370, 0.0
      %v2403 = vmax.f32 %v2371, 0.0
      %v2404 = vmax.f32 %v2372, 0.0
      %v2405 = vmax.f32 %v2373, 0.0
      %v2406 = vmax.f32 %v2374, 0.0
      %v2407 = vmax.f32 %v2375, 0.0
      %v2408 = vmax.f32 %v2376, 0.0
      %v2409 = vmax.f32 %v2377, 0.0
      %v2410 = vmax.f32 %v2378, 0.0
      %v2411 = vmax.f32 %v2379, 0.0
      %v2412 = vmax.f32 %v2380, 0.0
      %v2413 = vmax.f32 %v2381, 0.0
      %v2414 = vmax.f32 %v2382, 0.0
      %v2415 = vmax.f32 %v2383, 0.0
      %v2416 = vmax.f32 %v2384, 0.0
      %v2417 = vmax.f32 %v2385, 0.0
      %v2418 = vmax.f32 %v2386, 0.0
      %v2419 = vmax.f32 %v2387, 0.0
      %v2420 = vmax.f32 %v2388, 0.0
      %v2421 = vmax.f32 %v2389, 0.0
      %v2422 = vmax.f32 %v2390, 0.0
      %v2423 = vmax.f32 %v2391, 0.0
      %v2424 = vmax.f32 %v2392, 0.0
      %v2425 = vmax.f32 %v2393, 0.0
      %2426 = vst [vmem:[#allocation2] sm:$0xff] 0.0
      %2427 = vst [vmem:[#allocation2 + $0x8] sm:$0xff] 0.0
      %2428 = vst [vmem:[#allocation2 + $0x10] sm:$0x3] 0.0
      %2429 = vst [vmem:[#allocation2 + $0x18] sm:$0xff] 0.0
      %2430 = vst [vmem:[#allocation2 + $0x20] sm:$0xff] 0.0
      %2431 = vst [vmem:[#allocation2 + $0x28] sm:$0x3] 0.0
      %2432 = vst [vmem:[#allocation2 + $0x30] sm:$0xff] 0.0
      %2433 = vst [vmem:[#allocation2 + $0x38] sm:$0xff] 0.0
      %2434 = vst [vmem:[#allocation2 + $0x40] sm:$0x3] 0.0
      %2435 = vst [vmem:[#allocation2 + $0x48] sm:$0xff] 0.0
      %2436 = vst [vmem:[#allocation2 + $0x50] sm:$0xff] 0.0
      %2437 = vst [vmem:[#allocation2 + $0x58] sm:$0x3] 0.0
      %2438 = vst [vmem:[#allocation2 + $0x60] sm:$0xff] 0.0
      %2439 = vst [vmem:[#allocation2 + $0x68] sm:$0xff] 0.0
      %2440 = vst [vmem:[#allocation2 + $0x70] sm:$0x3] 0.0
      %2441 = vst [vmem:[#allocation2 + $0x78] sm:$0xff] 0.0
      %2442 = vst [vmem:[#allocation2 + $0x80] sm:$0xff] 0.0
      %2443 = vst [vmem:[#allocation2 + $0x88] sm:$0x3] 0.0
      %2444 = vst [vmem:[#allocation2 + $0x90] sm:$0xff] 0.0
      %2445 = vst [vmem:[#allocation2 + $0x98] sm:$0xff] 0.0
      %2446 = vst [vmem:[#allocation2 + $0xa0] sm:$0x3] 0.0
      %2447 = vst [vmem:[#allocation2 + $0xa8] sm:$0xff] 0.0
      %2448 = vst [vmem:[#allocation2 + $0xb0] sm:$0xff] 0.0
      %2449 = vst [vmem:[#allocation2 + $0xb8] sm:$0x3] 0.0
      %2450 = vst [vmem:[#allocation2 + $0xc0] sm:$0xff] 0.0
      %2451 = vst [vmem:[#allocation2 + $0xc8] sm:$0xff] 0.0
      %2452 = vst [vmem:[#allocation2 + $0xd0] sm:$0x3] 0.0
      %2453 = vst [vmem:[#allocation2 + $0xd8] sm:$0xff] 0.0
      %2454 = vst [vmem:[#allocation2 + $0xe0] sm:$0xff] 0.0
      %2455 = vst [vmem:[#allocation2 + $0xe8] sm:$0x3] 0.0
      %2456 = vst [vmem:[#allocation2 + $0xf0] sm:$0xff] 0.0
      %2457 = vst [vmem:[#allocation2 + $0xf8] sm:$0xff] 0.0
      %2458 = vst [vmem:[#allocation2 + $0x100] sm:$0x3] 0.0
      %2459 = vst [vmem:[#allocation2 + $0x108] sm:$0xff] 0.0
      %2460 = vst [vmem:[#allocation2 + $0x110] sm:$0xff] 0.0
      %2461 = vst [vmem:[#allocation2 + $0x118] sm:$0x3] 0.0
      %2462 = vst [vmem:[#allocation2 + $0x120] sm:$0xff] 0.0
      %2463 = vst [vmem:[#allocation2 + $0x128] sm:$0xff] 0.0
      %2464 = vst [vmem:[#allocation2 + $0x130] sm:$0x3] 0.0
      %2465 = vst [vmem:[#allocation2 + $0x138] sm:$0xff] 0.0
      %2466 = vst [vmem:[#allocation2 + $0x140] sm:$0xff] 0.0
      %2467 = vst [vmem:[#allocation2 + $0x148] sm:$0x3] 0.0
      %2468 = vst [vmem:[#allocation2 + $0x150] sm:$0xff] 0.0
      %2469 = vst [vmem:[#allocation2 + $0x158] sm:$0xff] 0.0
      %2470 = vst [vmem:[#allocation2 + $0x160] sm:$0x3] 0.0
      %2471 = vst [vmem:[#allocation2 + $0x168] sm:$0xff] 0.0
      %2472 = vst [vmem:[#allocation2 + $0x170] sm:$0xff] 0.0
      %2473 = vst [vmem:[#allocation2 + $0x178] sm:$0x3] 0.0
      %2474 = vst [vmem:[#allocation2 + $0x180] sm:$0xff] 0.0
      %2475 = vst [vmem:[#allocation2 + $0x188] sm:$0xff] 0.0
      %2476 = vst [vmem:[#allocation2 + $0x190] sm:$0x3] 0.0
      %2477 = vst [vmem:[#allocation2 + $0x198] sm:$0xff] 0.0
      %2478 = vst [vmem:[#allocation2 + $0x1a0] sm:$0xff] 0.0
      %2479 = vst [vmem:[#allocation2 + $0x1a8] sm:$0x3] 0.0
      %s2480 = scalar_lea.vmem [#allocation2], 24
      %2481 = vst [vmem:[%s2480 + $0x1] sm:$0xff] %v2394
      %2482 = vst [vmem:[%s2480 + $0x9] sm:$0xff] %v2395
      %2483 = vst [vmem:[%s2480 + $0x19] sm:$0xff] %v2396
      %2484 = vst [vmem:[%s2480 + $0x21] sm:$0xff] %v2397
      %2485 = vst [vmem:[%s2480 + $0x31] sm:$0xff] %v2398
      %2486 = vst [vmem:[%s2480 + $0x39] sm:$0xff] %v2399
      %2487 = vst [vmem:[%s2480 + $0x49] sm:$0xff] %v2400
      %2488 = vst [vmem:[%s2480 + $0x51] sm:$0xff] %v2401
      %2489 = vst [vmem:[%s2480 + $0x61] sm:$0xff] %v2402
      %2490 = vst [vmem:[%s2480 + $0x69] sm:$0xff] %v2403
      %2491 = vst [vmem:[%s2480 + $0x79] sm:$0xff] %v2404
      %2492 = vst [vmem:[%s2480 + $0x81] sm:$0xff] %v2405
      %2493 = vst [vmem:[%s2480 + $0x91] sm:$0xff] %v2406
      %2494 = vst [vmem:[%s2480 + $0x99] sm:$0xff] %v2407
      %2495 = vst [vmem:[%s2480 + $0xa9] sm:$0xff] %v2408
      %2496 = vst [vmem:[%s2480 + $0xb1] sm:$0xff] %v2409
      %2497 = vst [vmem:[%s2480 + $0xc1] sm:$0xff] %v2410
      %2498 = vst [vmem:[%s2480 + $0xc9] sm:$0xff] %v2411
      %2499 = vst [vmem:[%s2480 + $0xd9] sm:$0xff] %v2412
      %2500 = vst [vmem:[%s2480 + $0xe1] sm:$0xff] %v2413
      %2501 = vst [vmem:[%s2480 + $0xf1] sm:$0xff] %v2414
      %2502 = vst [vmem:[%s2480 + $0xf9] sm:$0xff] %v2415
      %2503 = vst [vmem:[%s2480 + $0x109] sm:$0xff] %v2416
      %2504 = vst [vmem:[%s2480 + $0x111] sm:$0xff] %v2417
      %2505 = vst [vmem:[%s2480 + $0x121] sm:$0xff] %v2418
      %2506 = vst [vmem:[%s2480 + $0x129] sm:$0xff] %v2419
      %2507 = vst [vmem:[%s2480 + $0x139] sm:$0xff] %v2420
      %2508 = vst [vmem:[%s2480 + $0x141] sm:$0xff] %v2421
      %2509 = vst [vmem:[%s2480 + $0x151] sm:$0xff] %v2422
      %2510 = vst [vmem:[%s2480 + $0x159] sm:$0xff] %v2423
      %2511 = vst [vmem:[%s2480 + $0x169] sm:$0xff] %v2424
      %2512 = vst [vmem:[%s2480 + $0x171] sm:$0xff] %v2425
      %v2513 = vld [vmem:[#allocation2] sm:$0xff]
      %v2514 = vld [vmem:[#allocation2 + $0x8] sm:$0xff]
      %v2515 = vld [vmem:[#allocation2 + $0x18] sm:$0xff]
      %v2516 = vld [vmem:[#allocation2 + $0x20] sm:$0xff]
      %v2517 = vld [vmem:[#allocation2 + $0x30] sm:$0xff]
      %v2518 = vld [vmem:[#allocation2 + $0x38] sm:$0xff]
      %v2519 = vld [vmem:[#allocation2 + $0x48] sm:$0xff]
      %v2520 = vld [vmem:[#allocation2 + $0x50] sm:$0xff]
      %v2521 = vld [vmem:[#allocation2 + $0x60] sm:$0xff]
      %v2522 = vld [vmem:[#allocation2 + $0x68] sm:$0xff]
      %v2523 = vld [vmem:[#allocation2 + $0x78] sm:$0xff]
      %v2524 = vld [vmem:[#allocation2 + $0x80] sm:$0xff]
      %v2525 = vld [vmem:[#allocation2 + $0x90] sm:$0xff]
      %v2526 = vld [vmem:[#allocation2 + $0x98] sm:$0xff]
      %v2527 = vld [vmem:[#allocation2 + $0xa8] sm:$0xff]
      %v2528 = vld [vmem:[#allocation2 + $0xb0] sm:$0xff]
      %v2529 = vld [vmem:[#allocation2 + $0xc0] sm:$0xff]
      %v2530 = vld [vmem:[#allocation2 + $0xc8] sm:$0xff]
      %v2531 = vld [vmem:[#allocation2 + $0xd8] sm:$0xff]
      %v2532 = vld [vmem:[#allocation2 + $0xe0] sm:$0xff]
      %v2533 = vld [vmem:[#allocation2 + $0xf0] sm:$0xff]
      %v2534 = vld [vmem:[#allocation2 + $0xf8] sm:$0xff]
      %v2535 = vld [vmem:[#allocation2 + $0x108] sm:$0xff]
      %v2536 = vld [vmem:[#allocation2 + $0x110] sm:$0xff]
      %v2537 = vld [vmem:[#allocation2 + $0x120] sm:$0xff]
      %v2538 = vld [vmem:[#allocation2 + $0x128] sm:$0xff]
      %v2539 = vld [vmem:[#allocation2 + $0x138] sm:$0xff]
      %v2540 = vld [vmem:[#allocation2 + $0x140] sm:$0xff]
      %v2541 = vld [vmem:[#allocation2 + $0x150] sm:$0xff]
      %v2542 = vld [vmem:[#allocation2 + $0x158] sm:$0xff]
      %v2543 = vld [vmem:[#allocation2 + $0x168] sm:$0xff]
      %v2544 = vld [vmem:[#allocation2 + $0x170] sm:$0xff]
      %v2545 = vpack.c.bf16 %v2514, %v2513
      %v2546 = vpack.c.bf16 %v2516, %v2515
      %v2547 = vpack.c.bf16 %v2518, %v2517
      %v2548 = vpack.c.bf16 %v2520, %v2519
      %v2549 = vpack.c.bf16 %v2522, %v2521
      %v2550 = vpack.c.bf16 %v2524, %v2523
      %v2551 = vpack.c.bf16 %v2526, %v2525
      %v2552 = vpack.c.bf16 %v2528, %v2527
      %v2553 = vpack.c.bf16 %v2530, %v2529
      %v2554 = vpack.c.bf16 %v2532, %v2531
      %v2555 = vpack.c.bf16 %v2534, %v2533
      %v2556 = vpack.c.bf16 %v2536, %v2535
      %v2557 = vpack.c.bf16 %v2538, %v2537
      %v2558 = vpack.c.bf16 %v2540, %v2539
      %v2559 = vpack.c.bf16 %v2542, %v2541
      %v2560 = vpack.c.bf16 %v2544, %v2543
      %v2561 = vld [vmem:[%s4] sm:$0xf]
      %v2562 = vld [vmem:[%s4 + $0x4] sm:$0xf]
      %v2563 = vld [vmem:[%s4 + $0x8] sm:$0xf]
      %v2564 = vld [vmem:[%s4 + $0xc] sm:$0xf]
      %v2565 = vld [vmem:[%s4 + $0x10] sm:$0xf]
      %v2566 = vld [vmem:[%s4 + $0x14] sm:$0xf]
      %v2567 = vld [vmem:[%s4 + $0x18] sm:$0xf]
      %v2568 = vld [vmem:[%s4 + $0x1c] sm:$0xf]
      %v2569 = vld [vmem:[%s4 + $0x20] sm:$0xf]
      %v2570 = vld [vmem:[%s4 + $0x24] sm:$0xf]
      %v2571 = vld [vmem:[%s4 + $0x28] sm:$0xf]
      %v2572 = vld [vmem:[%s4 + $0x2c] sm:$0xf]
      %v2573 = vld [vmem:[%s4 + $0x30] sm:$0xf]
      %v2574 = vld [vmem:[%s4 + $0x34] sm:$0xf]
      %v2575 = vld [vmem:[%s4 + $0x38] sm:$0xf]
      %v2576 = vld [vmem:[%s4 + $0x3c] sm:$0xf]
      %v2577 = vld [vmem:[#allocation2 + $0x1] sm:$0xff]
      %v2578 = vld [vmem:[#allocation2 + $0x9] sm:$0xff]
      %v2579 = vld [vmem:[#allocation2 + $0x19] sm:$0xff]
      %v2580 = vld [vmem:[#allocation2 + $0x21] sm:$0xff]
      %v2581 = vld [vmem:[#allocation2 + $0x31] sm:$0xff]
      %v2582 = vld [vmem:[#allocation2 + $0x39] sm:$0xff]
      %v2583 = vld [vmem:[#allocation2 + $0x49] sm:$0xff]
      %v2584 = vld [vmem:[#allocation2 + $0x51] sm:$0xff]
      %v2585 = vld [vmem:[#allocation2 + $0x61] sm:$0xff]
      %v2586 = vld [vmem:[#allocation2 + $0x69] sm:$0xff]
      %v2587 = vld [vmem:[#allocation2 + $0x79] sm:$0xff]
      %v2588 = vld [vmem:[#allocation2 + $0x81] sm:$0xff]
      %v2589 = vld [vmem:[#allocation2 + $0x91] sm:$0xff]
      %v2590 = vld [vmem:[#allocation2 + $0x99] sm:$0xff]
      %v2591 = vld [vmem:[#allocation2 + $0xa9] sm:$0xff]
      %v2592 = vld [vmem:[#allocation2 + $0xb1] sm:$0xff]
      %v2593 = vld [vmem:[#allocation2 + $0xc1] sm:$0xff]
      %v2594 = vld [vmem:[#allocation2 + $0xc9] sm:$0xff]
      %v2595 = vld [vmem:[#allocation2 + $0xd9] sm:$0xff]
      %v2596 = vld [vmem:[#allocation2 + $0xe1] sm:$0xff]
      %v2597 = vld [vmem:[#allocation2 + $0xf1] sm:$0xff]
      %v2598 = vld [vmem:[#allocation2 + $0xf9] sm:$0xff]
      %v2599 = vld [vmem:[#allocation2 + $0x109] sm:$0xff]
      %v2600 = vld [vmem:[#allocation2 + $0x111] sm:$0xff]
      %v2601 = vld [vmem:[#allocation2 + $0x121] sm:$0xff]
      %v2602 = vld [vmem:[#allocation2 + $0x129] sm:$0xff]
      %v2603 = vld [vmem:[#allocation2 + $0x139] sm:$0xff]
      %v2604 = vld [vmem:[#allocation2 + $0x141] sm:$0xff]
      %v2605 = vld [vmem:[#allocation2 + $0x151] sm:$0xff]
      %v2606 = vld [vmem:[#allocation2 + $0x159] sm:$0xff]
      %v2607 = vld [vmem:[#allocation2 + $0x169] sm:$0xff]
      %v2608 = vld [vmem:[#allocation2 + $0x171] sm:$0xff]
      %v2609 = vpack.c.bf16 %v2578, %v2577
      %v2610 = vpack.c.bf16 %v2580, %v2579
      %v2611 = vpack.c.bf16 %v2582, %v2581
      %v2612 = vpack.c.bf16 %v2584, %v2583
      %v2613 = vpack.c.bf16 %v2586, %v2585
      %v2614 = vpack.c.bf16 %v2588, %v2587
      %v2615 = vpack.c.bf16 %v2590, %v2589
      %v2616 = vpack.c.bf16 %v2592, %v2591
      %v2617 = vpack.c.bf16 %v2594, %v2593
      %v2618 = vpack.c.bf16 %v2596, %v2595
      %v2619 = vpack.c.bf16 %v2598, %v2597
      %v2620 = vpack.c.bf16 %v2600, %v2599
      %v2621 = vpack.c.bf16 %v2602, %v2601
      %v2622 = vpack.c.bf16 %v2604, %v2603
      %v2623 = vpack.c.bf16 %v2606, %v2605
      %v2624 = vpack.c.bf16 %v2608, %v2607
      %s2625 = scalar_lea.vmem %s4, 64
      %v2626 = vld [vmem:[%s2625] sm:$0xf]
      %v2627 = vld [vmem:[%s2625 + $0x4] sm:$0xf]
      %v2628 = vld [vmem:[%s2625 + $0x8] sm:$0xf]
      %v2629 = vld [vmem:[%s2625 + $0xc] sm:$0xf]
      %v2630 = vld [vmem:[%s2625 + $0x10] sm:$0xf]
      %v2631 = vld [vmem:[%s2625 + $0x14] sm:$0xf]
      %v2632 = vld [vmem:[%s2625 + $0x18] sm:$0xf]
      %v2633 = vld [vmem:[%s2625 + $0x1c] sm:$0xf]
      %v2634 = vld [vmem:[%s2625 + $0x20] sm:$0xf]
      %v2635 = vld [vmem:[%s2625 + $0x24] sm:$0xf]
      %v2636 = vld [vmem:[%s2625 + $0x28] sm:$0xf]
      %v2637 = vld [vmem:[%s2625 + $0x2c] sm:$0xf]
      %v2638 = vld [vmem:[%s2625 + $0x30] sm:$0xf]
      %v2639 = vld [vmem:[%s2625 + $0x34] sm:$0xf]
      %v2640 = vld [vmem:[%s2625 + $0x38] sm:$0xf]
      %v2641 = vld [vmem:[%s2625 + $0x3c] sm:$0xf]
      %v2658 = vunpack.c.l.b16 %v2626
      %v2659 = vunpack.c.l.b16 %v2627
      %v2660 = vunpack.c.l.b16 %v2628
      %v2661 = vunpack.c.l.b16 %v2629
      %v2662 = vunpack.c.l.b16 %v2630
      %v2663 = vunpack.c.l.b16 %v2631
      %v2664 = vunpack.c.l.b16 %v2632
      %v2665 = vunpack.c.l.b16 %v2633
      %v2666 = vunpack.c.l.b16 %v2634
      %v2667 = vunpack.c.l.b16 %v2635
      %v2668 = vunpack.c.l.b16 %v2636
      %v2669 = vunpack.c.l.b16 %v2637
      %v2670 = vunpack.c.l.b16 %v2638
      %v2671 = vunpack.c.l.b16 %v2639
      %v2672 = vunpack.c.l.b16 %v2640
      %v2673 = vunpack.c.l.b16 %v2641
      %v2674 = vpack.c.b16 %v2659, %v2658
      %v2675 = vpack.c.b16 %v2661, %v2660
      %v2676 = vpack.c.b16 %v2663, %v2662
      %v2677 = vpack.c.b16 %v2665, %v2664
      %v2678 = vpack.c.b16 %v2667, %v2666
      %v2679 = vpack.c.b16 %v2669, %v2668
      %v2680 = vpack.c.b16 %v2671, %v2670
      %v2681 = vpack.c.b16 %v2673, %v2672
      %2690 = vmatpush.bf16.msra.mxu0 %v2681
      %2691 = vmatpush.bf16.msra.mxu0 %v2680
      %2692 = vmatpush.bf16.msra.mxu0 %v2679
      %2693 = vmatpush.bf16.msra.mxu0 %v2678
      %2694 = vmatpush.bf16.msra.mxu0 %v2677
      %2695 = vmatpush.bf16.msra.mxu0 %v2676
      %2696 = vmatpush.bf16.msra.mxu0 %v2675
      %2697 = vmatpush.bf16.msra.mxu0 %v2674
      %2698 = vmatmul.bf16.gmra.mxu0 %v2609
      %v2699 = vpop.f32.mrf.mxu0
      %v2700 = vadd.f32 0.0, %v2699
      %v2701 = vpop.f32.mrf.mxu0
      %v2702 = vadd.f32 0.0, %v2701
      %2703 = vmatmul.bf16.gmra.mxu0 %v2610
      %v2704 = vpop.f32.mrf.mxu0
      %v2705 = vadd.f32 0.0, %v2704
      %v2706 = vpop.f32.mrf.mxu0
      %v2707 = vadd.f32 0.0, %v2706
      %2708 = vmatmul.bf16.gmra.mxu0 %v2611
      %v2709 = vpop.f32.mrf.mxu0
      %v2710 = vadd.f32 0.0, %v2709
      %v2711 = vpop.f32.mrf.mxu0
      %v2712 = vadd.f32 0.0, %v2711
      %2713 = vmatmul.bf16.gmra.mxu0 %v2612
      %v2714 = vpop.f32.mrf.mxu0
      %v2715 = vadd.f32 0.0, %v2714
      %v2716 = vpop.f32.mrf.mxu0
      %v2717 = vadd.f32 0.0, %v2716
      %2718 = vmatmul.bf16.gmra.mxu0 %v2613
      %v2719 = vpop.f32.mrf.mxu0
      %v2720 = vadd.f32 0.0, %v2719
      %v2721 = vpop.f32.mrf.mxu0
      %v2722 = vadd.f32 0.0, %v2721
      %2723 = vmatmul.bf16.gmra.mxu0 %v2614
      %v2724 = vpop.f32.mrf.mxu0
      %v2725 = vadd.f32 0.0, %v2724
      %v2726 = vpop.f32.mrf.mxu0
      %v2727 = vadd.f32 0.0, %v2726
      %2728 = vmatmul.bf16.gmra.mxu0 %v2615
      %v2729 = vpop.f32.mrf.mxu0
      %v2730 = vadd.f32 0.0, %v2729
      %v2731 = vpop.f32.mrf.mxu0
      %v2732 = vadd.f32 0.0, %v2731
      %2733 = vmatmul.bf16.gmra.mxu0 %v2616
      %v2734 = vpop.f32.mrf.mxu0
      %v2735 = vadd.f32 0.0, %v2734
      %v2736 = vpop.f32.mrf.mxu0
      %v2737 = vadd.f32 0.0, %v2736
      %2738 = vmatmul.bf16.gmra.mxu0 %v2617
      %v2739 = vpop.f32.mrf.mxu0
      %v2740 = vadd.f32 0.0, %v2739
      %v2741 = vpop.f32.mrf.mxu0
      %v2742 = vadd.f32 0.0, %v2741
      %2743 = vmatmul.bf16.gmra.mxu0 %v2618
      %v2744 = vpop.f32.mrf.mxu0
      %v2745 = vadd.f32 0.0, %v2744
      %v2746 = vpop.f32.mrf.mxu0
      %v2747 = vadd.f32 0.0, %v2746
      %2748 = vmatmul.bf16.gmra.mxu0 %v2619
      %v2749 = vpop.f32.mrf.mxu0
      %v2750 = vadd.f32 0.0, %v2749
      %v2751 = vpop.f32.mrf.mxu0
      %v2752 = vadd.f32 0.0, %v2751
      %2753 = vmatmul.bf16.gmra.mxu0 %v2620
      %v2754 = vpop.f32.mrf.mxu0
      %v2755 = vadd.f32 0.0, %v2754
      %v2756 = vpop.f32.mrf.mxu0
      %v2757 = vadd.f32 0.0, %v2756
      %2758 = vmatmul.bf16.gmra.mxu0 %v2621
      %v2759 = vpop.f32.mrf.mxu0
      %v2760 = vadd.f32 0.0, %v2759
      %v2761 = vpop.f32.mrf.mxu0
      %v2762 = vadd.f32 0.0, %v2761
      %2763 = vmatmul.bf16.gmra.mxu0 %v2622
      %v2764 = vpop.f32.mrf.mxu0
      %v2765 = vadd.f32 0.0, %v2764
      %v2766 = vpop.f32.mrf.mxu0
      %v2767 = vadd.f32 0.0, %v2766
      %2768 = vmatmul.bf16.gmra.mxu0 %v2623
      %v2769 = vpop.f32.mrf.mxu0
      %v2770 = vadd.f32 0.0, %v2769
      %v2771 = vpop.f32.mrf.mxu0
      %v2772 = vadd.f32 0.0, %v2771
      %2773 = vmatmul.bf16.gmra.mxu0 %v2624
      %v2774 = vpop.f32.mrf.mxu0
      %v2775 = vadd.f32 0.0, %v2774
      %v2776 = vpop.f32.mrf.mxu0
      %v2777 = vadd.f32 0.0, %v2776
      %2778 = vdwg.mxu0
      %v2795 = vunpack.c.l.b16 %v2561
      %v2796 = vunpack.c.l.b16 %v2562
      %v2797 = vunpack.c.l.b16 %v2563
      %v2798 = vunpack.c.l.b16 %v2564
      %v2799 = vunpack.c.l.b16 %v2565
      %v2800 = vunpack.c.l.b16 %v2566
      %v2801 = vunpack.c.l.b16 %v2567
      %v2802 = vunpack.c.l.b16 %v2568
      %v2803 = vunpack.c.l.b16 %v2569
      %v2804 = vunpack.c.l.b16 %v2570
      %v2805 = vunpack.c.l.b16 %v2571
      %v2806 = vunpack.c.l.b16 %v2572
      %v2807 = vunpack.c.l.b16 %v2573
      %v2808 = vunpack.c.l.b16 %v2574
      %v2809 = vunpack.c.l.b16 %v2575
      %v2810 = vunpack.c.l.b16 %v2576
      %v2811 = vpack.c.b16 %v2796, %v2795
      %v2812 = vpack.c.b16 %v2798, %v2797
      %v2813 = vpack.c.b16 %v2800, %v2799
      %v2814 = vpack.c.b16 %v2802, %v2801
      %v2815 = vpack.c.b16 %v2804, %v2803
      %v2816 = vpack.c.b16 %v2806, %v2805
      %v2817 = vpack.c.b16 %v2808, %v2807
      %v2818 = vpack.c.b16 %v2810, %v2809
      %2827 = vmatpush.bf16.msra.mxu0 %v2818
      %2828 = vmatpush.bf16.msra.mxu0 %v2817
      %2829 = vmatpush.bf16.msra.mxu0 %v2816
      %2830 = vmatpush.bf16.msra.mxu0 %v2815
      %2831 = vmatpush.bf16.msra.mxu0 %v2814
      %2832 = vmatpush.bf16.msra.mxu0 %v2813
      %2833 = vmatpush.bf16.msra.mxu0 %v2812
      %2834 = vmatpush.bf16.msra.mxu0 %v2811
      %2835 = vmatmul.bf16.gmra.mxu0 %v2545
      %v2836 = vpop.f32.mrf.mxu0
      %v2837 = vadd.f32 %v2700, %v2836
      %v2838 = vpop.f32.mrf.mxu0
      %v2839 = vadd.f32 %v2702, %v2838
      %2840 = vmatmul.bf16.gmra.mxu0 %v2546
      %v2841 = vpop.f32.mrf.mxu0
      %v2842 = vadd.f32 %v2705, %v2841
      %v2843 = vpop.f32.mrf.mxu0
      %v2844 = vadd.f32 %v2707, %v2843
      %2845 = vmatmul.bf16.gmra.mxu0 %v2547
      %v2846 = vpop.f32.mrf.mxu0
      %v2847 = vadd.f32 %v2710, %v2846
      %v2848 = vpop.f32.mrf.mxu0
      %v2849 = vadd.f32 %v2712, %v2848
      %2850 = vmatmul.bf16.gmra.mxu0 %v2548
      %v2851 = vpop.f32.mrf.mxu0
      %v2852 = vadd.f32 %v2715, %v2851
      %v2853 = vpop.f32.mrf.mxu0
      %v2854 = vadd.f32 %v2717, %v2853
      %2855 = vmatmul.bf16.gmra.mxu0 %v2549
      %v2856 = vpop.f32.mrf.mxu0
      %v2857 = vadd.f32 %v2720, %v2856
      %v2858 = vpop.f32.mrf.mxu0
      %v2859 = vadd.f32 %v2722, %v2858
      %2860 = vmatmul.bf16.gmra.mxu0 %v2550
      %v2861 = vpop.f32.mrf.mxu0
      %v2862 = vadd.f32 %v2725, %v2861
      %v2863 = vpop.f32.mrf.mxu0
      %v2864 = vadd.f32 %v2727, %v2863
      %2865 = vmatmul.bf16.gmra.mxu0 %v2551
      %v2866 = vpop.f32.mrf.mxu0
      %v2867 = vadd.f32 %v2730, %v2866
      %v2868 = vpop.f32.mrf.mxu0
      %v2869 = vadd.f32 %v2732, %v2868
      %2870 = vmatmul.bf16.gmra.mxu0 %v2552
      %v2871 = vpop.f32.mrf.mxu0
      %v2872 = vadd.f32 %v2735, %v2871
      %v2873 = vpop.f32.mrf.mxu0
      %v2874 = vadd.f32 %v2737, %v2873
      %2875 = vmatmul.bf16.gmra.mxu0 %v2553
      %v2876 = vpop.f32.mrf.mxu0
      %v2877 = vadd.f32 %v2740, %v2876
      %v2878 = vpop.f32.mrf.mxu0
      %v2879 = vadd.f32 %v2742, %v2878
      %2880 = vmatmul.bf16.gmra.mxu0 %v2554
      %v2881 = vpop.f32.mrf.mxu0
      %v2882 = vadd.f32 %v2745, %v2881
      %v2883 = vpop.f32.mrf.mxu0
      %v2884 = vadd.f32 %v2747, %v2883
      %2885 = vmatmul.bf16.gmra.mxu0 %v2555
      %v2886 = vpop.f32.mrf.mxu0
      %v2887 = vadd.f32 %v2750, %v2886
      %v2888 = vpop.f32.mrf.mxu0
      %v2889 = vadd.f32 %v2752, %v2888
      %2890 = vmatmul.bf16.gmra.mxu0 %v2556
      %v2891 = vpop.f32.mrf.mxu0
      %v2892 = vadd.f32 %v2755, %v2891
      %v2893 = vpop.f32.mrf.mxu0
      %v2894 = vadd.f32 %v2757, %v2893
      %2895 = vmatmul.bf16.gmra.mxu0 %v2557
      %v2896 = vpop.f32.mrf.mxu0
      %v2897 = vadd.f32 %v2760, %v2896
      %v2898 = vpop.f32.mrf.mxu0
      %v2899 = vadd.f32 %v2762, %v2898
      %2900 = vmatmul.bf16.gmra.mxu0 %v2558
      %v2901 = vpop.f32.mrf.mxu0
      %v2902 = vadd.f32 %v2765, %v2901
      %v2903 = vpop.f32.mrf.mxu0
      %v2904 = vadd.f32 %v2767, %v2903
      %2905 = vmatmul.bf16.gmra.mxu0 %v2559
      %v2906 = vpop.f32.mrf.mxu0
      %v2907 = vadd.f32 %v2770, %v2906
      %v2908 = vpop.f32.mrf.mxu0
      %v2909 = vadd.f32 %v2772, %v2908
      %2910 = vmatmul.bf16.gmra.mxu0 %v2560
      %v2911 = vpop.f32.mrf.mxu0
      %v2912 = vadd.f32 %v2775, %v2911
      %v2913 = vpop.f32.mrf.mxu0
      %v2914 = vadd.f32 %v2777, %v2913
      %2915 = vdwg.mxu0
      %v2916 = vld [vmem:[#allocation2 + $0x2] sm:$0xff]
      %v2917 = vld [vmem:[#allocation2 + $0xa] sm:$0xff]
      %v2918 = vld [vmem:[#allocation2 + $0x1a] sm:$0xff]
      %v2919 = vld [vmem:[#allocation2 + $0x22] sm:$0xff]
      %v2920 = vld [vmem:[#allocation2 + $0x32] sm:$0xff]
      %v2921 = vld [vmem:[#allocation2 + $0x3a] sm:$0xff]
      %v2922 = vld [vmem:[#allocation2 + $0x4a] sm:$0xff]
      %v2923 = vld [vmem:[#allocation2 + $0x52] sm:$0xff]
      %v2924 = vld [vmem:[#allocation2 + $0x62] sm:$0xff]
      %v2925 = vld [vmem:[#allocation2 + $0x6a] sm:$0xff]
      %v2926 = vld [vmem:[#allocation2 + $0x7a] sm:$0xff]
      %v2927 = vld [vmem:[#allocation2 + $0x82] sm:$0xff]
      %v2928 = vld [vmem:[#allocation2 + $0x92] sm:$0xff]
      %v2929 = vld [vmem:[#allocation2 + $0x9a] sm:$0xff]
      %v2930 = vld [vmem:[#allocation2 + $0xaa] sm:$0xff]
      %v2931 = vld [vmem:[#allocation2 + $0xb2] sm:$0xff]
      %v2932 = vld [vmem:[#allocation2 + $0xc2] sm:$0xff]
      %v2933 = vld [vmem:[#allocation2 + $0xca] sm:$0xff]
      %v2934 = vld [vmem:[#allocation2 + $0xda] sm:$0xff]
      %v2935 = vld [vmem:[#allocation2 + $0xe2] sm:$0xff]
      %v2936 = vld [vmem:[#allocation2 + $0xf2] sm:$0xff]
      %v2937 = vld [vmem:[#allocation2 + $0xfa] sm:$0xff]
      %v2938 = vld [vmem:[#allocation2 + $0x10a] sm:$0xff]
      %v2939 = vld [vmem:[#allocation2 + $0x112] sm:$0xff]
      %v2940 = vld [vmem:[#allocation2 + $0x122] sm:$0xff]
      %v2941 = vld [vmem:[#allocation2 + $0x12a] sm:$0xff]
      %v2942 = vld [vmem:[#allocation2 + $0x13a] sm:$0xff]
      %v2943 = vld [vmem:[#allocation2 + $0x142] sm:$0xff]
      %v2944 = vld [vmem:[#allocation2 + $0x152] sm:$0xff]
      %v2945 = vld [vmem:[#allocation2 + $0x15a] sm:$0xff]
      %v2946 = vld [vmem:[#allocation2 + $0x16a] sm:$0xff]
      %v2947 = vld [vmem:[#allocation2 + $0x172] sm:$0xff]
      %v2948 = vpack.c.bf16 %v2917, %v2916
      %v2949 = vpack.c.bf16 %v2919, %v2918
      %v2950 = vpack.c.bf16 %v2921, %v2920
      %v2951 = vpack.c.bf16 %v2923, %v2922
      %v2952 = vpack.c.bf16 %v2925, %v2924
      %v2953 = vpack.c.bf16 %v2927, %v2926
      %v2954 = vpack.c.bf16 %v2929, %v2928
      %v2955 = vpack.c.bf16 %v2931, %v2930
      %v2956 = vpack.c.bf16 %v2933, %v2932
      %v2957 = vpack.c.bf16 %v2935, %v2934
      %v2958 = vpack.c.bf16 %v2937, %v2936
      %v2959 = vpack.c.bf16 %v2939, %v2938
      %v2960 = vpack.c.bf16 %v2941, %v2940
      %v2961 = vpack.c.bf16 %v2943, %v2942
      %v2962 = vpack.c.bf16 %v2945, %v2944
      %v2963 = vpack.c.bf16 %v2947, %v2946
      %s2964 = scalar_lea.vmem %s4, 128
      %v2965 = vld [vmem:[%s2964] sm:$0xf]
      %v2966 = vld [vmem:[%s2964 + $0x4] sm:$0xf]
      %v2967 = vld [vmem:[%s2964 + $0x8] sm:$0xf]
      %v2968 = vld [vmem:[%s2964 + $0xc] sm:$0xf]
      %v2969 = vld [vmem:[%s2964 + $0x10] sm:$0xf]
      %v2970 = vld [vmem:[%s2964 + $0x14] sm:$0xf]
      %v2971 = vld [vmem:[%s2964 + $0x18] sm:$0xf]
      %v2972 = vld [vmem:[%s2964 + $0x1c] sm:$0xf]
      %v2973 = vld [vmem:[%s2964 + $0x20] sm:$0xf]
      %v2974 = vld [vmem:[%s2964 + $0x24] sm:$0xf]
      %v2975 = vld [vmem:[%s2964 + $0x28] sm:$0xf]
      %v2976 = vld [vmem:[%s2964 + $0x2c] sm:$0xf]
      %v2977 = vld [vmem:[%s2964 + $0x30] sm:$0xf]
      %v2978 = vld [vmem:[%s2964 + $0x34] sm:$0xf]
      %v2979 = vld [vmem:[%s2964 + $0x38] sm:$0xf]
      %v2980 = vld [vmem:[%s2964 + $0x3c] sm:$0xf]
      %v2997 = vunpack.c.l.b16 %v2965
      %v2998 = vunpack.c.l.b16 %v2966
      %v2999 = vunpack.c.l.b16 %v2967
      %v3000 = vunpack.c.l.b16 %v2968
      %v3001 = vunpack.c.l.b16 %v2969
      %v3002 = vunpack.c.l.b16 %v2970
      %v3003 = vunpack.c.l.b16 %v2971
      %v3004 = vunpack.c.l.b16 %v2972
      %v3005 = vunpack.c.l.b16 %v2973
      %v3006 = vunpack.c.l.b16 %v2974
      %v3007 = vunpack.c.l.b16 %v2975
      %v3008 = vunpack.c.l.b16 %v2976
      %v3009 = vunpack.c.l.b16 %v2977
      %v3010 = vunpack.c.l.b16 %v2978
      %v3011 = vunpack.c.l.b16 %v2979
      %v3012 = vunpack.c.l.b16 %v2980
      %v3013 = vpack.c.b16 %v2998, %v2997
      %v3014 = vpack.c.b16 %v3000, %v2999
      %v3015 = vpack.c.b16 %v3002, %v3001
      %v3016 = vpack.c.b16 %v3004, %v3003
      %v3017 = vpack.c.b16 %v3006, %v3005
      %v3018 = vpack.c.b16 %v3008, %v3007
      %v3019 = vpack.c.b16 %v3010, %v3009
      %v3020 = vpack.c.b16 %v3012, %v3011
      %3029 = vmatpush.bf16.msra.mxu0 %v3020
      %3030 = vmatpush.bf16.msra.mxu0 %v3019
      %3031 = vmatpush.bf16.msra.mxu0 %v3018
      %3032 = vmatpush.bf16.msra.mxu0 %v3017
      %3033 = vmatpush.bf16.msra.mxu0 %v3016
      %3034 = vmatpush.bf16.msra.mxu0 %v3015
      %3035 = vmatpush.bf16.msra.mxu0 %v3014
      %3036 = vmatpush.bf16.msra.mxu0 %v3013
      %3037 = vmatmul.bf16.gmra.mxu0 %v2948
      %v3038 = vpop.f32.mrf.mxu0
      %v3039 = vadd.f32 0.0, %v3038
      %v3040 = vpop.f32.mrf.mxu0
      %v3041 = vadd.f32 0.0, %v3040
      %3042 = vmatmul.bf16.gmra.mxu0 %v2949
      %v3043 = vpop.f32.mrf.mxu0
      %v3044 = vadd.f32 0.0, %v3043
      %v3045 = vpop.f32.mrf.mxu0
      %v3046 = vadd.f32 0.0, %v3045
      %3047 = vmatmul.bf16.gmra.mxu0 %v2950
      %v3048 = vpop.f32.mrf.mxu0
      %v3049 = vadd.f32 0.0, %v3048
      %v3050 = vpop.f32.mrf.mxu0
      %v3051 = vadd.f32 0.0, %v3050
      %3052 = vmatmul.bf16.gmra.mxu0 %v2951
      %v3053 = vpop.f32.mrf.mxu0
      %v3054 = vadd.f32 0.0, %v3053
      %v3055 = vpop.f32.mrf.mxu0
      %v3056 = vadd.f32 0.0, %v3055
      %3057 = vmatmul.bf16.gmra.mxu0 %v2952
      %v3058 = vpop.f32.mrf.mxu0
      %v3059 = vadd.f32 0.0, %v3058
      %v3060 = vpop.f32.mrf.mxu0
      %v3061 = vadd.f32 0.0, %v3060
      %3062 = vmatmul.bf16.gmra.mxu0 %v2953
      %v3063 = vpop.f32.mrf.mxu0
      %v3064 = vadd.f32 0.0, %v3063
      %v3065 = vpop.f32.mrf.mxu0
      %v3066 = vadd.f32 0.0, %v3065
      %3067 = vmatmul.bf16.gmra.mxu0 %v2954
      %v3068 = vpop.f32.mrf.mxu0
      %v3069 = vadd.f32 0.0, %v3068
      %v3070 = vpop.f32.mrf.mxu0
      %v3071 = vadd.f32 0.0, %v3070
      %3072 = vmatmul.bf16.gmra.mxu0 %v2955
      %v3073 = vpop.f32.mrf.mxu0
      %v3074 = vadd.f32 0.0, %v3073
      %v3075 = vpop.f32.mrf.mxu0
      %v3076 = vadd.f32 0.0, %v3075
      %3077 = vmatmul.bf16.gmra.mxu0 %v2956
      %v3078 = vpop.f32.mrf.mxu0
      %v3079 = vadd.f32 0.0, %v3078
      %v3080 = vpop.f32.mrf.mxu0
      %v3081 = vadd.f32 0.0, %v3080
      %3082 = vmatmul.bf16.gmra.mxu0 %v2957
      %v3083 = vpop.f32.mrf.mxu0
      %v3084 = vadd.f32 0.0, %v3083
      %v3085 = vpop.f32.mrf.mxu0
      %v3086 = vadd.f32 0.0, %v3085
      %3087 = vmatmul.bf16.gmra.mxu0 %v2958
      %v3088 = vpop.f32.mrf.mxu0
      %v3089 = vadd.f32 0.0, %v3088
      %v3090 = vpop.f32.mrf.mxu0
      %v3091 = vadd.f32 0.0, %v3090
      %3092 = vmatmul.bf16.gmra.mxu0 %v2959
      %v3093 = vpop.f32.mrf.mxu0
      %v3094 = vadd.f32 0.0, %v3093
      %v3095 = vpop.f32.mrf.mxu0
      %v3096 = vadd.f32 0.0, %v3095
      %3097 = vmatmul.bf16.gmra.mxu0 %v2960
      %v3098 = vpop.f32.mrf.mxu0
      %v3099 = vadd.f32 0.0, %v3098
      %v3100 = vpop.f32.mrf.mxu0
      %v3101 = vadd.f32 0.0, %v3100
      %3102 = vmatmul.bf16.gmra.mxu0 %v2961
      %v3103 = vpop.f32.mrf.mxu0
      %v3104 = vadd.f32 0.0, %v3103
      %v3105 = vpop.f32.mrf.mxu0
      %v3106 = vadd.f32 0.0, %v3105
      %3107 = vmatmul.bf16.gmra.mxu0 %v2962
      %v3108 = vpop.f32.mrf.mxu0
      %v3109 = vadd.f32 0.0, %v3108
      %v3110 = vpop.f32.mrf.mxu0
      %v3111 = vadd.f32 0.0, %v3110
      %3112 = vmatmul.bf16.gmra.mxu0 %v2963
      %v3113 = vpop.f32.mrf.mxu0
      %v3114 = vadd.f32 0.0, %v3113
      %v3115 = vpop.f32.mrf.mxu0
      %v3116 = vadd.f32 0.0, %v3115
      %3117 = vdwg.mxu0
      %v3118 = vadd.f32 %v2837, %v3039
      %v3119 = vadd.f32 %v2839, %v3041
      %v3120 = vadd.f32 %v2842, %v3044
      %v3121 = vadd.f32 %v2844, %v3046
      %v3122 = vadd.f32 %v2847, %v3049
      %v3123 = vadd.f32 %v2849, %v3051
      %v3124 = vadd.f32 %v2852, %v3054
      %v3125 = vadd.f32 %v2854, %v3056
      %v3126 = vadd.f32 %v2857, %v3059
      %v3127 = vadd.f32 %v2859, %v3061
      %v3128 = vadd.f32 %v2862, %v3064
      %v3129 = vadd.f32 %v2864, %v3066
      %v3130 = vadd.f32 %v2867, %v3069
      %v3131 = vadd.f32 %v2869, %v3071
      %v3132 = vadd.f32 %v2872, %v3074
      %v3133 = vadd.f32 %v2874, %v3076
      %v3134 = vadd.f32 %v2877, %v3079
      %v3135 = vadd.f32 %v2879, %v3081
      %v3136 = vadd.f32 %v2882, %v3084
      %v3137 = vadd.f32 %v2884, %v3086
      %v3138 = vadd.f32 %v2887, %v3089
      %v3139 = vadd.f32 %v2889, %v3091
      %v3140 = vadd.f32 %v2892, %v3094
      %v3141 = vadd.f32 %v2894, %v3096
      %v3142 = vadd.f32 %v2897, %v3099
      %v3143 = vadd.f32 %v2899, %v3101
      %v3144 = vadd.f32 %v2902, %v3104
      %v3145 = vadd.f32 %v2904, %v3106
      %v3146 = vadd.f32 %v2907, %v3109
      %v3147 = vadd.f32 %v2909, %v3111
      %v3148 = vadd.f32 %v2912, %v3114
      %v3149 = vadd.f32 %v2914, %v3116
      %v3150 = vld [vmem:[%s2480] sm:$0xff]
      %v3151 = vld [vmem:[%s2480 + $0x8] sm:$0xff]
      %v3152 = vld [vmem:[%s2480 + $0x18] sm:$0xff]
      %v3153 = vld [vmem:[%s2480 + $0x20] sm:$0xff]
      %v3154 = vld [vmem:[%s2480 + $0x30] sm:$0xff]
      %v3155 = vld [vmem:[%s2480 + $0x38] sm:$0xff]
      %v3156 = vld [vmem:[%s2480 + $0x48] sm:$0xff]
      %v3157 = vld [vmem:[%s2480 + $0x50] sm:$0xff]
      %v3158 = vld [vmem:[%s2480 + $0x60] sm:$0xff]
      %v3159 = vld [vmem:[%s2480 + $0x68] sm:$0xff]
      %v3160 = vld [vmem:[%s2480 + $0x78] sm:$0xff]
      %v3161 = vld [vmem:[%s2480 + $0x80] sm:$0xff]
      %v3162 = vld [vmem:[%s2480 + $0x90] sm:$0xff]
      %v3163 = vld [vmem:[%s2480 + $0x98] sm:$0xff]
      %v3164 = vld [vmem:[%s2480 + $0xa8] sm:$0xff]
      %v3165 = vld [vmem:[%s2480 + $0xb0] sm:$0xff]
      %v3166 = vld [vmem:[%s2480 + $0xc0] sm:$0xff]
      %v3167 = vld [vmem:[%s2480 + $0xc8] sm:$0xff]
      %v3168 = vld [vmem:[%s2480 + $0xd8] sm:$0xff]
      %v3169 = vld [vmem:[%s2480 + $0xe0] sm:$0xff]
      %v3170 = vld [vmem:[%s2480 + $0xf0] sm:$0xff]
      %v3171 = vld [vmem:[%s2480 + $0xf8] sm:$0xff]
      %v3172 = vld [vmem:[%s2480 + $0x108] sm:$0xff]
      %v3173 = vld [vmem:[%s2480 + $0x110] sm:$0xff]
      %v3174 = vld [vmem:[%s2480 + $0x120] sm:$0xff]
      %v3175 = vld [vmem:[%s2480 + $0x128] sm:$0xff]
      %v3176 = vld [vmem:[%s2480 + $0x138] sm:$0xff]
      %v3177 = vld [vmem:[%s2480 + $0x140] sm:$0xff]
      %v3178 = vld [vmem:[%s2480 + $0x150] sm:$0xff]
      %v3179 = vld [vmem:[%s2480 + $0x158] sm:$0xff]
      %v3180 = vld [vmem:[%s2480 + $0x168] sm:$0xff]
      %v3181 = vld [vmem:[%s2480 + $0x170] sm:$0xff]
      %v3182 = vpack.c.bf16 %v3151, %v3150
      %v3183 = vpack.c.bf16 %v3153, %v3152
      %v3184 = vpack.c.bf16 %v3155, %v3154
      %v3185 = vpack.c.bf16 %v3157, %v3156
      %v3186 = vpack.c.bf16 %v3159, %v3158
      %v3187 = vpack.c.bf16 %v3161, %v3160
      %v3188 = vpack.c.bf16 %v3163, %v3162
      %v3189 = vpack.c.bf16 %v3165, %v3164
      %v3190 = vpack.c.bf16 %v3167, %v3166
      %v3191 = vpack.c.bf16 %v3169, %v3168
      %v3192 = vpack.c.bf16 %v3171, %v3170
      %v3193 = vpack.c.bf16 %v3173, %v3172
      %v3194 = vpack.c.bf16 %v3175, %v3174
      %v3195 = vpack.c.bf16 %v3177, %v3176
      %v3196 = vpack.c.bf16 %v3179, %v3178
      %v3197 = vpack.c.bf16 %v3181, %v3180
      %s3198 = scalar_lea.vmem %s4, 192
      %v3199 = vld [vmem:[%s3198] sm:$0xf]
      %v3200 = vld [vmem:[%s3198 + $0x4] sm:$0xf]
      %v3201 = vld [vmem:[%s3198 + $0x8] sm:$0xf]
      %v3202 = vld [vmem:[%s3198 + $0xc] sm:$0xf]
      %v3203 = vld [vmem:[%s3198 + $0x10] sm:$0xf]
      %v3204 = vld [vmem:[%s3198 + $0x14] sm:$0xf]
      %v3205 = vld [vmem:[%s3198 + $0x18] sm:$0xf]
      %v3206 = vld [vmem:[%s3198 + $0x1c] sm:$0xf]
      %v3207 = vld [vmem:[%s3198 + $0x20] sm:$0xf]
      %v3208 = vld [vmem:[%s3198 + $0x24] sm:$0xf]
      %v3209 = vld [vmem:[%s3198 + $0x28] sm:$0xf]
      %v3210 = vld [vmem:[%s3198 + $0x2c] sm:$0xf]
      %v3211 = vld [vmem:[%s3198 + $0x30] sm:$0xf]
      %v3212 = vld [vmem:[%s3198 + $0x34] sm:$0xf]
      %v3213 = vld [vmem:[%s3198 + $0x38] sm:$0xf]
      %v3214 = vld [vmem:[%s3198 + $0x3c] sm:$0xf]
      %v3231 = vunpack.c.l.b16 %v3199
      %v3232 = vunpack.c.l.b16 %v3200
      %v3233 = vunpack.c.l.b16 %v3201
      %v3234 = vunpack.c.l.b16 %v3202
      %v3235 = vunpack.c.l.b16 %v3203
      %v3236 = vunpack.c.l.b16 %v3204
      %v3237 = vunpack.c.l.b16 %v3205
      %v3238 = vunpack.c.l.b16 %v3206
      %v3239 = vunpack.c.l.b16 %v3207
      %v3240 = vunpack.c.l.b16 %v3208
      %v3241 = vunpack.c.l.b16 %v3209
      %v3242 = vunpack.c.l.b16 %v3210
      %v3243 = vunpack.c.l.b16 %v3211
      %v3244 = vunpack.c.l.b16 %v3212
      %v3245 = vunpack.c.l.b16 %v3213
      %v3246 = vunpack.c.l.b16 %v3214
      %v3247 = vpack.c.b16 %v3232, %v3231
      %v3248 = vpack.c.b16 %v3234, %v3233
      %v3249 = vpack.c.b16 %v3236, %v3235
      %v3250 = vpack.c.b16 %v3238, %v3237
      %v3251 = vpack.c.b16 %v3240, %v3239
      %v3252 = vpack.c.b16 %v3242, %v3241
      %v3253 = vpack.c.b16 %v3244, %v3243
      %v3254 = vpack.c.b16 %v3246, %v3245
      %3263 = vmatpush.bf16.msra.mxu0 %v3254
      %3264 = vmatpush.bf16.msra.mxu0 %v3253
      %3265 = vmatpush.bf16.msra.mxu0 %v3252
      %3266 = vmatpush.bf16.msra.mxu0 %v3251
      %3267 = vmatpush.bf16.msra.mxu0 %v3250
      %3268 = vmatpush.bf16.msra.mxu0 %v3249
      %3269 = vmatpush.bf16.msra.mxu0 %v3248
      %3270 = vmatpush.bf16.msra.mxu0 %v3247
      %3271 = vmatmul.bf16.gmra.mxu0 %v3182
      %v3272 = vpop.f32.mrf.mxu0
      %v3273 = vadd.f32 0.0, %v3272
      %v3274 = vpop.f32.mrf.mxu0
      %v3275 = vadd.f32 0.0, %v3274
      %3276 = vmatmul.bf16.gmra.mxu0 %v3183
      %v3277 = vpop.f32.mrf.mxu0
      %v3278 = vadd.f32 0.0, %v3277
      %v3279 = vpop.f32.mrf.mxu0
      %v3280 = vadd.f32 0.0, %v3279
      %3281 = vmatmul.bf16.gmra.mxu0 %v3184
      %v3282 = vpop.f32.mrf.mxu0
      %v3283 = vadd.f32 0.0, %v3282
      %v3284 = vpop.f32.mrf.mxu0
      %v3285 = vadd.f32 0.0, %v3284
      %3286 = vmatmul.bf16.gmra.mxu0 %v3185
      %v3287 = vpop.f32.mrf.mxu0
      %v3288 = vadd.f32 0.0, %v3287
      %v3289 = vpop.f32.mrf.mxu0
      %v3290 = vadd.f32 0.0, %v3289
      %3291 = vmatmul.bf16.gmra.mxu0 %v3186
      %v3292 = vpop.f32.mrf.mxu0
      %v3293 = vadd.f32 0.0, %v3292
      %v3294 = vpop.f32.mrf.mxu0
      %v3295 = vadd.f32 0.0, %v3294
      %3296 = vmatmul.bf16.gmra.mxu0 %v3187
      %v3297 = vpop.f32.mrf.mxu0
      %v3298 = vadd.f32 0.0, %v3297
      %v3299 = vpop.f32.mrf.mxu0
      %v3300 = vadd.f32 0.0, %v3299
      %3301 = vmatmul.bf16.gmra.mxu0 %v3188
      %v3302 = vpop.f32.mrf.mxu0
      %v3303 = vadd.f32 0.0, %v3302
      %v3304 = vpop.f32.mrf.mxu0
      %v3305 = vadd.f32 0.0, %v3304
      %3306 = vmatmul.bf16.gmra.mxu0 %v3189
      %v3307 = vpop.f32.mrf.mxu0
      %v3308 = vadd.f32 0.0, %v3307
      %v3309 = vpop.f32.mrf.mxu0
      %v3310 = vadd.f32 0.0, %v3309
      %3311 = vmatmul.bf16.gmra.mxu0 %v3190
      %v3312 = vpop.f32.mrf.mxu0
      %v3313 = vadd.f32 0.0, %v3312
      %v3314 = vpop.f32.mrf.mxu0
      %v3315 = vadd.f32 0.0, %v3314
      %3316 = vmatmul.bf16.gmra.mxu0 %v3191
      %v3317 = vpop.f32.mrf.mxu0
      %v3318 = vadd.f32 0.0, %v3317
      %v3319 = vpop.f32.mrf.mxu0
      %v3320 = vadd.f32 0.0, %v3319
      %3321 = vmatmul.bf16.gmra.mxu0 %v3192
      %v3322 = vpop.f32.mrf.mxu0
      %v3323 = vadd.f32 0.0, %v3322
      %v3324 = vpop.f32.mrf.mxu0
      %v3325 = vadd.f32 0.0, %v3324
      %3326 = vmatmul.bf16.gmra.mxu0 %v3193
      %v3327 = vpop.f32.mrf.mxu0
      %v3328 = vadd.f32 0.0, %v3327
      %v3329 = vpop.f32.mrf.mxu0
      %v3330 = vadd.f32 0.0, %v3329
      %3331 = vmatmul.bf16.gmra.mxu0 %v3194
      %v3332 = vpop.f32.mrf.mxu0
      %v3333 = vadd.f32 0.0, %v3332
      %v3334 = vpop.f32.mrf.mxu0
      %v3335 = vadd.f32 0.0, %v3334
      %3336 = vmatmul.bf16.gmra.mxu0 %v3195
      %v3337 = vpop.f32.mrf.mxu0
      %v3338 = vadd.f32 0.0, %v3337
      %v3339 = vpop.f32.mrf.mxu0
      %v3340 = vadd.f32 0.0, %v3339
      %3341 = vmatmul.bf16.gmra.mxu0 %v3196
      %v3342 = vpop.f32.mrf.mxu0
      %v3343 = vadd.f32 0.0, %v3342
      %v3344 = vpop.f32.mrf.mxu0
      %v3345 = vadd.f32 0.0, %v3344
      %3346 = vmatmul.bf16.gmra.mxu0 %v3197
      %v3347 = vpop.f32.mrf.mxu0
      %v3348 = vadd.f32 0.0, %v3347
      %v3349 = vpop.f32.mrf.mxu0
      %v3350 = vadd.f32 0.0, %v3349
      %3351 = vdwg.mxu0
      %v3352 = vadd.f32 %v3118, %v3273
      %v3353 = vadd.f32 %v3119, %v3275
      %v3354 = vadd.f32 %v3120, %v3278
      %v3355 = vadd.f32 %v3121, %v3280
      %v3356 = vadd.f32 %v3122, %v3283
      %v3357 = vadd.f32 %v3123, %v3285
      %v3358 = vadd.f32 %v3124, %v3288
      %v3359 = vadd.f32 %v3125, %v3290
      %v3360 = vadd.f32 %v3126, %v3293
      %v3361 = vadd.f32 %v3127, %v3295
      %v3362 = vadd.f32 %v3128, %v3298
      %v3363 = vadd.f32 %v3129, %v3300
      %v3364 = vadd.f32 %v3130, %v3303
      %v3365 = vadd.f32 %v3131, %v3305
      %v3366 = vadd.f32 %v3132, %v3308
      %v3367 = vadd.f32 %v3133, %v3310
      %v3368 = vadd.f32 %v3134, %v3313
      %v3369 = vadd.f32 %v3135, %v3315
      %v3370 = vadd.f32 %v3136, %v3318
      %v3371 = vadd.f32 %v3137, %v3320
      %v3372 = vadd.f32 %v3138, %v3323
      %v3373 = vadd.f32 %v3139, %v3325
      %v3374 = vadd.f32 %v3140, %v3328
      %v3375 = vadd.f32 %v3141, %v3330
      %v3376 = vadd.f32 %v3142, %v3333
      %v3377 = vadd.f32 %v3143, %v3335
      %v3378 = vadd.f32 %v3144, %v3338
      %v3379 = vadd.f32 %v3145, %v3340
      %v3380 = vadd.f32 %v3146, %v3343
      %v3381 = vadd.f32 %v3147, %v3345
      %v3382 = vadd.f32 %v3148, %v3348
      %v3383 = vadd.f32 %v3149, %v3350
      %v3384 = vld [vmem:[%s2480 + $0x1] sm:$0xff]
      %v3385 = vld [vmem:[%s2480 + $0x9] sm:$0xff]
      %v3386 = vld [vmem:[%s2480 + $0x19] sm:$0xff]
      %v3387 = vld [vmem:[%s2480 + $0x21] sm:$0xff]
      %v3388 = vld [vmem:[%s2480 + $0x31] sm:$0xff]
      %v3389 = vld [vmem:[%s2480 + $0x39] sm:$0xff]
      %v3390 = vld [vmem:[%s2480 + $0x49] sm:$0xff]
      %v3391 = vld [vmem:[%s2480 + $0x51] sm:$0xff]
      %v3392 = vld [vmem:[%s2480 + $0x61] sm:$0xff]
      %v3393 = vld [vmem:[%s2480 + $0x69] sm:$0xff]
      %v3394 = vld [vmem:[%s2480 + $0x79] sm:$0xff]
      %v3395 = vld [vmem:[%s2480 + $0x81] sm:$0xff]
      %v3396 = vld [vmem:[%s2480 + $0x91] sm:$0xff]
      %v3397 = vld [vmem:[%s2480 + $0x99] sm:$0xff]
      %v3398 = vld [vmem:[%s2480 + $0xa9] sm:$0xff]
      %v3399 = vld [vmem:[%s2480 + $0xb1] sm:$0xff]
      %v3400 = vld [vmem:[%s2480 + $0xc1] sm:$0xff]
      %v3401 = vld [vmem:[%s2480 + $0xc9] sm:$0xff]
      %v3402 = vld [vmem:[%s2480 + $0xd9] sm:$0xff]
      %v3403 = vld [vmem:[%s2480 + $0xe1] sm:$0xff]
      %v3404 = vld [vmem:[%s2480 + $0xf1] sm:$0xff]
      %v3405 = vld [vmem:[%s2480 + $0xf9] sm:$0xff]
      %v3406 = vld [vmem:[%s2480 + $0x109] sm:$0xff]
      %v3407 = vld [vmem:[%s2480 + $0x111] sm:$0xff]
      %v3408 = vld [vmem:[%s2480 + $0x121] sm:$0xff]
      %v3409 = vld [vmem:[%s2480 + $0x129] sm:$0xff]
      %v3410 = vld [vmem:[%s2480 + $0x139] sm:$0xff]
      %v3411 = vld [vmem:[%s2480 + $0x141] sm:$0xff]
      %v3412 = vld [vmem:[%s2480 + $0x151] sm:$0xff]
      %v3413 = vld [vmem:[%s2480 + $0x159] sm:$0xff]
      %v3414 = vld [vmem:[%s2480 + $0x169] sm:$0xff]
      %v3415 = vld [vmem:[%s2480 + $0x171] sm:$0xff]
      %v3416 = vpack.c.bf16 %v3385, %v3384
      %v3417 = vpack.c.bf16 %v3387, %v3386
      %v3418 = vpack.c.bf16 %v3389, %v3388
      %v3419 = vpack.c.bf16 %v3391, %v3390
      %v3420 = vpack.c.bf16 %v3393, %v3392
      %v3421 = vpack.c.bf16 %v3395, %v3394
      %v3422 = vpack.c.bf16 %v3397, %v3396
      %v3423 = vpack.c.bf16 %v3399, %v3398
      %v3424 = vpack.c.bf16 %v3401, %v3400
      %v3425 = vpack.c.bf16 %v3403, %v3402
      %v3426 = vpack.c.bf16 %v3405, %v3404
      %v3427 = vpack.c.bf16 %v3407, %v3406
      %v3428 = vpack.c.bf16 %v3409, %v3408
      %v3429 = vpack.c.bf16 %v3411, %v3410
      %v3430 = vpack.c.bf16 %v3413, %v3412
      %v3431 = vpack.c.bf16 %v3415, %v3414
      %s3432 = scalar_lea.vmem %s4, 256
      %v3433 = vld [vmem:[%s3432] sm:$0xf]
      %v3434 = vld [vmem:[%s3432 + $0x4] sm:$0xf]
      %v3435 = vld [vmem:[%s3432 + $0x8] sm:$0xf]
      %v3436 = vld [vmem:[%s3432 + $0xc] sm:$0xf]
      %v3437 = vld [vmem:[%s3432 + $0x10] sm:$0xf]
      %v3438 = vld [vmem:[%s3432 + $0x14] sm:$0xf]
      %v3439 = vld [vmem:[%s3432 + $0x18] sm:$0xf]
      %v3440 = vld [vmem:[%s3432 + $0x1c] sm:$0xf]
      %v3441 = vld [vmem:[%s3432 + $0x20] sm:$0xf]
      %v3442 = vld [vmem:[%s3432 + $0x24] sm:$0xf]
      %v3443 = vld [vmem:[%s3432 + $0x28] sm:$0xf]
      %v3444 = vld [vmem:[%s3432 + $0x2c] sm:$0xf]
      %v3445 = vld [vmem:[%s3432 + $0x30] sm:$0xf]
      %v3446 = vld [vmem:[%s3432 + $0x34] sm:$0xf]
      %v3447 = vld [vmem:[%s3432 + $0x38] sm:$0xf]
      %v3448 = vld [vmem:[%s3432 + $0x3c] sm:$0xf]
      %v3465 = vunpack.c.l.b16 %v3433
      %v3466 = vunpack.c.l.b16 %v3434
      %v3467 = vunpack.c.l.b16 %v3435
      %v3468 = vunpack.c.l.b16 %v3436
      %v3469 = vunpack.c.l.b16 %v3437
      %v3470 = vunpack.c.l.b16 %v3438
      %v3471 = vunpack.c.l.b16 %v3439
      %v3472 = vunpack.c.l.b16 %v3440
      %v3473 = vunpack.c.l.b16 %v3441
      %v3474 = vunpack.c.l.b16 %v3442
      %v3475 = vunpack.c.l.b16 %v3443
      %v3476 = vunpack.c.l.b16 %v3444
      %v3477 = vunpack.c.l.b16 %v3445
      %v3478 = vunpack.c.l.b16 %v3446
      %v3479 = vunpack.c.l.b16 %v3447
      %v3480 = vunpack.c.l.b16 %v3448
      %v3481 = vpack.c.b16 %v3466, %v3465
      %v3482 = vpack.c.b16 %v3468, %v3467
      %v3483 = vpack.c.b16 %v3470, %v3469
      %v3484 = vpack.c.b16 %v3472, %v3471
      %v3485 = vpack.c.b16 %v3474, %v3473
      %v3486 = vpack.c.b16 %v3476, %v3475
      %v3487 = vpack.c.b16 %v3478, %v3477
      %v3488 = vpack.c.b16 %v3480, %v3479
      %3497 = vmatpush.bf16.msra.mxu0 %v3488
      %3498 = vmatpush.bf16.msra.mxu0 %v3487
      %3499 = vmatpush.bf16.msra.mxu0 %v3486
      %3500 = vmatpush.bf16.msra.mxu0 %v3485
      %3501 = vmatpush.bf16.msra.mxu0 %v3484
      %3502 = vmatpush.bf16.msra.mxu0 %v3483
      %3503 = vmatpush.bf16.msra.mxu0 %v3482
      %3504 = vmatpush.bf16.msra.mxu0 %v3481
      %3505 = vmatmul.bf16.gmra.mxu0 %v3416
      %v3506 = vpop.f32.mrf.mxu0
      %v3507 = vadd.f32 0.0, %v3506
      %v3508 = vpop.f32.mrf.mxu0
      %v3509 = vadd.f32 0.0, %v3508
      %3510 = vmatmul.bf16.gmra.mxu0 %v3417
      %v3511 = vpop.f32.mrf.mxu0
      %v3512 = vadd.f32 0.0, %v3511
      %v3513 = vpop.f32.mrf.mxu0
      %v3514 = vadd.f32 0.0, %v3513
      %3515 = vmatmul.bf16.gmra.mxu0 %v3418
      %v3516 = vpop.f32.mrf.mxu0
      %v3517 = vadd.f32 0.0, %v3516
      %v3518 = vpop.f32.mrf.mxu0
      %v3519 = vadd.f32 0.0, %v3518
      %3520 = vmatmul.bf16.gmra.mxu0 %v3419
      %v3521 = vpop.f32.mrf.mxu0
      %v3522 = vadd.f32 0.0, %v3521
      %v3523 = vpop.f32.mrf.mxu0
      %v3524 = vadd.f32 0.0, %v3523
      %3525 = vmatmul.bf16.gmra.mxu0 %v3420
      %v3526 = vpop.f32.mrf.mxu0
      %v3527 = vadd.f32 0.0, %v3526
      %v3528 = vpop.f32.mrf.mxu0
      %v3529 = vadd.f32 0.0, %v3528
      %3530 = vmatmul.bf16.gmra.mxu0 %v3421
      %v3531 = vpop.f32.mrf.mxu0
      %v3532 = vadd.f32 0.0, %v3531
      %v3533 = vpop.f32.mrf.mxu0
      %v3534 = vadd.f32 0.0, %v3533
      %3535 = vmatmul.bf16.gmra.mxu0 %v3422
      %v3536 = vpop.f32.mrf.mxu0
      %v3537 = vadd.f32 0.0, %v3536
      %v3538 = vpop.f32.mrf.mxu0
      %v3539 = vadd.f32 0.0, %v3538
      %3540 = vmatmul.bf16.gmra.mxu0 %v3423
      %v3541 = vpop.f32.mrf.mxu0
      %v3542 = vadd.f32 0.0, %v3541
      %v3543 = vpop.f32.mrf.mxu0
      %v3544 = vadd.f32 0.0, %v3543
      %3545 = vmatmul.bf16.gmra.mxu0 %v3424
      %v3546 = vpop.f32.mrf.mxu0
      %v3547 = vadd.f32 0.0, %v3546
      %v3548 = vpop.f32.mrf.mxu0
      %v3549 = vadd.f32 0.0, %v3548
      %3550 = vmatmul.bf16.gmra.mxu0 %v3425
      %v3551 = vpop.f32.mrf.mxu0
      %v3552 = vadd.f32 0.0, %v3551
      %v3553 = vpop.f32.mrf.mxu0
      %v3554 = vadd.f32 0.0, %v3553
      %3555 = vmatmul.bf16.gmra.mxu0 %v3426
      %v3556 = vpop.f32.mrf.mxu0
      %v3557 = vadd.f32 0.0, %v3556
      %v3558 = vpop.f32.mrf.mxu0
      %v3559 = vadd.f32 0.0, %v3558
      %3560 = vmatmul.bf16.gmra.mxu0 %v3427
      %v3561 = vpop.f32.mrf.mxu0
      %v3562 = vadd.f32 0.0, %v3561
      %v3563 = vpop.f32.mrf.mxu0
      %v3564 = vadd.f32 0.0, %v3563
      %3565 = vmatmul.bf16.gmra.mxu0 %v3428
      %v3566 = vpop.f32.mrf.mxu0
      %v3567 = vadd.f32 0.0, %v3566
      %v3568 = vpop.f32.mrf.mxu0
      %v3569 = vadd.f32 0.0, %v3568
      %3570 = vmatmul.bf16.gmra.mxu0 %v3429
      %v3571 = vpop.f32.mrf.mxu0
      %v3572 = vadd.f32 0.0, %v3571
      %v3573 = vpop.f32.mrf.mxu0
      %v3574 = vadd.f32 0.0, %v3573
      %3575 = vmatmul.bf16.gmra.mxu0 %v3430
      %v3576 = vpop.f32.mrf.mxu0
      %v3577 = vadd.f32 0.0, %v3576
      %v3578 = vpop.f32.mrf.mxu0
      %v3579 = vadd.f32 0.0, %v3578
      %3580 = vmatmul.bf16.gmra.mxu0 %v3431
      %v3581 = vpop.f32.mrf.mxu0
      %v3582 = vadd.f32 0.0, %v3581
      %v3583 = vpop.f32.mrf.mxu0
      %v3584 = vadd.f32 0.0, %v3583
      %3585 = vdwg.mxu0
      %v3586 = vadd.f32 %v3352, %v3507
      %v3587 = vadd.f32 %v3353, %v3509
      %v3588 = vadd.f32 %v3354, %v3512
      %v3589 = vadd.f32 %v3355, %v3514
      %v3590 = vadd.f32 %v3356, %v3517
      %v3591 = vadd.f32 %v3357, %v3519
      %v3592 = vadd.f32 %v3358, %v3522
      %v3593 = vadd.f32 %v3359, %v3524
      %v3594 = vadd.f32 %v3360, %v3527
      %v3595 = vadd.f32 %v3361, %v3529
      %v3596 = vadd.f32 %v3362, %v3532
      %v3597 = vadd.f32 %v3363, %v3534
      %v3598 = vadd.f32 %v3364, %v3537
      %v3599 = vadd.f32 %v3365, %v3539
      %v3600 = vadd.f32 %v3366, %v3542
      %v3601 = vadd.f32 %v3367, %v3544
      %v3602 = vadd.f32 %v3368, %v3547
      %v3603 = vadd.f32 %v3369, %v3549
      %v3604 = vadd.f32 %v3370, %v3552
      %v3605 = vadd.f32 %v3371, %v3554
      %v3606 = vadd.f32 %v3372, %v3557
      %v3607 = vadd.f32 %v3373, %v3559
      %v3608 = vadd.f32 %v3374, %v3562
      %v3609 = vadd.f32 %v3375, %v3564
      %v3610 = vadd.f32 %v3376, %v3567
      %v3611 = vadd.f32 %v3377, %v3569
      %v3612 = vadd.f32 %v3378, %v3572
      %v3613 = vadd.f32 %v3379, %v3574
      %v3614 = vadd.f32 %v3380, %v3577
      %v3615 = vadd.f32 %v3381, %v3579
      %v3616 = vadd.f32 %v3382, %v3582
      %v3617 = vadd.f32 %v3383, %v3584
      %v3618 = vld [vmem:[%s2480 + $0x2] sm:$0xff]
      %v3619 = vld [vmem:[%s2480 + $0xa] sm:$0xff]
      %v3620 = vld [vmem:[%s2480 + $0x1a] sm:$0xff]
      %v3621 = vld [vmem:[%s2480 + $0x22] sm:$0xff]
      %v3622 = vld [vmem:[%s2480 + $0x32] sm:$0xff]
      %v3623 = vld [vmem:[%s2480 + $0x3a] sm:$0xff]
      %v3624 = vld [vmem:[%s2480 + $0x4a] sm:$0xff]
      %v3625 = vld [vmem:[%s2480 + $0x52] sm:$0xff]
      %v3626 = vld [vmem:[%s2480 + $0x62] sm:$0xff]
      %v3627 = vld [vmem:[%s2480 + $0x6a] sm:$0xff]
      %v3628 = vld [vmem:[%s2480 + $0x7a] sm:$0xff]
      %v3629 = vld [vmem:[%s2480 + $0x82] sm:$0xff]
      %v3630 = vld [vmem:[%s2480 + $0x92] sm:$0xff]
      %v3631 = vld [vmem:[%s2480 + $0x9a] sm:$0xff]
      %v3632 = vld [vmem:[%s2480 + $0xaa] sm:$0xff]
      %v3633 = vld [vmem:[%s2480 + $0xb2] sm:$0xff]
      %v3634 = vld [vmem:[%s2480 + $0xc2] sm:$0xff]
      %v3635 = vld [vmem:[%s2480 + $0xca] sm:$0xff]
      %v3636 = vld [vmem:[%s2480 + $0xda] sm:$0xff]
      %v3637 = vld [vmem:[%s2480 + $0xe2] sm:$0xff]
      %v3638 = vld [vmem:[%s2480 + $0xf2] sm:$0xff]
      %v3639 = vld [vmem:[%s2480 + $0xfa] sm:$0xff]
      %v3640 = vld [vmem:[%s2480 + $0x10a] sm:$0xff]
      %v3641 = vld [vmem:[%s2480 + $0x112] sm:$0xff]
      %v3642 = vld [vmem:[%s2480 + $0x122] sm:$0xff]
      %v3643 = vld [vmem:[%s2480 + $0x12a] sm:$0xff]
      %v3644 = vld [vmem:[%s2480 + $0x13a] sm:$0xff]
      %v3645 = vld [vmem:[%s2480 + $0x142] sm:$0xff]
      %v3646 = vld [vmem:[%s2480 + $0x152] sm:$0xff]
      %v3647 = vld [vmem:[%s2480 + $0x15a] sm:$0xff]
      %v3648 = vld [vmem:[%s2480 + $0x16a] sm:$0xff]
      %v3649 = vld [vmem:[%s2480 + $0x172] sm:$0xff]
      %v3650 = vpack.c.bf16 %v3619, %v3618
      %v3651 = vpack.c.bf16 %v3621, %v3620
      %v3652 = vpack.c.bf16 %v3623, %v3622
      %v3653 = vpack.c.bf16 %v3625, %v3624
      %v3654 = vpack.c.bf16 %v3627, %v3626
      %v3655 = vpack.c.bf16 %v3629, %v3628
      %v3656 = vpack.c.bf16 %v3631, %v3630
      %v3657 = vpack.c.bf16 %v3633, %v3632
      %v3658 = vpack.c.bf16 %v3635, %v3634
      %v3659 = vpack.c.bf16 %v3637, %v3636
      %v3660 = vpack.c.bf16 %v3639, %v3638
      %v3661 = vpack.c.bf16 %v3641, %v3640
      %v3662 = vpack.c.bf16 %v3643, %v3642
      %v3663 = vpack.c.bf16 %v3645, %v3644
      %v3664 = vpack.c.bf16 %v3647, %v3646
      %v3665 = vpack.c.bf16 %v3649, %v3648
      %s3666 = scalar_lea.vmem %s4, 320
      %v3667 = vld [vmem:[%s3666] sm:$0xf]
      %v3668 = vld [vmem:[%s3666 + $0x4] sm:$0xf]
      %v3669 = vld [vmem:[%s3666 + $0x8] sm:$0xf]
      %v3670 = vld [vmem:[%s3666 + $0xc] sm:$0xf]
      %v3671 = vld [vmem:[%s3666 + $0x10] sm:$0xf]
      %v3672 = vld [vmem:[%s3666 + $0x14] sm:$0xf]
      %v3673 = vld [vmem:[%s3666 + $0x18] sm:$0xf]
      %v3674 = vld [vmem:[%s3666 + $0x1c] sm:$0xf]
      %v3675 = vld [vmem:[%s3666 + $0x20] sm:$0xf]
      %v3676 = vld [vmem:[%s3666 + $0x24] sm:$0xf]
      %v3677 = vld [vmem:[%s3666 + $0x28] sm:$0xf]
      %v3678 = vld [vmem:[%s3666 + $0x2c] sm:$0xf]
      %v3679 = vld [vmem:[%s3666 + $0x30] sm:$0xf]
      %v3680 = vld [vmem:[%s3666 + $0x34] sm:$0xf]
      %v3681 = vld [vmem:[%s3666 + $0x38] sm:$0xf]
      %v3682 = vld [vmem:[%s3666 + $0x3c] sm:$0xf]
      %v3699 = vunpack.c.l.b16 %v3667
      %v3700 = vunpack.c.l.b16 %v3668
      %v3701 = vunpack.c.l.b16 %v3669
      %v3702 = vunpack.c.l.b16 %v3670
      %v3703 = vunpack.c.l.b16 %v3671
      %v3704 = vunpack.c.l.b16 %v3672
      %v3705 = vunpack.c.l.b16 %v3673
      %v3706 = vunpack.c.l.b16 %v3674
      %v3707 = vunpack.c.l.b16 %v3675
      %v3708 = vunpack.c.l.b16 %v3676
      %v3709 = vunpack.c.l.b16 %v3677
      %v3710 = vunpack.c.l.b16 %v3678
      %v3711 = vunpack.c.l.b16 %v3679
      %v3712 = vunpack.c.l.b16 %v3680
      %v3713 = vunpack.c.l.b16 %v3681
      %v3714 = vunpack.c.l.b16 %v3682
      %v3715 = vpack.c.b16 %v3700, %v3699
      %v3716 = vpack.c.b16 %v3702, %v3701
      %v3717 = vpack.c.b16 %v3704, %v3703
      %v3718 = vpack.c.b16 %v3706, %v3705
      %v3719 = vpack.c.b16 %v3708, %v3707
      %v3720 = vpack.c.b16 %v3710, %v3709
      %v3721 = vpack.c.b16 %v3712, %v3711
      %v3722 = vpack.c.b16 %v3714, %v3713
      %3731 = vmatpush.bf16.msra.mxu0 %v3722
      %3732 = vmatpush.bf16.msra.mxu0 %v3721
      %3733 = vmatpush.bf16.msra.mxu0 %v3720
      %3734 = vmatpush.bf16.msra.mxu0 %v3719
      %3735 = vmatpush.bf16.msra.mxu0 %v3718
      %3736 = vmatpush.bf16.msra.mxu0 %v3717
      %3737 = vmatpush.bf16.msra.mxu0 %v3716
      %3738 = vmatpush.bf16.msra.mxu0 %v3715
      %3739 = vmatmul.bf16.gmra.mxu0 %v3650
      %v3740 = vpop.f32.mrf.mxu0
      %v3741 = vadd.f32 0.0, %v3740
      %v3742 = vpop.f32.mrf.mxu0
      %v3743 = vadd.f32 0.0, %v3742
      %3744 = vmatmul.bf16.gmra.mxu0 %v3651
      %v3745 = vpop.f32.mrf.mxu0
      %v3746 = vadd.f32 0.0, %v3745
      %v3747 = vpop.f32.mrf.mxu0
      %v3748 = vadd.f32 0.0, %v3747
      %3749 = vmatmul.bf16.gmra.mxu0 %v3652
      %v3750 = vpop.f32.mrf.mxu0
      %v3751 = vadd.f32 0.0, %v3750
      %v3752 = vpop.f32.mrf.mxu0
      %v3753 = vadd.f32 0.0, %v3752
      %3754 = vmatmul.bf16.gmra.mxu0 %v3653
      %v3755 = vpop.f32.mrf.mxu0
      %v3756 = vadd.f32 0.0, %v3755
      %v3757 = vpop.f32.mrf.mxu0
      %v3758 = vadd.f32 0.0, %v3757
      %3759 = vmatmul.bf16.gmra.mxu0 %v3654
      %v3760 = vpop.f32.mrf.mxu0
      %v3761 = vadd.f32 0.0, %v3760
      %v3762 = vpop.f32.mrf.mxu0
      %v3763 = vadd.f32 0.0, %v3762
      %3764 = vmatmul.bf16.gmra.mxu0 %v3655
      %v3765 = vpop.f32.mrf.mxu0
      %v3766 = vadd.f32 0.0, %v3765
      %v3767 = vpop.f32.mrf.mxu0
      %v3768 = vadd.f32 0.0, %v3767
      %3769 = vmatmul.bf16.gmra.mxu0 %v3656
      %v3770 = vpop.f32.mrf.mxu0
      %v3771 = vadd.f32 0.0, %v3770
      %v3772 = vpop.f32.mrf.mxu0
      %v3773 = vadd.f32 0.0, %v3772
      %3774 = vmatmul.bf16.gmra.mxu0 %v3657
      %v3775 = vpop.f32.mrf.mxu0
      %v3776 = vadd.f32 0.0, %v3775
      %v3777 = vpop.f32.mrf.mxu0
      %v3778 = vadd.f32 0.0, %v3777
      %3779 = vmatmul.bf16.gmra.mxu0 %v3658
      %v3780 = vpop.f32.mrf.mxu0
      %v3781 = vadd.f32 0.0, %v3780
      %v3782 = vpop.f32.mrf.mxu0
      %v3783 = vadd.f32 0.0, %v3782
      %3784 = vmatmul.bf16.gmra.mxu0 %v3659
      %v3785 = vpop.f32.mrf.mxu0
      %v3786 = vadd.f32 0.0, %v3785
      %v3787 = vpop.f32.mrf.mxu0
      %v3788 = vadd.f32 0.0, %v3787
      %3789 = vmatmul.bf16.gmra.mxu0 %v3660
      %v3790 = vpop.f32.mrf.mxu0
      %v3791 = vadd.f32 0.0, %v3790
      %v3792 = vpop.f32.mrf.mxu0
      %v3793 = vadd.f32 0.0, %v3792
      %3794 = vmatmul.bf16.gmra.mxu0 %v3661
      %v3795 = vpop.f32.mrf.mxu0
      %v3796 = vadd.f32 0.0, %v3795
      %v3797 = vpop.f32.mrf.mxu0
      %v3798 = vadd.f32 0.0, %v3797
      %3799 = vmatmul.bf16.gmra.mxu0 %v3662
      %v3800 = vpop.f32.mrf.mxu0
      %v3801 = vadd.f32 0.0, %v3800
      %v3802 = vpop.f32.mrf.mxu0
      %v3803 = vadd.f32 0.0, %v3802
      %3804 = vmatmul.bf16.gmra.mxu0 %v3663
      %v3805 = vpop.f32.mrf.mxu0
      %v3806 = vadd.f32 0.0, %v3805
      %v3807 = vpop.f32.mrf.mxu0
      %v3808 = vadd.f32 0.0, %v3807
      %3809 = vmatmul.bf16.gmra.mxu0 %v3664
      %v3810 = vpop.f32.mrf.mxu0
      %v3811 = vadd.f32 0.0, %v3810
      %v3812 = vpop.f32.mrf.mxu0
      %v3813 = vadd.f32 0.0, %v3812
      %3814 = vmatmul.bf16.gmra.mxu0 %v3665
      %v3815 = vpop.f32.mrf.mxu0
      %v3816 = vadd.f32 0.0, %v3815
      %v3817 = vpop.f32.mrf.mxu0
      %v3818 = vadd.f32 0.0, %v3817
      %3819 = vdwg.mxu0
      %v3820 = vadd.f32 %v3586, %v3741
      %v3821 = vadd.f32 %v3587, %v3743
      %v3822 = vadd.f32 %v3588, %v3746
      %v3823 = vadd.f32 %v3589, %v3748
      %v3824 = vadd.f32 %v3590, %v3751
      %v3825 = vadd.f32 %v3591, %v3753
      %v3826 = vadd.f32 %v3592, %v3756
      %v3827 = vadd.f32 %v3593, %v3758
      %v3828 = vadd.f32 %v3594, %v3761
      %v3829 = vadd.f32 %v3595, %v3763
      %v3830 = vadd.f32 %v3596, %v3766
      %v3831 = vadd.f32 %v3597, %v3768
      %v3832 = vadd.f32 %v3598, %v3771
      %v3833 = vadd.f32 %v3599, %v3773
      %v3834 = vadd.f32 %v3600, %v3776
      %v3835 = vadd.f32 %v3601, %v3778
      %v3836 = vadd.f32 %v3602, %v3781
      %v3837 = vadd.f32 %v3603, %v3783
      %v3838 = vadd.f32 %v3604, %v3786
      %v3839 = vadd.f32 %v3605, %v3788
      %v3840 = vadd.f32 %v3606, %v3791
      %v3841 = vadd.f32 %v3607, %v3793
      %v3842 = vadd.f32 %v3608, %v3796
      %v3843 = vadd.f32 %v3609, %v3798
      %v3844 = vadd.f32 %v3610, %v3801
      %v3845 = vadd.f32 %v3611, %v3803
      %v3846 = vadd.f32 %v3612, %v3806
      %v3847 = vadd.f32 %v3613, %v3808
      %v3848 = vadd.f32 %v3614, %v3811
      %v3849 = vadd.f32 %v3615, %v3813
      %v3850 = vadd.f32 %v3616, %v3816
      %v3851 = vadd.f32 %v3617, %v3818
      %s3852 = scalar_lea.vmem [#allocation2], 48
      %v3853 = vld [vmem:[%s3852] sm:$0xff]
      %v3854 = vld [vmem:[%s3852 + $0x8] sm:$0xff]
      %v3855 = vld [vmem:[%s3852 + $0x18] sm:$0xff]
      %v3856 = vld [vmem:[%s3852 + $0x20] sm:$0xff]
      %v3857 = vld [vmem:[%s3852 + $0x30] sm:$0xff]
      %v3858 = vld [vmem:[%s3852 + $0x38] sm:$0xff]
      %v3859 = vld [vmem:[%s3852 + $0x48] sm:$0xff]
      %v3860 = vld [vmem:[%s3852 + $0x50] sm:$0xff]
      %v3861 = vld [vmem:[%s3852 + $0x60] sm:$0xff]
      %v3862 = vld [vmem:[%s3852 + $0x68] sm:$0xff]
      %v3863 = vld [vmem:[%s3852 + $0x78] sm:$0xff]
      %v3864 = vld [vmem:[%s3852 + $0x80] sm:$0xff]
      %v3865 = vld [vmem:[%s3852 + $0x90] sm:$0xff]
      %v3866 = vld [vmem:[%s3852 + $0x98] sm:$0xff]
      %v3867 = vld [vmem:[%s3852 + $0xa8] sm:$0xff]
      %v3868 = vld [vmem:[%s3852 + $0xb0] sm:$0xff]
      %v3869 = vld [vmem:[%s3852 + $0xc0] sm:$0xff]
      %v3870 = vld [vmem:[%s3852 + $0xc8] sm:$0xff]
      %v3871 = vld [vmem:[%s3852 + $0xd8] sm:$0xff]
      %v3872 = vld [vmem:[%s3852 + $0xe0] sm:$0xff]
      %v3873 = vld [vmem:[%s3852 + $0xf0] sm:$0xff]
      %v3874 = vld [vmem:[%s3852 + $0xf8] sm:$0xff]
      %v3875 = vld [vmem:[%s3852 + $0x108] sm:$0xff]
      %v3876 = vld [vmem:[%s3852 + $0x110] sm:$0xff]
      %v3877 = vld [vmem:[%s3852 + $0x120] sm:$0xff]
      %v3878 = vld [vmem:[%s3852 + $0x128] sm:$0xff]
      %v3879 = vld [vmem:[%s3852 + $0x138] sm:$0xff]
      %v3880 = vld [vmem:[%s3852 + $0x140] sm:$0xff]
      %v3881 = vld [vmem:[%s3852 + $0x150] sm:$0xff]
      %v3882 = vld [vmem:[%s3852 + $0x158] sm:$0xff]
      %v3883 = vld [vmem:[%s3852 + $0x168] sm:$0xff]
      %v3884 = vld [vmem:[%s3852 + $0x170] sm:$0xff]
      %v3885 = vpack.c.bf16 %v3854, %v3853
      %v3886 = vpack.c.bf16 %v3856, %v3855
      %v3887 = vpack.c.bf16 %v3858, %v3857
      %v3888 = vpack.c.bf16 %v3860, %v3859
      %v3889 = vpack.c.bf16 %v3862, %v3861
      %v3890 = vpack.c.bf16 %v3864, %v3863
      %v3891 = vpack.c.bf16 %v3866, %v3865
      %v3892 = vpack.c.bf16 %v3868, %v3867
      %v3893 = vpack.c.bf16 %v3870, %v3869
      %v3894 = vpack.c.bf16 %v3872, %v3871
      %v3895 = vpack.c.bf16 %v3874, %v3873
      %v3896 = vpack.c.bf16 %v3876, %v3875
      %v3897 = vpack.c.bf16 %v3878, %v3877
      %v3898 = vpack.c.bf16 %v3880, %v3879
      %v3899 = vpack.c.bf16 %v3882, %v3881
      %v3900 = vpack.c.bf16 %v3884, %v3883
      %s3901 = scalar_lea.vmem %s4, 384
      %v3902 = vld [vmem:[%s3901] sm:$0xf]
      %v3903 = vld [vmem:[%s3901 + $0x4] sm:$0xf]
      %v3904 = vld [vmem:[%s3901 + $0x8] sm:$0xf]
      %v3905 = vld [vmem:[%s3901 + $0xc] sm:$0xf]
      %v3906 = vld [vmem:[%s3901 + $0x10] sm:$0xf]
      %v3907 = vld [vmem:[%s3901 + $0x14] sm:$0xf]
      %v3908 = vld [vmem:[%s3901 + $0x18] sm:$0xf]
      %v3909 = vld [vmem:[%s3901 + $0x1c] sm:$0xf]
      %v3910 = vld [vmem:[%s3901 + $0x20] sm:$0xf]
      %v3911 = vld [vmem:[%s3901 + $0x24] sm:$0xf]
      %v3912 = vld [vmem:[%s3901 + $0x28] sm:$0xf]
      %v3913 = vld [vmem:[%s3901 + $0x2c] sm:$0xf]
      %v3914 = vld [vmem:[%s3901 + $0x30] sm:$0xf]
      %v3915 = vld [vmem:[%s3901 + $0x34] sm:$0xf]
      %v3916 = vld [vmem:[%s3901 + $0x38] sm:$0xf]
      %v3917 = vld [vmem:[%s3901 + $0x3c] sm:$0xf]
      %v3934 = vunpack.c.l.b16 %v3902
      %v3935 = vunpack.c.l.b16 %v3903
      %v3936 = vunpack.c.l.b16 %v3904
      %v3937 = vunpack.c.l.b16 %v3905
      %v3938 = vunpack.c.l.b16 %v3906
      %v3939 = vunpack.c.l.b16 %v3907
      %v3940 = vunpack.c.l.b16 %v3908
      %v3941 = vunpack.c.l.b16 %v3909
      %v3942 = vunpack.c.l.b16 %v3910
      %v3943 = vunpack.c.l.b16 %v3911
      %v3944 = vunpack.c.l.b16 %v3912
      %v3945 = vunpack.c.l.b16 %v3913
      %v3946 = vunpack.c.l.b16 %v3914
      %v3947 = vunpack.c.l.b16 %v3915
      %v3948 = vunpack.c.l.b16 %v3916
      %v3949 = vunpack.c.l.b16 %v3917
      %v3950 = vpack.c.b16 %v3935, %v3934
      %v3951 = vpack.c.b16 %v3937, %v3936
      %v3952 = vpack.c.b16 %v3939, %v3938
      %v3953 = vpack.c.b16 %v3941, %v3940
      %v3954 = vpack.c.b16 %v3943, %v3942
      %v3955 = vpack.c.b16 %v3945, %v3944
      %v3956 = vpack.c.b16 %v3947, %v3946
      %v3957 = vpack.c.b16 %v3949, %v3948
      %3966 = vmatpush.bf16.msra.mxu0 %v3957
      %3967 = vmatpush.bf16.msra.mxu0 %v3956
      %3968 = vmatpush.bf16.msra.mxu0 %v3955
      %3969 = vmatpush.bf16.msra.mxu0 %v3954
      %3970 = vmatpush.bf16.msra.mxu0 %v3953
      %3971 = vmatpush.bf16.msra.mxu0 %v3952
      %3972 = vmatpush.bf16.msra.mxu0 %v3951
      %3973 = vmatpush.bf16.msra.mxu0 %v3950
      %3974 = vmatmul.bf16.gmra.mxu0 %v3885
      %v3975 = vpop.f32.mrf.mxu0
      %v3976 = vadd.f32 0.0, %v3975
      %v3977 = vpop.f32.mrf.mxu0
      %v3978 = vadd.f32 0.0, %v3977
      %3979 = vmatmul.bf16.gmra.mxu0 %v3886
      %v3980 = vpop.f32.mrf.mxu0
      %v3981 = vadd.f32 0.0, %v3980
      %v3982 = vpop.f32.mrf.mxu0
      %v3983 = vadd.f32 0.0, %v3982
      %3984 = vmatmul.bf16.gmra.mxu0 %v3887
      %v3985 = vpop.f32.mrf.mxu0
      %v3986 = vadd.f32 0.0, %v3985
      %v3987 = vpop.f32.mrf.mxu0
      %v3988 = vadd.f32 0.0, %v3987
      %3989 = vmatmul.bf16.gmra.mxu0 %v3888
      %v3990 = vpop.f32.mrf.mxu0
      %v3991 = vadd.f32 0.0, %v3990
      %v3992 = vpop.f32.mrf.mxu0
      %v3993 = vadd.f32 0.0, %v3992
      %3994 = vmatmul.bf16.gmra.mxu0 %v3889
      %v3995 = vpop.f32.mrf.mxu0
      %v3996 = vadd.f32 0.0, %v3995
      %v3997 = vpop.f32.mrf.mxu0
      %v3998 = vadd.f32 0.0, %v3997
      %3999 = vmatmul.bf16.gmra.mxu0 %v3890
      %v4000 = vpop.f32.mrf.mxu0
      %v4001 = vadd.f32 0.0, %v4000
      %v4002 = vpop.f32.mrf.mxu0
      %v4003 = vadd.f32 0.0, %v4002
      %4004 = vmatmul.bf16.gmra.mxu0 %v3891
      %v4005 = vpop.f32.mrf.mxu0
      %v4006 = vadd.f32 0.0, %v4005
      %v4007 = vpop.f32.mrf.mxu0
      %v4008 = vadd.f32 0.0, %v4007
      %4009 = vmatmul.bf16.gmra.mxu0 %v3892
      %v4010 = vpop.f32.mrf.mxu0
      %v4011 = vadd.f32 0.0, %v4010
      %v4012 = vpop.f32.mrf.mxu0
      %v4013 = vadd.f32 0.0, %v4012
      %4014 = vmatmul.bf16.gmra.mxu0 %v3893
      %v4015 = vpop.f32.mrf.mxu0
      %v4016 = vadd.f32 0.0, %v4015
      %v4017 = vpop.f32.mrf.mxu0
      %v4018 = vadd.f32 0.0, %v4017
      %4019 = vmatmul.bf16.gmra.mxu0 %v3894
      %v4020 = vpop.f32.mrf.mxu0
      %v4021 = vadd.f32 0.0, %v4020
      %v4022 = vpop.f32.mrf.mxu0
      %v4023 = vadd.f32 0.0, %v4022
      %4024 = vmatmul.bf16.gmra.mxu0 %v3895
      %v4025 = vpop.f32.mrf.mxu0
      %v4026 = vadd.f32 0.0, %v4025
      %v4027 = vpop.f32.mrf.mxu0
      %v4028 = vadd.f32 0.0, %v4027
      %4029 = vmatmul.bf16.gmra.mxu0 %v3896
      %v4030 = vpop.f32.mrf.mxu0
      %v4031 = vadd.f32 0.0, %v4030
      %v4032 = vpop.f32.mrf.mxu0
      %v4033 = vadd.f32 0.0, %v4032
      %4034 = vmatmul.bf16.gmra.mxu0 %v3897
      %v4035 = vpop.f32.mrf.mxu0
      %v4036 = vadd.f32 0.0, %v4035
      %v4037 = vpop.f32.mrf.mxu0
      %v4038 = vadd.f32 0.0, %v4037
      %4039 = vmatmul.bf16.gmra.mxu0 %v3898
      %v4040 = vpop.f32.mrf.mxu0
      %v4041 = vadd.f32 0.0, %v4040
      %v4042 = vpop.f32.mrf.mxu0
      %v4043 = vadd.f32 0.0, %v4042
      %4044 = vmatmul.bf16.gmra.mxu0 %v3899
      %v4045 = vpop.f32.mrf.mxu0
      %v4046 = vadd.f32 0.0, %v4045
      %v4047 = vpop.f32.mrf.mxu0
      %v4048 = vadd.f32 0.0, %v4047
      %4049 = vmatmul.bf16.gmra.mxu0 %v3900
      %v4050 = vpop.f32.mrf.mxu0
      %v4051 = vadd.f32 0.0, %v4050
      %v4052 = vpop.f32.mrf.mxu0
      %v4053 = vadd.f32 0.0, %v4052
      %4054 = vdwg.mxu0
      %v4055 = vadd.f32 %v3820, %v3976
      %v4056 = vadd.f32 %v3821, %v3978
      %v4057 = vadd.f32 %v3822, %v3981
      %v4058 = vadd.f32 %v3823, %v3983
      %v4059 = vadd.f32 %v3824, %v3986
      %v4060 = vadd.f32 %v3825, %v3988
      %v4061 = vadd.f32 %v3826, %v3991
      %v4062 = vadd.f32 %v3827, %v3993
      %v4063 = vadd.f32 %v3828, %v3996
      %v4064 = vadd.f32 %v3829, %v3998
      %v4065 = vadd.f32 %v3830, %v4001
      %v4066 = vadd.f32 %v3831, %v4003
      %v4067 = vadd.f32 %v3832, %v4006
      %v4068 = vadd.f32 %v3833, %v4008
      %v4069 = vadd.f32 %v3834, %v4011
      %v4070 = vadd.f32 %v3835, %v4013
      %v4071 = vadd.f32 %v3836, %v4016
      %v4072 = vadd.f32 %v3837, %v4018
      %v4073 = vadd.f32 %v3838, %v4021
      %v4074 = vadd.f32 %v3839, %v4023
      %v4075 = vadd.f32 %v3840, %v4026
      %v4076 = vadd.f32 %v3841, %v4028
      %v4077 = vadd.f32 %v3842, %v4031
      %v4078 = vadd.f32 %v3843, %v4033
      %v4079 = vadd.f32 %v3844, %v4036
      %v4080 = vadd.f32 %v3845, %v4038
      %v4081 = vadd.f32 %v3846, %v4041
      %v4082 = vadd.f32 %v3847, %v4043
      %v4083 = vadd.f32 %v3848, %v4046
      %v4084 = vadd.f32 %v3849, %v4048
      %v4085 = vadd.f32 %v3850, %v4051
      %v4086 = vadd.f32 %v3851, %v4053
      %v4087 = vld [vmem:[%s3852 + $0x1] sm:$0xff]
      %v4088 = vld [vmem:[%s3852 + $0x9] sm:$0xff]
      %v4089 = vld [vmem:[%s3852 + $0x19] sm:$0xff]
      %v4090 = vld [vmem:[%s3852 + $0x21] sm:$0xff]
      %v4091 = vld [vmem:[%s3852 + $0x31] sm:$0xff]
      %v4092 = vld [vmem:[%s3852 + $0x39] sm:$0xff]
      %v4093 = vld [vmem:[%s3852 + $0x49] sm:$0xff]
      %v4094 = vld [vmem:[%s3852 + $0x51] sm:$0xff]
      %v4095 = vld [vmem:[%s3852 + $0x61] sm:$0xff]
      %v4096 = vld [vmem:[%s3852 + $0x69] sm:$0xff]
      %v4097 = vld [vmem:[%s3852 + $0x79] sm:$0xff]
      %v4098 = vld [vmem:[%s3852 + $0x81] sm:$0xff]
      %v4099 = vld [vmem:[%s3852 + $0x91] sm:$0xff]
      %v4100 = vld [vmem:[%s3852 + $0x99] sm:$0xff]
      %v4101 = vld [vmem:[%s3852 + $0xa9] sm:$0xff]
      %v4102 = vld [vmem:[%s3852 + $0xb1] sm:$0xff]
      %v4103 = vld [vmem:[%s3852 + $0xc1] sm:$0xff]
      %v4104 = vld [vmem:[%s3852 + $0xc9] sm:$0xff]
      %v4105 = vld [vmem:[%s3852 + $0xd9] sm:$0xff]
      %v4106 = vld [vmem:[%s3852 + $0xe1] sm:$0xff]
      %v4107 = vld [vmem:[%s3852 + $0xf1] sm:$0xff]
      %v4108 = vld [vmem:[%s3852 + $0xf9] sm:$0xff]
      %v4109 = vld [vmem:[%s3852 + $0x109] sm:$0xff]
      %v4110 = vld [vmem:[%s3852 + $0x111] sm:$0xff]
      %v4111 = vld [vmem:[%s3852 + $0x121] sm:$0xff]
      %v4112 = vld [vmem:[%s3852 + $0x129] sm:$0xff]
      %v4113 = vld [vmem:[%s3852 + $0x139] sm:$0xff]
      %v4114 = vld [vmem:[%s3852 + $0x141] sm:$0xff]
      %v4115 = vld [vmem:[%s3852 + $0x151] sm:$0xff]
      %v4116 = vld [vmem:[%s3852 + $0x159] sm:$0xff]
      %v4117 = vld [vmem:[%s3852 + $0x169] sm:$0xff]
      %v4118 = vld [vmem:[%s3852 + $0x171] sm:$0xff]
      %v4119 = vpack.c.bf16 %v4088, %v4087
      %v4120 = vpack.c.bf16 %v4090, %v4089
      %v4121 = vpack.c.bf16 %v4092, %v4091
      %v4122 = vpack.c.bf16 %v4094, %v4093
      %v4123 = vpack.c.bf16 %v4096, %v4095
      %v4124 = vpack.c.bf16 %v4098, %v4097
      %v4125 = vpack.c.bf16 %v4100, %v4099
      %v4126 = vpack.c.bf16 %v4102, %v4101
      %v4127 = vpack.c.bf16 %v4104, %v4103
      %v4128 = vpack.c.bf16 %v4106, %v4105
      %v4129 = vpack.c.bf16 %v4108, %v4107
      %v4130 = vpack.c.bf16 %v4110, %v4109
      %v4131 = vpack.c.bf16 %v4112, %v4111
      %v4132 = vpack.c.bf16 %v4114, %v4113
      %v4133 = vpack.c.bf16 %v4116, %v4115
      %v4134 = vpack.c.bf16 %v4118, %v4117
      %s4135 = scalar_lea.vmem %s4, 448
      %v4136 = vld [vmem:[%s4135] sm:$0xf]
      %v4137 = vld [vmem:[%s4135 + $0x4] sm:$0xf]
      %v4138 = vld [vmem:[%s4135 + $0x8] sm:$0xf]
      %v4139 = vld [vmem:[%s4135 + $0xc] sm:$0xf]
      %v4140 = vld [vmem:[%s4135 + $0x10] sm:$0xf]
      %v4141 = vld [vmem:[%s4135 + $0x14] sm:$0xf]
      %v4142 = vld [vmem:[%s4135 + $0x18] sm:$0xf]
      %v4143 = vld [vmem:[%s4135 + $0x1c] sm:$0xf]
      %v4144 = vld [vmem:[%s4135 + $0x20] sm:$0xf]
      %v4145 = vld [vmem:[%s4135 + $0x24] sm:$0xf]
      %v4146 = vld [vmem:[%s4135 + $0x28] sm:$0xf]
      %v4147 = vld [vmem:[%s4135 + $0x2c] sm:$0xf]
      %v4148 = vld [vmem:[%s4135 + $0x30] sm:$0xf]
      %v4149 = vld [vmem:[%s4135 + $0x34] sm:$0xf]
      %v4150 = vld [vmem:[%s4135 + $0x38] sm:$0xf]
      %v4151 = vld [vmem:[%s4135 + $0x3c] sm:$0xf]
      %v4168 = vunpack.c.l.b16 %v4136
      %v4169 = vunpack.c.l.b16 %v4137
      %v4170 = vunpack.c.l.b16 %v4138
      %v4171 = vunpack.c.l.b16 %v4139
      %v4172 = vunpack.c.l.b16 %v4140
      %v4173 = vunpack.c.l.b16 %v4141
      %v4174 = vunpack.c.l.b16 %v4142
      %v4175 = vunpack.c.l.b16 %v4143
      %v4176 = vunpack.c.l.b16 %v4144
      %v4177 = vunpack.c.l.b16 %v4145
      %v4178 = vunpack.c.l.b16 %v4146
      %v4179 = vunpack.c.l.b16 %v4147
      %v4180 = vunpack.c.l.b16 %v4148
      %v4181 = vunpack.c.l.b16 %v4149
      %v4182 = vunpack.c.l.b16 %v4150
      %v4183 = vunpack.c.l.b16 %v4151
      %v4184 = vpack.c.b16 %v4169, %v4168
      %v4185 = vpack.c.b16 %v4171, %v4170
      %v4186 = vpack.c.b16 %v4173, %v4172
      %v4187 = vpack.c.b16 %v4175, %v4174
      %v4188 = vpack.c.b16 %v4177, %v4176
      %v4189 = vpack.c.b16 %v4179, %v4178
      %v4190 = vpack.c.b16 %v4181, %v4180
      %v4191 = vpack.c.b16 %v4183, %v4182
      %4200 = vmatpush.bf16.msra.mxu0 %v4191
      %4201 = vmatpush.bf16.msra.mxu0 %v4190
      %4202 = vmatpush.bf16.msra.mxu0 %v4189
      %4203 = vmatpush.bf16.msra.mxu0 %v4188
      %4204 = vmatpush.bf16.msra.mxu0 %v4187
      %4205 = vmatpush.bf16.msra.mxu0 %v4186
      %4206 = vmatpush.bf16.msra.mxu0 %v4185
      %4207 = vmatpush.bf16.msra.mxu0 %v4184
      %4208 = vmatmul.bf16.gmra.mxu0 %v4119
      %v4209 = vpop.f32.mrf.mxu0
      %v4210 = vadd.f32 0.0, %v4209
      %v4211 = vpop.f32.mrf.mxu0
      %v4212 = vadd.f32 0.0, %v4211
      %4213 = vmatmul.bf16.gmra.mxu0 %v4120
      %v4214 = vpop.f32.mrf.mxu0
      %v4215 = vadd.f32 0.0, %v4214
      %v4216 = vpop.f32.mrf.mxu0
      %v4217 = vadd.f32 0.0, %v4216
      %4218 = vmatmul.bf16.gmra.mxu0 %v4121
      %v4219 = vpop.f32.mrf.mxu0
      %v4220 = vadd.f32 0.0, %v4219
      %v4221 = vpop.f32.mrf.mxu0
      %v4222 = vadd.f32 0.0, %v4221
      %4223 = vmatmul.bf16.gmra.mxu0 %v4122
      %v4224 = vpop.f32.mrf.mxu0
      %v4225 = vadd.f32 0.0, %v4224
      %v4226 = vpop.f32.mrf.mxu0
      %v4227 = vadd.f32 0.0, %v4226
      %4228 = vmatmul.bf16.gmra.mxu0 %v4123
      %v4229 = vpop.f32.mrf.mxu0
      %v4230 = vadd.f32 0.0, %v4229
      %v4231 = vpop.f32.mrf.mxu0
      %v4232 = vadd.f32 0.0, %v4231
      %4233 = vmatmul.bf16.gmra.mxu0 %v4124
      %v4234 = vpop.f32.mrf.mxu0
      %v4235 = vadd.f32 0.0, %v4234
      %v4236 = vpop.f32.mrf.mxu0
      %v4237 = vadd.f32 0.0, %v4236
      %4238 = vmatmul.bf16.gmra.mxu0 %v4125
      %v4239 = vpop.f32.mrf.mxu0
      %v4240 = vadd.f32 0.0, %v4239
      %v4241 = vpop.f32.mrf.mxu0
      %v4242 = vadd.f32 0.0, %v4241
      %4243 = vmatmul.bf16.gmra.mxu0 %v4126
      %v4244 = vpop.f32.mrf.mxu0
      %v4245 = vadd.f32 0.0, %v4244
      %v4246 = vpop.f32.mrf.mxu0
      %v4247 = vadd.f32 0.0, %v4246
      %4248 = vmatmul.bf16.gmra.mxu0 %v4127
      %v4249 = vpop.f32.mrf.mxu0
      %v4250 = vadd.f32 0.0, %v4249
      %v4251 = vpop.f32.mrf.mxu0
      %v4252 = vadd.f32 0.0, %v4251
      %4253 = vmatmul.bf16.gmra.mxu0 %v4128
      %v4254 = vpop.f32.mrf.mxu0
      %v4255 = vadd.f32 0.0, %v4254
      %v4256 = vpop.f32.mrf.mxu0
      %v4257 = vadd.f32 0.0, %v4256
      %4258 = vmatmul.bf16.gmra.mxu0 %v4129
      %v4259 = vpop.f32.mrf.mxu0
      %v4260 = vadd.f32 0.0, %v4259
      %v4261 = vpop.f32.mrf.mxu0
      %v4262 = vadd.f32 0.0, %v4261
      %4263 = vmatmul.bf16.gmra.mxu0 %v4130
      %v4264 = vpop.f32.mrf.mxu0
      %v4265 = vadd.f32 0.0, %v4264
      %v4266 = vpop.f32.mrf.mxu0
      %v4267 = vadd.f32 0.0, %v4266
      %4268 = vmatmul.bf16.gmra.mxu0 %v4131
      %v4269 = vpop.f32.mrf.mxu0
      %v4270 = vadd.f32 0.0, %v4269
      %v4271 = vpop.f32.mrf.mxu0
      %v4272 = vadd.f32 0.0, %v4271
      %4273 = vmatmul.bf16.gmra.mxu0 %v4132
      %v4274 = vpop.f32.mrf.mxu0
      %v4275 = vadd.f32 0.0, %v4274
      %v4276 = vpop.f32.mrf.mxu0
      %v4277 = vadd.f32 0.0, %v4276
      %4278 = vmatmul.bf16.gmra.mxu0 %v4133
      %v4279 = vpop.f32.mrf.mxu0
      %v4280 = vadd.f32 0.0, %v4279
      %v4281 = vpop.f32.mrf.mxu0
      %v4282 = vadd.f32 0.0, %v4281
      %4283 = vmatmul.bf16.gmra.mxu0 %v4134
      %v4284 = vpop.f32.mrf.mxu0
      %v4285 = vadd.f32 0.0, %v4284
      %v4286 = vpop.f32.mrf.mxu0
      %v4287 = vadd.f32 0.0, %v4286
      %4288 = vdwg.mxu0
      %v4289 = vadd.f32 %v4055, %v4210
      %v4290 = vadd.f32 %v4056, %v4212
      %v4291 = vadd.f32 %v4057, %v4215
      %v4292 = vadd.f32 %v4058, %v4217
      %v4293 = vadd.f32 %v4059, %v4220
      %v4294 = vadd.f32 %v4060, %v4222
      %v4295 = vadd.f32 %v4061, %v4225
      %v4296 = vadd.f32 %v4062, %v4227
      %v4297 = vadd.f32 %v4063, %v4230
      %v4298 = vadd.f32 %v4064, %v4232
      %v4299 = vadd.f32 %v4065, %v4235
      %v4300 = vadd.f32 %v4066, %v4237
      %v4301 = vadd.f32 %v4067, %v4240
      %v4302 = vadd.f32 %v4068, %v4242
      %v4303 = vadd.f32 %v4069, %v4245
      %v4304 = vadd.f32 %v4070, %v4247
      %v4305 = vadd.f32 %v4071, %v4250
      %v4306 = vadd.f32 %v4072, %v4252
      %v4307 = vadd.f32 %v4073, %v4255
      %v4308 = vadd.f32 %v4074, %v4257
      %v4309 = vadd.f32 %v4075, %v4260
      %v4310 = vadd.f32 %v4076, %v4262
      %v4311 = vadd.f32 %v4077, %v4265
      %v4312 = vadd.f32 %v4078, %v4267
      %v4313 = vadd.f32 %v4079, %v4270
      %v4314 = vadd.f32 %v4080, %v4272
      %v4315 = vadd.f32 %v4081, %v4275
      %v4316 = vadd.f32 %v4082, %v4277
      %v4317 = vadd.f32 %v4083, %v4280
      %v4318 = vadd.f32 %v4084, %v4282
      %v4319 = vadd.f32 %v4085, %v4285
      %v4320 = vadd.f32 %v4086, %v4287
      %v4321 = vld [vmem:[%s3852 + $0x2] sm:$0xff]
      %v4322 = vld [vmem:[%s3852 + $0xa] sm:$0xff]
      %v4323 = vld [vmem:[%s3852 + $0x1a] sm:$0xff]
      %v4324 = vld [vmem:[%s3852 + $0x22] sm:$0xff]
      %v4325 = vld [vmem:[%s3852 + $0x32] sm:$0xff]
      %v4326 = vld [vmem:[%s3852 + $0x3a] sm:$0xff]
      %v4327 = vld [vmem:[%s3852 + $0x4a] sm:$0xff]
      %v4328 = vld [vmem:[%s3852 + $0x52] sm:$0xff]
      %v4329 = vld [vmem:[%s3852 + $0x62] sm:$0xff]
      %v4330 = vld [vmem:[%s3852 + $0x6a] sm:$0xff]
      %v4331 = vld [vmem:[%s3852 + $0x7a] sm:$0xff]
      %v4332 = vld [vmem:[%s3852 + $0x82] sm:$0xff]
      %v4333 = vld [vmem:[%s3852 + $0x92] sm:$0xff]
      %v4334 = vld [vmem:[%s3852 + $0x9a] sm:$0xff]
      %v4335 = vld [vmem:[%s3852 + $0xaa] sm:$0xff]
      %v4336 = vld [vmem:[%s3852 + $0xb2] sm:$0xff]
      %v4337 = vld [vmem:[%s3852 + $0xc2] sm:$0xff]
      %v4338 = vld [vmem:[%s3852 + $0xca] sm:$0xff]
      %v4339 = vld [vmem:[%s3852 + $0xda] sm:$0xff]
      %v4340 = vld [vmem:[%s3852 + $0xe2] sm:$0xff]
      %v4341 = vld [vmem:[%s3852 + $0xf2] sm:$0xff]
      %v4342 = vld [vmem:[%s3852 + $0xfa] sm:$0xff]
      %v4343 = vld [vmem:[%s3852 + $0x10a] sm:$0xff]
      %v4344 = vld [vmem:[%s3852 + $0x112] sm:$0xff]
      %v4345 = vld [vmem:[%s3852 + $0x122] sm:$0xff]
      %v4346 = vld [vmem:[%s3852 + $0x12a] sm:$0xff]
      %v4347 = vld [vmem:[%s3852 + $0x13a] sm:$0xff]
      %v4348 = vld [vmem:[%s3852 + $0x142] sm:$0xff]
      %v4349 = vld [vmem:[%s3852 + $0x152] sm:$0xff]
      %v4350 = vld [vmem:[%s3852 + $0x15a] sm:$0xff]
      %v4351 = vld [vmem:[%s3852 + $0x16a] sm:$0xff]
      %v4352 = vld [vmem:[%s3852 + $0x172] sm:$0xff]
      %v4353 = vpack.c.bf16 %v4322, %v4321
      %v4354 = vpack.c.bf16 %v4324, %v4323
      %v4355 = vpack.c.bf16 %v4326, %v4325
      %v4356 = vpack.c.bf16 %v4328, %v4327
      %v4357 = vpack.c.bf16 %v4330, %v4329
      %v4358 = vpack.c.bf16 %v4332, %v4331
      %v4359 = vpack.c.bf16 %v4334, %v4333
      %v4360 = vpack.c.bf16 %v4336, %v4335
      %v4361 = vpack.c.bf16 %v4338, %v4337
      %v4362 = vpack.c.bf16 %v4340, %v4339
      %v4363 = vpack.c.bf16 %v4342, %v4341
      %v4364 = vpack.c.bf16 %v4344, %v4343
      %v4365 = vpack.c.bf16 %v4346, %v4345
      %v4366 = vpack.c.bf16 %v4348, %v4347
      %v4367 = vpack.c.bf16 %v4350, %v4349
      %v4368 = vpack.c.bf16 %v4352, %v4351
      %s4369 = scalar_lea.vmem %s4, 512
      %v4370 = vld [vmem:[%s4369] sm:$0xf]
      %v4371 = vld [vmem:[%s4369 + $0x4] sm:$0xf]
      %v4372 = vld [vmem:[%s4369 + $0x8] sm:$0xf]
      %v4373 = vld [vmem:[%s4369 + $0xc] sm:$0xf]
      %v4374 = vld [vmem:[%s4369 + $0x10] sm:$0xf]
      %v4375 = vld [vmem:[%s4369 + $0x14] sm:$0xf]
      %v4376 = vld [vmem:[%s4369 + $0x18] sm:$0xf]
      %v4377 = vld [vmem:[%s4369 + $0x1c] sm:$0xf]
      %v4378 = vld [vmem:[%s4369 + $0x20] sm:$0xf]
      %v4379 = vld [vmem:[%s4369 + $0x24] sm:$0xf]
      %v4380 = vld [vmem:[%s4369 + $0x28] sm:$0xf]
      %v4381 = vld [vmem:[%s4369 + $0x2c] sm:$0xf]
      %v4382 = vld [vmem:[%s4369 + $0x30] sm:$0xf]
      %v4383 = vld [vmem:[%s4369 + $0x34] sm:$0xf]
      %v4384 = vld [vmem:[%s4369 + $0x38] sm:$0xf]
      %v4385 = vld [vmem:[%s4369 + $0x3c] sm:$0xf]
      %v4402 = vunpack.c.l.b16 %v4370
      %v4403 = vunpack.c.l.b16 %v4371
      %v4404 = vunpack.c.l.b16 %v4372
      %v4405 = vunpack.c.l.b16 %v4373
      %v4406 = vunpack.c.l.b16 %v4374
      %v4407 = vunpack.c.l.b16 %v4375
      %v4408 = vunpack.c.l.b16 %v4376
      %v4409 = vunpack.c.l.b16 %v4377
      %v4410 = vunpack.c.l.b16 %v4378
      %v4411 = vunpack.c.l.b16 %v4379
      %v4412 = vunpack.c.l.b16 %v4380
      %v4413 = vunpack.c.l.b16 %v4381
      %v4414 = vunpack.c.l.b16 %v4382
      %v4415 = vunpack.c.l.b16 %v4383
      %v4416 = vunpack.c.l.b16 %v4384
      %v4417 = vunpack.c.l.b16 %v4385
      %v4418 = vpack.c.b16 %v4403, %v4402
      %v4419 = vpack.c.b16 %v4405, %v4404
      %v4420 = vpack.c.b16 %v4407, %v4406
      %v4421 = vpack.c.b16 %v4409, %v4408
      %v4422 = vpack.c.b16 %v4411, %v4410
      %v4423 = vpack.c.b16 %v4413, %v4412
      %v4424 = vpack.c.b16 %v4415, %v4414
      %v4425 = vpack.c.b16 %v4417, %v4416
      %4434 = vmatpush.bf16.msra.mxu0 %v4425
      %4435 = vmatpush.bf16.msra.mxu0 %v4424
      %4436 = vmatpush.bf16.msra.mxu0 %v4423
      %4437 = vmatpush.bf16.msra.mxu0 %v4422
      %4438 = vmatpush.bf16.msra.mxu0 %v4421
      %4439 = vmatpush.bf16.msra.mxu0 %v4420
      %4440 = vmatpush.bf16.msra.mxu0 %v4419
      %4441 = vmatpush.bf16.msra.mxu0 %v4418
      %4442 = vmatmul.bf16.gmra.mxu0 %v4353
      %v4443 = vpop.f32.mrf.mxu0
      %v4444 = vadd.f32 0.0, %v4443
      %v4445 = vpop.f32.mrf.mxu0
      %v4446 = vadd.f32 0.0, %v4445
      %4447 = vmatmul.bf16.gmra.mxu0 %v4354
      %v4448 = vpop.f32.mrf.mxu0
      %v4449 = vadd.f32 0.0, %v4448
      %v4450 = vpop.f32.mrf.mxu0
      %v4451 = vadd.f32 0.0, %v4450
      %4452 = vmatmul.bf16.gmra.mxu0 %v4355
      %v4453 = vpop.f32.mrf.mxu0
      %v4454 = vadd.f32 0.0, %v4453
      %v4455 = vpop.f32.mrf.mxu0
      %v4456 = vadd.f32 0.0, %v4455
      %4457 = vmatmul.bf16.gmra.mxu0 %v4356
      %v4458 = vpop.f32.mrf.mxu0
      %v4459 = vadd.f32 0.0, %v4458
      %v4460 = vpop.f32.mrf.mxu0
      %v4461 = vadd.f32 0.0, %v4460
      %4462 = vmatmul.bf16.gmra.mxu0 %v4357
      %v4463 = vpop.f32.mrf.mxu0
      %v4464 = vadd.f32 0.0, %v4463
      %v4465 = vpop.f32.mrf.mxu0
      %v4466 = vadd.f32 0.0, %v4465
      %4467 = vmatmul.bf16.gmra.mxu0 %v4358
      %v4468 = vpop.f32.mrf.mxu0
      %v4469 = vadd.f32 0.0, %v4468
      %v4470 = vpop.f32.mrf.mxu0
      %v4471 = vadd.f32 0.0, %v4470
      %4472 = vmatmul.bf16.gmra.mxu0 %v4359
      %v4473 = vpop.f32.mrf.mxu0
      %v4474 = vadd.f32 0.0, %v4473
      %v4475 = vpop.f32.mrf.mxu0
      %v4476 = vadd.f32 0.0, %v4475
      %4477 = vmatmul.bf16.gmra.mxu0 %v4360
      %v4478 = vpop.f32.mrf.mxu0
      %v4479 = vadd.f32 0.0, %v4478
      %v4480 = vpop.f32.mrf.mxu0
      %v4481 = vadd.f32 0.0, %v4480
      %4482 = vmatmul.bf16.gmra.mxu0 %v4361
      %v4483 = vpop.f32.mrf.mxu0
      %v4484 = vadd.f32 0.0, %v4483
      %v4485 = vpop.f32.mrf.mxu0
      %v4486 = vadd.f32 0.0, %v4485
      %4487 = vmatmul.bf16.gmra.mxu0 %v4362
      %v4488 = vpop.f32.mrf.mxu0
      %v4489 = vadd.f32 0.0, %v4488
      %v4490 = vpop.f32.mrf.mxu0
      %v4491 = vadd.f32 0.0, %v4490
      %4492 = vmatmul.bf16.gmra.mxu0 %v4363
      %v4493 = vpop.f32.mrf.mxu0
      %v4494 = vadd.f32 0.0, %v4493
      %v4495 = vpop.f32.mrf.mxu0
      %v4496 = vadd.f32 0.0, %v4495
      %4497 = vmatmul.bf16.gmra.mxu0 %v4364
      %v4498 = vpop.f32.mrf.mxu0
      %v4499 = vadd.f32 0.0, %v4498
      %v4500 = vpop.f32.mrf.mxu0
      %v4501 = vadd.f32 0.0, %v4500
      %4502 = vmatmul.bf16.gmra.mxu0 %v4365
      %v4503 = vpop.f32.mrf.mxu0
      %v4504 = vadd.f32 0.0, %v4503
      %v4505 = vpop.f32.mrf.mxu0
      %v4506 = vadd.f32 0.0, %v4505
      %4507 = vmatmul.bf16.gmra.mxu0 %v4366
      %v4508 = vpop.f32.mrf.mxu0
      %v4509 = vadd.f32 0.0, %v4508
      %v4510 = vpop.f32.mrf.mxu0
      %v4511 = vadd.f32 0.0, %v4510
      %4512 = vmatmul.bf16.gmra.mxu0 %v4367
      %v4513 = vpop.f32.mrf.mxu0
      %v4514 = vadd.f32 0.0, %v4513
      %v4515 = vpop.f32.mrf.mxu0
      %v4516 = vadd.f32 0.0, %v4515
      %4517 = vmatmul.bf16.gmra.mxu0 %v4368
      %v4518 = vpop.f32.mrf.mxu0
      %v4519 = vadd.f32 0.0, %v4518
      %v4520 = vpop.f32.mrf.mxu0
      %v4521 = vadd.f32 0.0, %v4520
      %4522 = vdwg.mxu0
      %v4523 = vadd.f32 %v4289, %v4444
      %v4524 = vadd.f32 %v4290, %v4446
      %v4525 = vadd.f32 %v4291, %v4449
      %v4526 = vadd.f32 %v4292, %v4451
      %v4527 = vadd.f32 %v4293, %v4454
      %v4528 = vadd.f32 %v4294, %v4456
      %v4529 = vadd.f32 %v4295, %v4459
      %v4530 = vadd.f32 %v4296, %v4461
      %v4531 = vadd.f32 %v4297, %v4464
      %v4532 = vadd.f32 %v4298, %v4466
      %v4533 = vadd.f32 %v4299, %v4469
      %v4534 = vadd.f32 %v4300, %v4471
      %v4535 = vadd.f32 %v4301, %v4474
      %v4536 = vadd.f32 %v4302, %v4476
      %v4537 = vadd.f32 %v4303, %v4479
      %v4538 = vadd.f32 %v4304, %v4481
      %v4539 = vadd.f32 %v4305, %v4484
      %v4540 = vadd.f32 %v4306, %v4486
      %v4541 = vadd.f32 %v4307, %v4489
      %v4542 = vadd.f32 %v4308, %v4491
      %v4543 = vadd.f32 %v4309, %v4494
      %v4544 = vadd.f32 %v4310, %v4496
      %v4545 = vadd.f32 %v4311, %v4499
      %v4546 = vadd.f32 %v4312, %v4501
      %v4547 = vadd.f32 %v4313, %v4504
      %v4548 = vadd.f32 %v4314, %v4506
      %v4549 = vadd.f32 %v4315, %v4509
      %v4550 = vadd.f32 %v4316, %v4511
      %v4551 = vadd.f32 %v4317, %v4514
      %v4552 = vadd.f32 %v4318, %v4516
      %v4553 = vadd.f32 %v4319, %v4519
      %v4554 = vadd.f32 %v4320, %v4521
      %v4555 = vld [vmem:[%s916 + $0x1] sm:$0xff]
      %v4556 = vld [vmem:[%s916 + $0x9] sm:$0xff]
      %v4557 = vld [vmem:[%s916 + $0x19] sm:$0xff]
      %v4558 = vld [vmem:[%s916 + $0x21] sm:$0xff]
      %v4559 = vld [vmem:[%s916 + $0x31] sm:$0xff]
      %v4560 = vld [vmem:[%s916 + $0x39] sm:$0xff]
      %v4561 = vld [vmem:[%s916 + $0x49] sm:$0xff]
      %v4562 = vld [vmem:[%s916 + $0x51] sm:$0xff]
      %v4563 = vld [vmem:[%s916 + $0x61] sm:$0xff]
      %v4564 = vld [vmem:[%s916 + $0x69] sm:$0xff]
      %v4565 = vld [vmem:[%s916 + $0x79] sm:$0xff]
      %v4566 = vld [vmem:[%s916 + $0x81] sm:$0xff]
      %v4567 = vld [vmem:[%s916 + $0x91] sm:$0xff]
      %v4568 = vld [vmem:[%s916 + $0x99] sm:$0xff]
      %v4569 = vld [vmem:[%s916 + $0xa9] sm:$0xff]
      %v4570 = vld [vmem:[%s916 + $0xb1] sm:$0xff]
      %v4571 = vld [vmem:[%s916 + $0xc1] sm:$0xff]
      %v4572 = vld [vmem:[%s916 + $0xc9] sm:$0xff]
      %v4573 = vld [vmem:[%s916 + $0xd9] sm:$0xff]
      %v4574 = vld [vmem:[%s916 + $0xe1] sm:$0xff]
      %v4575 = vld [vmem:[%s916 + $0xf1] sm:$0xff]
      %v4576 = vld [vmem:[%s916 + $0xf9] sm:$0xff]
      %v4577 = vld [vmem:[%s916 + $0x109] sm:$0xff]
      %v4578 = vld [vmem:[%s916 + $0x111] sm:$0xff]
      %v4579 = vld [vmem:[%s916 + $0x121] sm:$0xff]
      %v4580 = vld [vmem:[%s916 + $0x129] sm:$0xff]
      %v4581 = vld [vmem:[%s916 + $0x139] sm:$0xff]
      %v4582 = vld [vmem:[%s916 + $0x141] sm:$0xff]
      %v4583 = vld [vmem:[%s916 + $0x151] sm:$0xff]
      %v4584 = vld [vmem:[%s916 + $0x159] sm:$0xff]
      %v4585 = vld [vmem:[%s916 + $0x169] sm:$0xff]
      %v4586 = vld [vmem:[%s916 + $0x171] sm:$0xff]
      %v4587 = vld [vmem:[%s5] sm:$0x1]
      %v4589 = vperm.slane %v4587, 0
      %v4591 = vmul.f32 %v4523, %v4589
      %v4592 = vmul.f32 %v4524, %v4589
      %v4593 = vmul.f32 %v4525, %v4589
      %v4594 = vmul.f32 %v4526, %v4589
      %v4595 = vmul.f32 %v4527, %v4589
      %v4596 = vmul.f32 %v4528, %v4589
      %v4597 = vmul.f32 %v4529, %v4589
      %v4598 = vmul.f32 %v4530, %v4589
      %v4599 = vmul.f32 %v4531, %v4589
      %v4600 = vmul.f32 %v4532, %v4589
      %v4601 = vmul.f32 %v4533, %v4589
      %v4602 = vmul.f32 %v4534, %v4589
      %v4603 = vmul.f32 %v4535, %v4589
      %v4604 = vmul.f32 %v4536, %v4589
      %v4605 = vmul.f32 %v4537, %v4589
      %v4606 = vmul.f32 %v4538, %v4589
      %v4607 = vmul.f32 %v4539, %v4589
      %v4608 = vmul.f32 %v4540, %v4589
      %v4609 = vmul.f32 %v4541, %v4589
      %v4610 = vmul.f32 %v4542, %v4589
      %v4611 = vmul.f32 %v4543, %v4589
      %v4612 = vmul.f32 %v4544, %v4589
      %v4613 = vmul.f32 %v4545, %v4589
      %v4614 = vmul.f32 %v4546, %v4589
      %v4615 = vmul.f32 %v4547, %v4589
      %v4616 = vmul.f32 %v4548, %v4589
      %v4617 = vmul.f32 %v4549, %v4589
      %v4618 = vmul.f32 %v4550, %v4589
      %v4619 = vmul.f32 %v4551, %v4589
      %v4620 = vmul.f32 %v4552, %v4589
      %v4621 = vmul.f32 %v4553, %v4589
      %v4622 = vmul.f32 %v4554, %v4589
      %v4623 = vld [vmem:[%s6] sm:$0x1]
      %v4625 = vperm.slane %v4623, 0
      %v4627 = vadd.f32 %v4591, %v4625
      %v4628 = vadd.f32 %v4592, %v4625
      %v4629 = vadd.f32 %v4593, %v4625
      %v4630 = vadd.f32 %v4594, %v4625
      %v4631 = vadd.f32 %v4595, %v4625
      %v4632 = vadd.f32 %v4596, %v4625
      %v4633 = vadd.f32 %v4597, %v4625
      %v4634 = vadd.f32 %v4598, %v4625
      %v4635 = vadd.f32 %v4599, %v4625
      %v4636 = vadd.f32 %v4600, %v4625
      %v4637 = vadd.f32 %v4601, %v4625
      %v4638 = vadd.f32 %v4602, %v4625
      %v4639 = vadd.f32 %v4603, %v4625
      %v4640 = vadd.f32 %v4604, %v4625
      %v4641 = vadd.f32 %v4605, %v4625
      %v4642 = vadd.f32 %v4606, %v4625
      %v4643 = vadd.f32 %v4607, %v4625
      %v4644 = vadd.f32 %v4608, %v4625
      %v4645 = vadd.f32 %v4609, %v4625
      %v4646 = vadd.f32 %v4610, %v4625
      %v4647 = vadd.f32 %v4611, %v4625
      %v4648 = vadd.f32 %v4612, %v4625
      %v4649 = vadd.f32 %v4613, %v4625
      %v4650 = vadd.f32 %v4614, %v4625
      %v4651 = vadd.f32 %v4615, %v4625
      %v4652 = vadd.f32 %v4616, %v4625
      %v4653 = vadd.f32 %v4617, %v4625
      %v4654 = vadd.f32 %v4618, %v4625
      %v4655 = vadd.f32 %v4619, %v4625
      %v4656 = vadd.f32 %v4620, %v4625
      %v4657 = vadd.f32 %v4621, %v4625
      %v4658 = vadd.f32 %v4622, %v4625
      %v4659 = vadd.f32 %v4627, %v4555
      %v4660 = vadd.f32 %v4628, %v4556
      %v4661 = vadd.f32 %v4629, %v4557
      %v4662 = vadd.f32 %v4630, %v4558
      %v4663 = vadd.f32 %v4631, %v4559
      %v4664 = vadd.f32 %v4632, %v4560
      %v4665 = vadd.f32 %v4633, %v4561
      %v4666 = vadd.f32 %v4634, %v4562
      %v4667 = vadd.f32 %v4635, %v4563
      %v4668 = vadd.f32 %v4636, %v4564
      %v4669 = vadd.f32 %v4637, %v4565
      %v4670 = vadd.f32 %v4638, %v4566
      %v4671 = vadd.f32 %v4639, %v4567
      %v4672 = vadd.f32 %v4640, %v4568
      %v4673 = vadd.f32 %v4641, %v4569
      %v4674 = vadd.f32 %v4642, %v4570
      %v4675 = vadd.f32 %v4643, %v4571
      %v4676 = vadd.f32 %v4644, %v4572
      %v4677 = vadd.f32 %v4645, %v4573
      %v4678 = vadd.f32 %v4646, %v4574
      %v4679 = vadd.f32 %v4647, %v4575
      %v4680 = vadd.f32 %v4648, %v4576
      %v4681 = vadd.f32 %v4649, %v4577
      %v4682 = vadd.f32 %v4650, %v4578
      %v4683 = vadd.f32 %v4651, %v4579
      %v4684 = vadd.f32 %v4652, %v4580
      %v4685 = vadd.f32 %v4653, %v4581
      %v4686 = vadd.f32 %v4654, %v4582
      %v4687 = vadd.f32 %v4655, %v4583
      %v4688 = vadd.f32 %v4656, %v4584
      %v4689 = vadd.f32 %v4657, %v4585
      %v4690 = vadd.f32 %v4658, %v4586
      %4691 = vst [vmem:[%s278] sm:$0xff] %v4659
      %4692 = vst [vmem:[%s278 + $0x8] sm:$0xff] %v4660
      %4693 = vst [vmem:[%s278 + $0x10] sm:$0xff] %v4661
      %4694 = vst [vmem:[%s278 + $0x18] sm:$0xff] %v4662
      %4695 = vst [vmem:[%s278 + $0x20] sm:$0xff] %v4663
      %4696 = vst [vmem:[%s278 + $0x28] sm:$0xff] %v4664
      %4697 = vst [vmem:[%s278 + $0x30] sm:$0xff] %v4665
      %4698 = vst [vmem:[%s278 + $0x38] sm:$0xff] %v4666
      %4699 = vst [vmem:[%s278 + $0x40] sm:$0xff] %v4667
      %4700 = vst [vmem:[%s278 + $0x48] sm:$0xff] %v4668
      %4701 = vst [vmem:[%s278 + $0x50] sm:$0xff] %v4669
      %4702 = vst [vmem:[%s278 + $0x58] sm:$0xff] %v4670
      %4703 = vst [vmem:[%s278 + $0x60] sm:$0xff] %v4671
      %4704 = vst [vmem:[%s278 + $0x68] sm:$0xff] %v4672
      %4705 = vst [vmem:[%s278 + $0x70] sm:$0xff] %v4673
      %4706 = vst [vmem:[%s278 + $0x78] sm:$0xff] %v4674
      %4707 = vst [vmem:[%s278 + $0x80] sm:$0xff] %v4675
      %4708 = vst [vmem:[%s278 + $0x88] sm:$0xff] %v4676
      %4709 = vst [vmem:[%s278 + $0x90] sm:$0xff] %v4677
      %4710 = vst [vmem:[%s278 + $0x98] sm:$0xff] %v4678
      %4711 = vst [vmem:[%s278 + $0xa0] sm:$0xff] %v4679
      %4712 = vst [vmem:[%s278 + $0xa8] sm:$0xff] %v4680
      %4713 = vst [vmem:[%s278 + $0xb0] sm:$0xff] %v4681
      %4714 = vst [vmem:[%s278 + $0xb8] sm:$0xff] %v4682
      %4715 = vst [vmem:[%s278 + $0xc0] sm:$0xff] %v4683
      %4716 = vst [vmem:[%s278 + $0xc8] sm:$0xff] %v4684
      %4717 = vst [vmem:[%s278 + $0xd0] sm:$0xff] %v4685
      %4718 = vst [vmem:[%s278 + $0xd8] sm:$0xff] %v4686
      %4719 = vst [vmem:[%s278 + $0xe0] sm:$0xff] %v4687
      %4720 = vst [vmem:[%s278 + $0xe8] sm:$0xff] %v4688
      %4721 = vst [vmem:[%s278 + $0xf0] sm:$0xff] %v4689
      %4722 = vst [vmem:[%s278 + $0xf8] sm:$0xff] %v4690
      %p4723 = scmp.lt.s32.totalorder %s18, 1
      %s4724 = scalar_select %p4723, %s18, 1
      %s4725 = smul.addr %s4724, 32
      %s4726 = smul.addr %s4725, 8
      %s4727 = scalar_lea.vmem %s7, %s4726
      // Predicated region
      $region49: #{basic_block_forward.1} parent=47 // pred_check
        %p4728 = pneg %p188
      $region50: #{basic_block_forward.1} parent=47 // pred_check_branch
        %4730 = sbr.rel (%p4728) target = $region52
      $region51: #{basic_block_forward.1} parent=47 // pred_region
        _
      $region52: #{basic_block_forward.1} parent=47 // pred_fallthru
        _
    $region48: #{basic_block_forward.1} parent=5 // pred_fallthru
      _
    %p4731 = scmp.le.s32.totalorder 2, %s13
    // Predicated region
    $region53: #{basic_block_forward.1} parent=5 // pred_check
      %p4732 = pneg %p4731
    $region54: #{basic_block_forward.1} parent=5 // pred_check_branch
      %4734 = sbr.rel (%p4732) target = $region56
    $region55: #{basic_block_forward.1} parent=5 // pred_region
      %s4735 = ssub.s32 %s13, 2
      // Predicated region
      $region57: #{basic_block_forward.1} parent=55 // pred_check
        %p4736 = pneg %p194
      $region58: #{basic_block_forward.1} parent=55 // pred_check_branch
        %4738 = sbr.rel (%p4736) target = $region60
      $region59: #{basic_block_forward.1} parent=55 // pred_region
        %p4739 = scmp.lt.s32.totalorder %s19, 1
        %s4740 = scalar_select %p4739, %s19, 1
        %s4741 = smul.addr %s4740, 32
        %s4742 = smul.addr %s4741, 8
        %s4743 = scalar_lea.vmem %s7, %s4742
      $region60: #{basic_block_forward.1} parent=55 // pred_fallthru
        _
    $region56: #{basic_block_forward.1} parent=5 // pred_fallthru
      _
  $region6: #{basic_block_forward.1} parent=0 // loop_footer
    %s17 = sadd.s32 1, %s13
  $region7: #{basic_block_forward.1} parent=0 // loop_footer_branch
    %12 = sbr.rel target = $region3
  $region8: #{basic_block_forward.1} parent=0 // loop_exit
    _

</llo_original>
